<compile_context>
chip_gen: v7x
topology: tpu7x:2x2x1
jax: 0.10.0
libtpu: 0.0.40
codegen_flags: <defaults>
</compile_context>

<pallas_src>
import functools
import math

import jax
import jax.numpy as jnp
from jax import lax
from jax.experimental import pallas as pl
from jax.experimental.pallas import tpu as pltpu

# ---- hyper-parameters (DecSALayer(c=C, num_heads=H, kernel_size=K)) ----
C = 32            # embed dim ("c")
H = 4             # num_heads
HD = C // H       # head dim
K = 9             # FFN conv kernel size (padding='LEFT' -> causal)
FILTER = 4 * C    # FFN filter size
EPS = 1e-5        # LayerNorm eps
SCALING = HD ** -0.5
GELU_C = 1.0 / math.sqrt(2.0)


# ----------------------------- Pallas kernel -----------------------------
def dec_sa_layer_kernel(
    x_ref, enc_ref,
    ln1_g, ln1_b, ln2_g, ln2_b, ln3_g, ln3_b,
    sa_wqkv_ref, sa_wo_ref,
    ca_wq_ref, ca_wkv_ref, ca_wo_ref,
    conv_w_ref, conv_b_ref, ffn2_w_ref, ffn2_b_ref,
    out_ref, logits_ref,
    *, matmul_dtype,
):
    T = x_ref.shape[1]
    S = enc_ref.shape[1]

    x = x_ref[0]       # (T, C)  -- one batch element per grid step
    enc = enc_ref[0]   # (S, C)

    def mm(a, b):      # (m, k) @ (k, n) -> (m, n), f32 accumulate
        return jnp.dot(a.astype(matmul_dtype), b.astype(matmul_dtype),
                       preferred_element_type=jnp.float32)

    def mm_nt(a, b):   # (m, d) x (n, d) -> (m, n), contract last dims (no K^T)
        return lax.dot_general(a.astype(matmul_dtype), b.astype(matmul_dtype),
                               (((1,), (1,)), ((), ())),
                               preferred_element_type=jnp.float32)

    def layer_norm(v, g_ref, b_ref):
        mu = jnp.mean(v, axis=-1, keepdims=True)
        var = jnp.mean(jnp.square(v - mu), axis=-1, keepdims=True)
        return (v - mu) * lax.rsqrt(var + EPS) * g_ref[...] + b_ref[...]

    def softmax_last(s):
        m = jnp.max(s, axis=-1, keepdims=True)
        e = jnp.exp(s - m)
        return e / jnp.sum(e, axis=-1, keepdims=True)    # exact (no approx recip)

    def mha(q, k, v, wo, write_logits):
        # q: (T, C), k/v: (src, C); head h lives in lanes [h*HD, (h+1)*HD).
        out = jnp.zeros((q.shape[0], C), jnp.float32)
        src = k.shape[0]
        for hh in range(H):                               # static, H=4
            sl = slice(hh * HD, (hh + 1) * HD)
            sc = mm_nt(q[:, sl], k[:, sl])                # (T, src) pre-softmax logits
            if write_logits:
                # lane-dense (T, H*S) store; wrapper reshapes to (B, H, T, S).
                logits_ref[0, :, hh * src:(hh + 1) * src] = sc
            ctx = mm(softmax_last(sc), v[:, sl])          # (T, HD)
            out = out + mm(ctx, wo[sl, :])                # accumulate head out-proj
        return out

    # ---- self-attention (MultiheadAttention, bias=False) ----
    residual = x
    h1 = layer_norm(x, ln1_g, ln1_b)
    qkv = mm(h1, sa_wqkv_ref[...])                        # (T, 3C) fused QKV proj
    q = qkv[:, :C] * SCALING
    k = qkv[:, C:2 * C]
    v = qkv[:, 2 * C:]
    x = residual + mha(q, k, v, sa_wo_ref[...], False)

    # ---- encoder-decoder attention ----
    residual = x
    h2 = layer_norm(x, ln2_g, ln2_b)
    q = mm(h2, ca_wq_ref[...]) * SCALING                  # (T, C)
    kv = mm(enc, ca_wkv_ref[...])                         # (S, 2C)
    k = kv[:, :C]
    v = kv[:, C:]
    x = residual + mha(q, k, v, ca_wo_ref[...], True)

    # ---- FFN: causal Conv1d (K accumulated matmuls) -> *K^-0.5 -> GELU -> Linear ----
    residual = x
    h3 = layer_norm(x, ln3_g, ln3_b)
    padded = jnp.concatenate(
        [jnp.zeros((K - 1, C), jnp.float32), h3], axis=0)  # (T+K-1, C), aligned concat
    y = jnp.zeros((T, FILTER), jnp.float32)
    for j in range(K):                                     # static, K=9
        y = y + mm(padded[j:j + T, :], conv_w_ref[j])      # (T,C)@(C,FILTER)
    y = (y + conv_b_ref[...]) * (K ** -0.5)
    y = 0.5 * y * (1.0 + lax.erf(y * GELU_C))              # exact (erf) GELU
    y = mm(y, ffn2_w_ref[...]) + ffn2_b_ref[...]
    x = residual + y

    out_ref[0] = x
    # TODO(synk): dropout layers are identity (inference); incremental_state
    # decoding, key_padding_mask / attn_mask / enc_dec_attn_constraint_mask and
    # head-averaged post-softmax attention weights are not exercised here.


# ------------------------------- wrapper ---------------------------------
def dec_sa_layer_forward(x_tbc, enc_sbc, p, *, use_bf16_matmul=False):
    T, B, _ = x_tbc.shape
    S = enc_sbc.shape[0]
    x_btc = jnp.transpose(x_tbc, (1, 0, 2)).astype(jnp.float32)
    enc_bsc = jnp.transpose(enc_sbc, (1, 0, 2)).astype(jnp.float32)

    # Plain 2-D projection weights (F.linear(x, W) == x @ W.T).
    sa_wqkv = p['sa_in_w'].T                         # (C, 3C): cols [q | k | v]
    sa_wo = p['sa_out_w'].T                          # (C, C)
    ca_wq = p['ca_in_w'][:C].T                       # (C, C)
    ca_wkv = p['ca_in_w'][C:].T                      # (C, 2C): cols [k | v]
    ca_wo = p['ca_out_w'].T                          # (C, C)
    conv_w = jnp.transpose(p['conv_w'], (2, 1, 0))   # (K, C, FILTER): conv_w[j]=W_j^T

    args = (
        x_btc, enc_bsc,
        p['ln1_g'].reshape(1, C), p['ln1_b'].reshape(1, C),
        p['ln2_g'].reshape(1, C), p['ln2_b'].reshape(1, C),
        p['ln3_g'].reshape(1, C), p['ln3_b'].reshape(1, C),
        sa_wqkv, sa_wo, ca_wq, ca_wkv, ca_wo,
        conv_w, p['conv_b'].reshape(1, FILTER),
        p['ffn2_w'].T, p['ffn2_b'].reshape(1, C),
    )

    # One batch element per grid step; "parallel" lets v7x's two TensorCores each
    # take half the batch. On single-TC v5e/v6e the extra step is ~0.35us.
    grid = (B,)

    def full_spec(shape):
        n = len(shape)
        return pl.BlockSpec(shape, lambda i, n=n: (0,) * n)

    in_specs = [
        pl.BlockSpec((1, T, C), lambda i: (i, 0, 0)),
        pl.BlockSpec((1, S, C), lambda i: (i, 0, 0)),
    ] + [full_spec((1, C))] * 6 + [
        full_spec((C, 3 * C)), full_spec((C, C)),
        full_spec((C, C)), full_spec((C, 2 * C)), full_spec((C, C)),
        full_spec((K, C, FILTER)), full_spec((1, FILTER)),
        full_spec((FILTER, C)), full_spec((1, C)),
    ]
    out_specs = [
        pl.BlockSpec((1, T, C), lambda i: (i, 0, 0)),
        pl.BlockSpec((1, T, H * S), lambda i: (i, 0, 0)),
    ]
    out_shape = (
        jax.ShapeDtypeStruct((B, T, C), jnp.float32),
        jax.ShapeDtypeStruct((B, T, H * S), jnp.float32),
    )

    rows_t, rows_s = B * T, B * S
    flops = int(
        2 * rows_t * C * 3 * C                      # self-attn fused QKV proj
        + 2 * B * H * T * T * HD * 2                # self-attn scores + PV
        + 2 * rows_t * C * C                        # self-attn out proj
        + 2 * rows_t * C * C                        # cross-attn Q proj
        + 2 * rows_s * C * 2 * C                    # cross-attn KV proj
        + 2 * B * H * T * S * HD * 2                # cross-attn scores + PV
        + 2 * rows_t * C * C                        # cross-attn out proj
        + 2 * rows_t * (K * C) * FILTER             # causal conv
        + 2 * rows_t * FILTER * C)                  # second FFN linear
    transcendentals = int(B * H * T * (T + S) + rows_t * FILTER + 3 * rows_t)
    bytes_accessed = int(sum(4 * a.size for a in args)
                         + 4 * (B * T * C + B * T * H * S))

    kernel = functools.partial(
        dec_sa_layer_kernel,
        matmul_dtype=jnp.bfloat16 if use_bf16_matmul else jnp.float32)

    out_btc, logits_flat = pl.pallas_call(
        kernel,
        out_shape=out_shape,
        grid_spec=pltpu.PrefetchScalarGridSpec(
            num_scalar_prefetch=0,
            grid=grid,
            in_specs=in_specs,
            out_specs=out_specs,
        ),
        compiler_params=pltpu.CompilerParams(
            dimension_semantics=("parallel",),
            vmem_limit_bytes=32 * 1024 * 1024),      # portable across v5e/v6e/v7x
        cost_estimate=pl.CostEstimate(
            flops=flops, transcendentals=transcendentals,
            bytes_accessed=bytes_accessed),
    )(*args)

    logits = logits_flat.reshape(B, T, H, S).transpose(0, 2, 1, 3)   # (B, H, T, S)
    return jnp.transpose(out_btc, (1, 0, 2)), logits


# --------------------------- pure-JAX reference ---------------------------
def reference_forward(x, enc, p):
    T, B_, _ = x.shape

    def ln(v, g, b):
        mu = v.mean(-1, keepdims=True)
        var = ((v - mu) ** 2).mean(-1, keepdims=True)
        return (v - mu) / jnp.sqrt(var + EPS) * g + b

    def mha(q_in, kv_in, in_w, out_w):
        tgt, bsz = q_in.shape[0], q_in.shape[1]
        src = kv_in.shape[0]
        q = (q_in @ in_w[:C].T) * SCALING
        k = kv_in @ in_w[C:2 * C].T
        v = kv_in @ in_w[2 * C:].T
        q = q.reshape(tgt, bsz * H, HD).transpose(1, 0, 2)
        k = k.reshape(src, bsz * H, HD).transpose(1, 0, 2)
        v = v.reshape(src, bsz * H, HD).transpose(1, 0, 2)
        logits = jnp.einsum('bth,bsh->bts', q, k)
        probs = jax.nn.softmax(logits, axis=-1)
        attn = jnp.einsum('bts,bsh->bth', probs, v)
        attn = attn.transpose(1, 0, 2).reshape(tgt, bsz, C)
        return attn @ out_w.T, logits.reshape(bsz, H, tgt, src)

    residual = x
    h = ln(x, p['ln1_g'], p['ln1_b'])
    sa, _ = mha(h, h, p['sa_in_w'], p['sa_out_w'])
    x = residual + sa

    residual = x
    h = ln(x, p['ln2_g'], p['ln2_b'])
    ca, logits = mha(h, enc, p['ca_in_w'], p['ca_out_w'])
    x = residual + ca

    residual = x
    h = ln(x, p['ln3_g'], p['ln3_b'])
    xp = jnp.pad(h, ((K - 1, 0), (0, 0), (0, 0)))
    y = jnp.zeros((T, B_, FILTER), jnp.float32)
    for j in range(K):
        y = y + jnp.einsum('tbc,fc->tbf', xp[j:j + T], p['conv_w'][:, :, j])
    y = (y + p['conv_b']) * (K ** -0.5)
    y = 0.5 * y * (1.0 + jax.lax.erf(y * GELU_C))
    y = y @ p['ffn2_w'].T + p['ffn2_b']
    x = residual + y
    return x, logits


# --------------------------------- main -----------------------------------
if __name__ == "__main__":
    B, T, S = 2, 8, 8

    key = jax.random.PRNGKey(0)
    ks = jax.random.split(key, 16)

    def xavier(k, shape):
        fan_out, fan_in = shape[0], shape[1]
        a = math.sqrt(6.0 / (fan_in + fan_out))
        return jax.random.uniform(k, shape, jnp.float32, -a, a)

    params = {
        'ln1_g': 1.0 + 0.1 * jax.random.normal(ks[0], (C,), jnp.float32),
        'ln1_b': 0.1 * jax.random.normal(ks[1], (C,), jnp.float32),
        'ln2_g': 1.0 + 0.1 * jax.random.normal(ks[2], (C,), jnp.float32),
        'ln2_b': 0.1 * jax.random.normal(ks[3], (C,), jnp.float32),
        'ln3_g': 1.0 + 0.1 * jax.random.normal(ks[4], (C,), jnp.float32),
        'ln3_b': 0.1 * jax.random.normal(ks[5], (C,), jnp.float32),
        'sa_in_w': xavier(ks[6], (3 * C, C)),      # self-attn in_proj_weight (3C, C), no bias
        'sa_out_w': xavier(ks[7], (C, C)),         # self-attn out_proj weight, no bias
        'ca_in_w': xavier(ks[8], (3 * C, C)),      # enc-dec attn in_proj_weight
        'ca_out_w': xavier(ks[9], (C, C)),
        'conv_w': (1.0 / math.sqrt(C * K)) *
                  jax.random.normal(ks[10], (FILTER, C, K), jnp.float32),   # Conv1d weight
        'conv_b': (1.0 / math.sqrt(C * K)) *
                  jax.random.normal(ks[11], (FILTER,), jnp.float32),        # Conv1d bias
        'ffn2_w': (1.0 / math.sqrt(FILTER)) *
                  jax.random.normal(ks[12], (C, FILTER), jnp.float32),      # Linear weight
        'ffn2_b': (1.0 / math.sqrt(FILTER)) *
                  jax.random.normal(ks[13], (C,), jnp.float32),             # Linear bias
    }

    x = jax.random.normal(ks[14], (T, B, C), jnp.float32)       # decoder input (T, B, C)
    enc = jax.random.normal(ks[15], (S, B, C), jnp.float32)     # encoder_out (S, B, C)

    out, logits = dec_sa_layer_forward(x, enc, params)
    out = jax.block_until_ready(out)
    logits = jax.block_until_ready(logits)

    ref_out, ref_logits = reference_forward(x, enc, params)
    assert out.shape == (T, B, C)
    assert logits.shape == (B, H, T, S)
    assert jnp.allclose(out, ref_out, atol=2e-3, rtol=2e-3), "output mismatch"
    assert jnp.allclose(logits, ref_logits, atol=1e-3, rtol=1e-3), "attn_logits mismatch"

    print("KERNEL_OK")
</pallas_src>

<mosaic_0001>
module attributes {stable_mosaic.version = 11 : i64} {
  func.func @dec_sa_layer_kernel(%arg0: i32, %arg1: memref<1x8x32xf32, #tpu.memory_space<vmem>>, %arg2: memref<1x8x32xf32, #tpu.memory_space<vmem>>, %arg3: memref<1x32xf32, #tpu.memory_space<vmem>>, %arg4: memref<1x32xf32, #tpu.memory_space<vmem>>, %arg5: memref<1x32xf32, #tpu.memory_space<vmem>>, %arg6: memref<1x32xf32, #tpu.memory_space<vmem>>, %arg7: memref<1x32xf32, #tpu.memory_space<vmem>>, %arg8: memref<1x32xf32, #tpu.memory_space<vmem>>, %arg9: memref<32x96xf32, #tpu.memory_space<vmem>>, %arg10: memref<32x32xf32, #tpu.memory_space<vmem>>, %arg11: memref<32x32xf32, #tpu.memory_space<vmem>>, %arg12: memref<32x64xf32, #tpu.memory_space<vmem>>, %arg13: memref<32x32xf32, #tpu.memory_space<vmem>>, %arg14: memref<9x32x128xf32, #tpu.memory_space<vmem>>, %arg15: memref<1x128xf32, #tpu.memory_space<vmem>>, %arg16: memref<128x32xf32, #tpu.memory_space<vmem>>, %arg17: memref<1x32xf32, #tpu.memory_space<vmem>>, %arg18: memref<1x8x32xf32, #tpu.memory_space<vmem>>, %arg19: memref<1x8x32xf32, #tpu.memory_space<vmem>>) attributes {dimension_semantics = [#tpu.dimension_semantics<parallel>], iteration_bounds = array<i64: 2>, scalar_prefetch = 0 : i64, scratch_operands = 0 : i64, tpu.core_type = #tpu.core_type<tc>, window_params = [{transform_indices = @transform_0, window_bounds = array<i64: 1, 8, 32>}, {transform_indices = @transform_1, window_bounds = array<i64: 1, 8, 32>}, {pipeline_mode = #tpu.pipeline_mode<synchronous>, transform_indices = @transform_2, window_bounds = array<i64: 1, 32>}, {pipeline_mode = #tpu.pipeline_mode<synchronous>, transform_indices = @transform_3, window_bounds = array<i64: 1, 32>}, {pipeline_mode = #tpu.pipeline_mode<synchronous>, transform_indices = @transform_4, window_bounds = array<i64: 1, 32>}, {pipeline_mode = #tpu.pipeline_mode<synchronous>, transform_indices = @transform_5, window_bounds = array<i64: 1, 32>}, {pipeline_mode = #tpu.pipeline_mode<synchronous>, transform_indices = @transform_6, window_bounds = array<i64: 1, 32>}, {pipeline_mode = #tpu.pipeline_mode<synchronous>, transform_indices = @transform_7, window_bounds = array<i64: 1, 32>}, {pipeline_mode = #tpu.pipeline_mode<synchronous>, transform_indices = @transform_8, window_bounds = array<i64: 32, 96>}, {pipeline_mode = #tpu.pipeline_mode<synchronous>, transform_indices = @transform_9, window_bounds = array<i64: 32, 32>}, {pipeline_mode = #tpu.pipeline_mode<synchronous>, transform_indices = @transform_10, window_bounds = array<i64: 32, 32>}, {pipeline_mode = #tpu.pipeline_mode<synchronous>, transform_indices = @transform_11, window_bounds = array<i64: 32, 64>}, {pipeline_mode = #tpu.pipeline_mode<synchronous>, transform_indices = @transform_12, window_bounds = array<i64: 32, 32>}, {pipeline_mode = #tpu.pipeline_mode<synchronous>, transform_indices = @transform_13, window_bounds = array<i64: 9, 32, 128>}, {pipeline_mode = #tpu.pipeline_mode<synchronous>, transform_indices = @transform_14, window_bounds = array<i64: 1, 128>}, {pipeline_mode = #tpu.pipeline_mode<synchronous>, transform_indices = @transform_15, window_bounds = array<i64: 128, 32>}, {pipeline_mode = #tpu.pipeline_mode<synchronous>, transform_indices = @transform_16, window_bounds = array<i64: 1, 32>}, {transform_indices = @transform_17, window_bounds = array<i64: 1, 8, 32>}, {transform_indices = @transform_18, window_bounds = array<i64: 1, 8, 32>}]} {
    %c0 = arith.constant 0 : index
    %c0_0 = arith.constant 0 : index
    %c0_1 = arith.constant 0 : index
    %0 = vector.load %arg1[%c0, %c0_0, %c0_1] : memref<1x8x32xf32, #tpu.memory_space<vmem>>, vector<1x8x32xf32>
    %1 = vector.shape_cast %0 : vector<1x8x32xf32> to vector<8x32xf32>
    %c0_2 = arith.constant 0 : index
    %c0_3 = arith.constant 0 : index
    %c0_4 = arith.constant 0 : index
    %2 = vector.load %arg2[%c0_2, %c0_3, %c0_4] : memref<1x8x32xf32, #tpu.memory_space<vmem>>, vector<1x8x32xf32>
    %3 = vector.shape_cast %2 : vector<1x8x32xf32> to vector<8x32xf32>
    %cst = arith.constant dense<0.000000e+00> : vector<8xf32>
    %4 = vector.multi_reduction <add>, %1, %cst [1] : vector<8x32xf32> to vector<8xf32>
    %5 = vector.shape_cast %4 : vector<8xf32> to vector<8x1xf32>
    %cst_5 = arith.constant 3.200000e+01 : f32
    %6 = vector.broadcast %cst_5 : f32 to vector<8x1xf32>
    %7 = arith.divf %5, %6 : vector<8x1xf32>
    %8 = vector.broadcast %7 : vector<8x1xf32> to vector<8x32xf32>
    %9 = arith.subf %1, %8 : vector<8x32xf32>
    %10 = arith.mulf %9, %9 : vector<8x32xf32>
    %cst_6 = arith.constant dense<0.000000e+00> : vector<8xf32>
    %11 = vector.multi_reduction <add>, %10, %cst_6 [1] : vector<8x32xf32> to vector<8xf32>
    %12 = vector.shape_cast %11 : vector<8xf32> to vector<8x1xf32>
    %cst_7 = arith.constant 3.200000e+01 : f32
    %13 = vector.broadcast %cst_7 : f32 to vector<8x1xf32>
    %14 = arith.divf %12, %13 : vector<8x1xf32>
    %15 = vector.broadcast %7 : vector<8x1xf32> to vector<8x32xf32>
    %16 = arith.subf %1, %15 : vector<8x32xf32>
    %cst_8 = arith.constant 9.99999974E-6 : f32
    %17 = vector.broadcast %cst_8 : f32 to vector<8x1xf32>
    %18 = arith.addf %14, %17 : vector<8x1xf32>
    %19 = math.rsqrt %18 : vector<8x1xf32>
    %20 = vector.broadcast %19 : vector<8x1xf32> to vector<8x32xf32>
    %21 = arith.mulf %16, %20 : vector<8x32xf32>
    %c0_9 = arith.constant 0 : index
    %c0_10 = arith.constant 0 : index
    %22 = vector.load %arg3[%c0_9, %c0_10] : memref<1x32xf32, #tpu.memory_space<vmem>>, vector<1x32xf32>
    %23 = vector.broadcast %22 : vector<1x32xf32> to vector<8x32xf32>
    %24 = arith.mulf %21, %23 : vector<8x32xf32>
    %c0_11 = arith.constant 0 : index
    %c0_12 = arith.constant 0 : index
    %25 = vector.load %arg4[%c0_11, %c0_12] : memref<1x32xf32, #tpu.memory_space<vmem>>, vector<1x32xf32>
    %26 = vector.broadcast %25 : vector<1x32xf32> to vector<8x32xf32>
    %27 = arith.addf %24, %26 : vector<8x32xf32>
    %c0_13 = arith.constant 0 : index
    %c0_14 = arith.constant 0 : index
    %28 = vector.load %arg9[%c0_13, %c0_14] : memref<32x96xf32, #tpu.memory_space<vmem>>, vector<32x96xf32>
    %cst_15 = arith.constant dense<0.000000e+00> : vector<8x96xf32>
    %29 = tpu.matmul %27, %28, %cst_15 {dimension_numbers = #tpu.dot_dimension_numbers<[1], [0], [0], [1], [0, 0, 1, 1], [], []>} : vector<8x32xf32>, vector<32x96xf32>, vector<8x96xf32> -> vector<8x96xf32>
    %30 = vector.extract_strided_slice %29 {offsets = [0, 0], sizes = [8, 32], strides = [1, 1]} : vector<8x96xf32> to vector<8x32xf32>
    %cst_16 = arith.constant 0.353553385 : f32
    %31 = vector.broadcast %cst_16 : f32 to vector<8x32xf32>
    %32 = arith.mulf %30, %31 : vector<8x32xf32>
    %33 = vector.extract_strided_slice %29 {offsets = [0, 32], sizes = [8, 32], strides = [1, 1]} : vector<8x96xf32> to vector<8x32xf32>
    %34 = vector.extract_strided_slice %29 {offsets = [0, 64], sizes = [8, 32], strides = [1, 1]} : vector<8x96xf32> to vector<8x32xf32>
    %c0_17 = arith.constant 0 : index
    %c0_18 = arith.constant 0 : index
    %35 = vector.load %arg10[%c0_17, %c0_18] : memref<32x32xf32, #tpu.memory_space<vmem>>, vector<32x32xf32>
    %cst_19 = arith.constant 0.000000e+00 : f32
    %36 = vector.broadcast %cst_19 : f32 to vector<8x32xf32>
    %37 = vector.extract_strided_slice %32 {offsets = [0, 0], sizes = [8, 8], strides = [1, 1]} : vector<8x32xf32> to vector<8x8xf32>
    %38 = vector.extract_strided_slice %33 {offsets = [0, 0], sizes = [8, 8], strides = [1, 1]} : vector<8x32xf32> to vector<8x8xf32>
    %cst_20 = arith.constant dense<0.000000e+00> : vector<8x8xf32>
    %39 = tpu.matmul %37, %38, %cst_20 {dimension_numbers = #tpu.dot_dimension_numbers<[1], [1], [0], [0], [0, 0, 1, 0], [], []>} : vector<8x8xf32>, vector<8x8xf32>, vector<8x8xf32> -> vector<8x8xf32>
    %cst_21 = arith.constant dense<0xFF800000> : vector<8xf32>
    %40 = vector.multi_reduction <maximumf>, %39, %cst_21 [1] : vector<8x8xf32> to vector<8xf32>
    %41 = vector.shape_cast %40 : vector<8xf32> to vector<8x1xf32>
    %42 = vector.broadcast %41 : vector<8x1xf32> to vector<8x8xf32>
    %43 = arith.subf %39, %42 : vector<8x8xf32>
    %44 = math.exp %43 : vector<8x8xf32>
    %cst_22 = arith.constant dense<0.000000e+00> : vector<8xf32>
    %45 = vector.multi_reduction <add>, %44, %cst_22 [1] : vector<8x8xf32> to vector<8xf32>
    %46 = vector.shape_cast %45 : vector<8xf32> to vector<8x1xf32>
    %47 = vector.broadcast %46 : vector<8x1xf32> to vector<8x8xf32>
    %48 = arith.divf %44, %47 : vector<8x8xf32>
    %49 = vector.extract_strided_slice %34 {offsets = [0, 0], sizes = [8, 8], strides = [1, 1]} : vector<8x32xf32> to vector<8x8xf32>
    %cst_23 = arith.constant dense<0.000000e+00> : vector<8x8xf32>
    %50 = tpu.matmul %48, %49, %cst_23 {dimension_numbers = #tpu.dot_dimension_numbers<[1], [0], [0], [1], [0, 0, 1, 1], [], []>} : vector<8x8xf32>, vector<8x8xf32>, vector<8x8xf32> -> vector<8x8xf32>
    %51 = vector.extract_strided_slice %35 {offsets = [0, 0], sizes = [8, 32], strides = [1, 1]} : vector<32x32xf32> to vector<8x32xf32>
    %cst_24 = arith.constant dense<0.000000e+00> : vector<8x32xf32>
    %52 = tpu.matmul %50, %51, %cst_24 {dimension_numbers = #tpu.dot_dimension_numbers<[1], [0], [0], [1], [0, 0, 1, 1], [], []>} : vector<8x8xf32>, vector<8x32xf32>, vector<8x32xf32> -> vector<8x32xf32>
    %53 = arith.addf %36, %52 : vector<8x32xf32>
    %54 = vector.extract_strided_slice %32 {offsets = [0, 8], sizes = [8, 8], strides = [1, 1]} : vector<8x32xf32> to vector<8x8xf32>
    %55 = vector.extract_strided_slice %33 {offsets = [0, 8], sizes = [8, 8], strides = [1, 1]} : vector<8x32xf32> to vector<8x8xf32>
    %cst_25 = arith.constant dense<0.000000e+00> : vector<8x8xf32>
    %56 = tpu.matmul %54, %55, %cst_25 {dimension_numbers = #tpu.dot_dimension_numbers<[1], [1], [0], [0], [0, 0, 1, 0], [], []>} : vector<8x8xf32>, vector<8x8xf32>, vector<8x8xf32> -> vector<8x8xf32>
    %cst_26 = arith.constant dense<0xFF800000> : vector<8xf32>
    %57 = vector.multi_reduction <maximumf>, %56, %cst_26 [1] : vector<8x8xf32> to vector<8xf32>
    %58 = vector.shape_cast %57 : vector<8xf32> to vector<8x1xf32>
    %59 = vector.broadcast %58 : vector<8x1xf32> to vector<8x8xf32>
    %60 = arith.subf %56, %59 : vector<8x8xf32>
    %61 = math.exp %60 : vector<8x8xf32>
    %cst_27 = arith.constant dense<0.000000e+00> : vector<8xf32>
    %62 = vector.multi_reduction <add>, %61, %cst_27 [1] : vector<8x8xf32> to vector<8xf32>
    %63 = vector.shape_cast %62 : vector<8xf32> to vector<8x1xf32>
    %64 = vector.broadcast %63 : vector<8x1xf32> to vector<8x8xf32>
    %65 = arith.divf %61, %64 : vector<8x8xf32>
    %66 = vector.extract_strided_slice %34 {offsets = [0, 8], sizes = [8, 8], strides = [1, 1]} : vector<8x32xf32> to vector<8x8xf32>
    %cst_28 = arith.constant dense<0.000000e+00> : vector<8x8xf32>
    %67 = tpu.matmul %65, %66, %cst_28 {dimension_numbers = #tpu.dot_dimension_numbers<[1], [0], [0], [1], [0, 0, 1, 1], [], []>} : vector<8x8xf32>, vector<8x8xf32>, vector<8x8xf32> -> vector<8x8xf32>
    %68 = vector.extract_strided_slice %35 {offsets = [8, 0], sizes = [8, 32], strides = [1, 1]} : vector<32x32xf32> to vector<8x32xf32>
    %cst_29 = arith.constant dense<0.000000e+00> : vector<8x32xf32>
    %69 = tpu.matmul %67, %68, %cst_29 {dimension_numbers = #tpu.dot_dimension_numbers<[1], [0], [0], [1], [0, 0, 1, 1], [], []>} : vector<8x8xf32>, vector<8x32xf32>, vector<8x32xf32> -> vector<8x32xf32>
    %70 = arith.addf %53, %69 : vector<8x32xf32>
    %71 = vector.extract_strided_slice %32 {offsets = [0, 16], sizes = [8, 8], strides = [1, 1]} : vector<8x32xf32> to vector<8x8xf32>
    %72 = vector.extract_strided_slice %33 {offsets = [0, 16], sizes = [8, 8], strides = [1, 1]} : vector<8x32xf32> to vector<8x8xf32>
    %cst_30 = arith.constant dense<0.000000e+00> : vector<8x8xf32>
    %73 = tpu.matmul %71, %72, %cst_30 {dimension_numbers = #tpu.dot_dimension_numbers<[1], [1], [0], [0], [0, 0, 1, 0], [], []>} : vector<8x8xf32>, vector<8x8xf32>, vector<8x8xf32> -> vector<8x8xf32>
    %cst_31 = arith.constant dense<0xFF800000> : vector<8xf32>
    %74 = vector.multi_reduction <maximumf>, %73, %cst_31 [1] : vector<8x8xf32> to vector<8xf32>
    %75 = vector.shape_cast %74 : vector<8xf32> to vector<8x1xf32>
    %76 = vector.broadcast %75 : vector<8x1xf32> to vector<8x8xf32>
    %77 = arith.subf %73, %76 : vector<8x8xf32>
    %78 = math.exp %77 : vector<8x8xf32>
    %cst_32 = arith.constant dense<0.000000e+00> : vector<8xf32>
    %79 = vector.multi_reduction <add>, %78, %cst_32 [1] : vector<8x8xf32> to vector<8xf32>
    %80 = vector.shape_cast %79 : vector<8xf32> to vector<8x1xf32>
    %81 = vector.broadcast %80 : vector<8x1xf32> to vector<8x8xf32>
    %82 = arith.divf %78, %81 : vector<8x8xf32>
    %83 = vector.extract_strided_slice %34 {offsets = [0, 16], sizes = [8, 8], strides = [1, 1]} : vector<8x32xf32> to vector<8x8xf32>
    %cst_33 = arith.constant dense<0.000000e+00> : vector<8x8xf32>
    %84 = tpu.matmul %82, %83, %cst_33 {dimension_numbers = #tpu.dot_dimension_numbers<[1], [0], [0], [1], [0, 0, 1, 1], [], []>} : vector<8x8xf32>, vector<8x8xf32>, vector<8x8xf32> -> vector<8x8xf32>
    %85 = vector.extract_strided_slice %35 {offsets = [16, 0], sizes = [8, 32], strides = [1, 1]} : vector<32x32xf32> to vector<8x32xf32>
    %cst_34 = arith.constant dense<0.000000e+00> : vector<8x32xf32>
    %86 = tpu.matmul %84, %85, %cst_34 {dimension_numbers = #tpu.dot_dimension_numbers<[1], [0], [0], [1], [0, 0, 1, 1], [], []>} : vector<8x8xf32>, vector<8x32xf32>, vector<8x32xf32> -> vector<8x32xf32>
    %87 = arith.addf %70, %86 : vector<8x32xf32>
    %88 = vector.extract_strided_slice %32 {offsets = [0, 24], sizes = [8, 8], strides = [1, 1]} : vector<8x32xf32> to vector<8x8xf32>
    %89 = vector.extract_strided_slice %33 {offsets = [0, 24], sizes = [8, 8], strides = [1, 1]} : vector<8x32xf32> to vector<8x8xf32>
    %cst_35 = arith.constant dense<0.000000e+00> : vector<8x8xf32>
    %90 = tpu.matmul %88, %89, %cst_35 {dimension_numbers = #tpu.dot_dimension_numbers<[1], [1], [0], [0], [0, 0, 1, 0], [], []>} : vector<8x8xf32>, vector<8x8xf32>, vector<8x8xf32> -> vector<8x8xf32>
    %cst_36 = arith.constant dense<0xFF800000> : vector<8xf32>
    %91 = vector.multi_reduction <maximumf>, %90, %cst_36 [1] : vector<8x8xf32> to vector<8xf32>
    %92 = vector.shape_cast %91 : vector<8xf32> to vector<8x1xf32>
    %93 = vector.broadcast %92 : vector<8x1xf32> to vector<8x8xf32>
    %94 = arith.subf %90, %93 : vector<8x8xf32>
    %95 = math.exp %94 : vector<8x8xf32>
    %cst_37 = arith.constant dense<0.000000e+00> : vector<8xf32>
    %96 = vector.multi_reduction <add>, %95, %cst_37 [1] : vector<8x8xf32> to vector<8xf32>
    %97 = vector.shape_cast %96 : vector<8xf32> to vector<8x1xf32>
    %98 = vector.broadcast %97 : vector<8x1xf32> to vector<8x8xf32>
    %99 = arith.divf %95, %98 : vector<8x8xf32>
    %100 = vector.extract_strided_slice %34 {offsets = [0, 24], sizes = [8, 8], strides = [1, 1]} : vector<8x32xf32> to vector<8x8xf32>
    %cst_38 = arith.constant dense<0.000000e+00> : vector<8x8xf32>
    %101 = tpu.matmul %99, %100, %cst_38 {dimension_numbers = #tpu.dot_dimension_numbers<[1], [0], [0], [1], [0, 0, 1, 1], [], []>} : vector<8x8xf32>, vector<8x8xf32>, vector<8x8xf32> -> vector<8x8xf32>
    %102 = vector.extract_strided_slice %35 {offsets = [24, 0], sizes = [8, 32], strides = [1, 1]} : vector<32x32xf32> to vector<8x32xf32>
    %cst_39 = arith.constant dense<0.000000e+00> : vector<8x32xf32>
    %103 = tpu.matmul %101, %102, %cst_39 {dimension_numbers = #tpu.dot_dimension_numbers<[1], [0], [0], [1], [0, 0, 1, 1], [], []>} : vector<8x8xf32>, vector<8x32xf32>, vector<8x32xf32> -> vector<8x32xf32>
    %104 = arith.addf %87, %103 : vector<8x32xf32>
    %105 = arith.addf %1, %104 : vector<8x32xf32>
    %cst_40 = arith.constant dense<0.000000e+00> : vector<8xf32>
    %106 = vector.multi_reduction <add>, %105, %cst_40 [1] : vector<8x32xf32> to vector<8xf32>
    %107 = vector.shape_cast %106 : vector<8xf32> to vector<8x1xf32>
    %cst_41 = arith.constant 3.200000e+01 : f32
    %108 = vector.broadcast %cst_41 : f32 to vector<8x1xf32>
    %109 = arith.divf %107, %108 : vector<8x1xf32>
    %110 = vector.broadcast %109 : vector<8x1xf32> to vector<8x32xf32>
    %111 = arith.subf %105, %110 : vector<8x32xf32>
    %112 = arith.mulf %111, %111 : vector<8x32xf32>
    %cst_42 = arith.constant dense<0.000000e+00> : vector<8xf32>
    %113 = vector.multi_reduction <add>, %112, %cst_42 [1] : vector<8x32xf32> to vector<8xf32>
    %114 = vector.shape_cast %113 : vector<8xf32> to vector<8x1xf32>
    %cst_43 = arith.constant 3.200000e+01 : f32
    %115 = vector.broadcast %cst_43 : f32 to vector<8x1xf32>
    %116 = arith.divf %114, %115 : vector<8x1xf32>
    %117 = vector.broadcast %109 : vector<8x1xf32> to vector<8x32xf32>
    %118 = arith.subf %105, %117 : vector<8x32xf32>
    %cst_44 = arith.constant 9.99999974E-6 : f32
    %119 = vector.broadcast %cst_44 : f32 to vector<8x1xf32>
    %120 = arith.addf %116, %119 : vector<8x1xf32>
    %121 = math.rsqrt %120 : vector<8x1xf32>
    %122 = vector.broadcast %121 : vector<8x1xf32> to vector<8x32xf32>
    %123 = arith.mulf %118, %122 : vector<8x32xf32>
    %c0_45 = arith.constant 0 : index
    %c0_46 = arith.constant 0 : index
    %124 = vector.load %arg5[%c0_45, %c0_46] : memref<1x32xf32, #tpu.memory_space<vmem>>, vector<1x32xf32>
    %125 = vector.broadcast %124 : vector<1x32xf32> to vector<8x32xf32>
    %126 = arith.mulf %123, %125 : vector<8x32xf32>
    %c0_47 = arith.constant 0 : index
    %c0_48 = arith.constant 0 : index
    %127 = vector.load %arg6[%c0_47, %c0_48] : memref<1x32xf32, #tpu.memory_space<vmem>>, vector<1x32xf32>
    %128 = vector.broadcast %127 : vector<1x32xf32> to vector<8x32xf32>
    %129 = arith.addf %126, %128 : vector<8x32xf32>
    %c0_49 = arith.constant 0 : index
    %c0_50 = arith.constant 0 : index
    %130 = vector.load %arg11[%c0_49, %c0_50] : memref<32x32xf32, #tpu.memory_space<vmem>>, vector<32x32xf32>
    %cst_51 = arith.constant dense<0.000000e+00> : vector<8x32xf32>
    %131 = tpu.matmul %129, %130, %cst_51 {dimension_numbers = #tpu.dot_dimension_numbers<[1], [0], [0], [1], [0, 0, 1, 1], [], []>} : vector<8x32xf32>, vector<32x32xf32>, vector<8x32xf32> -> vector<8x32xf32>
    %cst_52 = arith.constant 0.353553385 : f32
    %132 = vector.broadcast %cst_52 : f32 to vector<8x32xf32>
    %133 = arith.mulf %131, %132 : vector<8x32xf32>
    %c0_53 = arith.constant 0 : index
    %c0_54 = arith.constant 0 : index
    %134 = vector.load %arg12[%c0_53, %c0_54] : memref<32x64xf32, #tpu.memory_space<vmem>>, vector<32x64xf32>
    %cst_55 = arith.constant dense<0.000000e+00> : vector<8x64xf32>
    %135 = tpu.matmul %3, %134, %cst_55 {dimension_numbers = #tpu.dot_dimension_numbers<[1], [0], [0], [1], [0, 0, 1, 1], [], []>} : vector<8x32xf32>, vector<32x64xf32>, vector<8x64xf32> -> vector<8x64xf32>
    %136 = vector.extract_strided_slice %135 {offsets = [0, 0], sizes = [8, 32], strides = [1, 1]} : vector<8x64xf32> to vector<8x32xf32>
    %137 = vector.extract_strided_slice %135 {offsets = [0, 32], sizes = [8, 32], strides = [1, 1]} : vector<8x64xf32> to vector<8x32xf32>
    %c0_56 = arith.constant 0 : index
    %c0_57 = arith.constant 0 : index
    %138 = vector.load %arg13[%c0_56, %c0_57] : memref<32x32xf32, #tpu.memory_space<vmem>>, vector<32x32xf32>
    %cst_58 = arith.constant 0.000000e+00 : f32
    %139 = vector.broadcast %cst_58 : f32 to vector<8x32xf32>
    %140 = vector.extract_strided_slice %133 {offsets = [0, 0], sizes = [8, 8], strides = [1, 1]} : vector<8x32xf32> to vector<8x8xf32>
    %141 = vector.extract_strided_slice %136 {offsets = [0, 0], sizes = [8, 8], strides = [1, 1]} : vector<8x32xf32> to vector<8x8xf32>
    %cst_59 = arith.constant dense<0.000000e+00> : vector<8x8xf32>
    %142 = tpu.matmul %140, %141, %cst_59 {dimension_numbers = #tpu.dot_dimension_numbers<[1], [1], [0], [0], [0, 0, 1, 0], [], []>} : vector<8x8xf32>, vector<8x8xf32>, vector<8x8xf32> -> vector<8x8xf32>
    %c0_60 = arith.constant 0 : index
    %c0_61 = arith.constant 0 : index
    %c0_62 = arith.constant 0 : index
    %143 = vector.load %arg19[%c0_60, %c0_61, %c0_62] : memref<1x8x32xf32, #tpu.memory_space<vmem>>, vector<1x8x8xf32>
    %144 = vector.shape_cast %143 : vector<1x8x8xf32> to vector<8x8xf32>
    %145 = vector.shape_cast %142 : vector<8x8xf32> to vector<1x8x8xf32>
    tpu.vector_store %arg19[%c0_60, %c0_61, %c0_62], %145 {strides = array<i32>} : memref<1x8x32xf32, #tpu.memory_space<vmem>>, vector<1x8x8xf32>,
    %cst_63 = arith.constant dense<0xFF800000> : vector<8xf32>
    %146 = vector.multi_reduction <maximumf>, %142, %cst_63 [1] : vector<8x8xf32> to vector<8xf32>
    %147 = vector.shape_cast %146 : vector<8xf32> to vector<8x1xf32>
    %148 = vector.broadcast %147 : vector<8x1xf32> to vector<8x8xf32>
    %149 = arith.subf %142, %148 : vector<8x8xf32>
    %150 = math.exp %149 : vector<8x8xf32>
    %cst_64 = arith.constant dense<0.000000e+00> : vector<8xf32>
    %151 = vector.multi_reduction <add>, %150, %cst_64 [1] : vector<8x8xf32> to vector<8xf32>
    %152 = vector.shape_cast %151 : vector<8xf32> to vector<8x1xf32>
    %153 = vector.broadcast %152 : vector<8x1xf32> to vector<8x8xf32>
    %154 = arith.divf %150, %153 : vector<8x8xf32>
    %155 = vector.extract_strided_slice %137 {offsets = [0, 0], sizes = [8, 8], strides = [1, 1]} : vector<8x32xf32> to vector<8x8xf32>
    %cst_65 = arith.constant dense<0.000000e+00> : vector<8x8xf32>
    %156 = tpu.matmul %154, %155, %cst_65 {dimension_numbers = #tpu.dot_dimension_numbers<[1], [0], [0], [1], [0, 0, 1, 1], [], []>} : vector<8x8xf32>, vector<8x8xf32>, vector<8x8xf32> -> vector<8x8xf32>
    %157 = vector.extract_strided_slice %138 {offsets = [0, 0], sizes = [8, 32], strides = [1, 1]} : vector<32x32xf32> to vector<8x32xf32>
    %cst_66 = arith.constant dense<0.000000e+00> : vector<8x32xf32>
    %158 = tpu.matmul %156, %157, %cst_66 {dimension_numbers = #tpu.dot_dimension_numbers<[1], [0], [0], [1], [0, 0, 1, 1], [], []>} : vector<8x8xf32>, vector<8x32xf32>, vector<8x32xf32> -> vector<8x32xf32>
    %159 = arith.addf %139, %158 : vector<8x32xf32>
    %160 = vector.extract_strided_slice %133 {offsets = [0, 8], sizes = [8, 8], strides = [1, 1]} : vector<8x32xf32> to vector<8x8xf32>
    %161 = vector.extract_strided_slice %136 {offsets = [0, 8], sizes = [8, 8], strides = [1, 1]} : vector<8x32xf32> to vector<8x8xf32>
    %cst_67 = arith.constant dense<0.000000e+00> : vector<8x8xf32>
    %162 = tpu.matmul %160, %161, %cst_67 {dimension_numbers = #tpu.dot_dimension_numbers<[1], [1], [0], [0], [0, 0, 1, 0], [], []>} : vector<8x8xf32>, vector<8x8xf32>, vector<8x8xf32> -> vector<8x8xf32>
    %c0_68 = arith.constant 0 : index
    %c0_69 = arith.constant 0 : index
    %c8 = arith.constant 8 : index
    %163 = vector.load %arg19[%c0_68, %c0_69, %c8] : memref<1x8x32xf32, #tpu.memory_space<vmem>>, vector<1x8x8xf32>
    %164 = vector.shape_cast %163 : vector<1x8x8xf32> to vector<8x8xf32>
    %165 = vector.shape_cast %162 : vector<8x8xf32> to vector<1x8x8xf32>
    tpu.vector_store %arg19[%c0_68, %c0_69, %c8], %165 {strides = array<i32>} : memref<1x8x32xf32, #tpu.memory_space<vmem>>, vector<1x8x8xf32>,
    %cst_70 = arith.constant dense<0xFF800000> : vector<8xf32>
    %166 = vector.multi_reduction <maximumf>, %162, %cst_70 [1] : vector<8x8xf32> to vector<8xf32>
    %167 = vector.shape_cast %166 : vector<8xf32> to vector<8x1xf32>
    %168 = vector.broadcast %167 : vector<8x1xf32> to vector<8x8xf32>
    %169 = arith.subf %162, %168 : vector<8x8xf32>
    %170 = math.exp %169 : vector<8x8xf32>
    %cst_71 = arith.constant dense<0.000000e+00> : vector<8xf32>
    %171 = vector.multi_reduction <add>, %170, %cst_71 [1] : vector<8x8xf32> to vector<8xf32>
    %172 = vector.shape_cast %171 : vector<8xf32> to vector<8x1xf32>
    %173 = vector.broadcast %172 : vector<8x1xf32> to vector<8x8xf32>
    %174 = arith.divf %170, %173 : vector<8x8xf32>
    %175 = vector.extract_strided_slice %137 {offsets = [0, 8], sizes = [8, 8], strides = [1, 1]} : vector<8x32xf32> to vector<8x8xf32>
    %cst_72 = arith.constant dense<0.000000e+00> : vector<8x8xf32>
    %176 = tpu.matmul %174, %175, %cst_72 {dimension_numbers = #tpu.dot_dimension_numbers<[1], [0], [0], [1], [0, 0, 1, 1], [], []>} : vector<8x8xf32>, vector<8x8xf32>, vector<8x8xf32> -> vector<8x8xf32>
    %177 = vector.extract_strided_slice %138 {offsets = [8, 0], sizes = [8, 32], strides = [1, 1]} : vector<32x32xf32> to vector<8x32xf32>
    %cst_73 = arith.constant dense<0.000000e+00> : vector<8x32xf32>
    %178 = tpu.matmul %176, %177, %cst_73 {dimension_numbers = #tpu.dot_dimension_numbers<[1], [0], [0], [1], [0, 0, 1, 1], [], []>} : vector<8x8xf32>, vector<8x32xf32>, vector<8x32xf32> -> vector<8x32xf32>
    %179 = arith.addf %159, %178 : vector<8x32xf32>
    %180 = vector.extract_strided_slice %133 {offsets = [0, 16], sizes = [8, 8], strides = [1, 1]} : vector<8x32xf32> to vector<8x8xf32>
    %181 = vector.extract_strided_slice %136 {offsets = [0, 16], sizes = [8, 8], strides = [1, 1]} : vector<8x32xf32> to vector<8x8xf32>
    %cst_74 = arith.constant dense<0.000000e+00> : vector<8x8xf32>
    %182 = tpu.matmul %180, %181, %cst_74 {dimension_numbers = #tpu.dot_dimension_numbers<[1], [1], [0], [0], [0, 0, 1, 0], [], []>} : vector<8x8xf32>, vector<8x8xf32>, vector<8x8xf32> -> vector<8x8xf32>
    %c0_75 = arith.constant 0 : index
    %c0_76 = arith.constant 0 : index
    %c16 = arith.constant 16 : index
    %183 = vector.load %arg19[%c0_75, %c0_76, %c16] : memref<1x8x32xf32, #tpu.memory_space<vmem>>, vector<1x8x8xf32>
    %184 = vector.shape_cast %183 : vector<1x8x8xf32> to vector<8x8xf32>
    %185 = vector.shape_cast %182 : vector<8x8xf32> to vector<1x8x8xf32>
    tpu.vector_store %arg19[%c0_75, %c0_76, %c16], %185 {strides = array<i32>} : memref<1x8x32xf32, #tpu.memory_space<vmem>>, vector<1x8x8xf32>,
    %cst_77 = arith.constant dense<0xFF800000> : vector<8xf32>
    %186 = vector.multi_reduction <maximumf>, %182, %cst_77 [1] : vector<8x8xf32> to vector<8xf32>
    %187 = vector.shape_cast %186 : vector<8xf32> to vector<8x1xf32>
    %188 = vector.broadcast %187 : vector<8x1xf32> to vector<8x8xf32>
    %189 = arith.subf %182, %188 : vector<8x8xf32>
    %190 = math.exp %189 : vector<8x8xf32>
    %cst_78 = arith.constant dense<0.000000e+00> : vector<8xf32>
    %191 = vector.multi_reduction <add>, %190, %cst_78 [1] : vector<8x8xf32> to vector<8xf32>
    %192 = vector.shape_cast %191 : vector<8xf32> to vector<8x1xf32>
    %193 = vector.broadcast %192 : vector<8x1xf32> to vector<8x8xf32>
    %194 = arith.divf %190, %193 : vector<8x8xf32>
    %195 = vector.extract_strided_slice %137 {offsets = [0, 16], sizes = [8, 8], strides = [1, 1]} : vector<8x32xf32> to vector<8x8xf32>
    %cst_79 = arith.constant dense<0.000000e+00> : vector<8x8xf32>
    %196 = tpu.matmul %194, %195, %cst_79 {dimension_numbers = #tpu.dot_dimension_numbers<[1], [0], [0], [1], [0, 0, 1, 1], [], []>} : vector<8x8xf32>, vector<8x8xf32>, vector<8x8xf32> -> vector<8x8xf32>
    %197 = vector.extract_strided_slice %138 {offsets = [16, 0], sizes = [8, 32], strides = [1, 1]} : vector<32x32xf32> to vector<8x32xf32>
    %cst_80 = arith.constant dense<0.000000e+00> : vector<8x32xf32>
    %198 = tpu.matmul %196, %197, %cst_80 {dimension_numbers = #tpu.dot_dimension_numbers<[1], [0], [0], [1], [0, 0, 1, 1], [], []>} : vector<8x8xf32>, vector<8x32xf32>, vector<8x32xf32> -> vector<8x32xf32>
    %199 = arith.addf %179, %198 : vector<8x32xf32>
    %200 = vector.extract_strided_slice %133 {offsets = [0, 24], sizes = [8, 8], strides = [1, 1]} : vector<8x32xf32> to vector<8x8xf32>
    %201 = vector.extract_strided_slice %136 {offsets = [0, 24], sizes = [8, 8], strides = [1, 1]} : vector<8x32xf32> to vector<8x8xf32>
    %cst_81 = arith.constant dense<0.000000e+00> : vector<8x8xf32>
    %202 = tpu.matmul %200, %201, %cst_81 {dimension_numbers = #tpu.dot_dimension_numbers<[1], [1], [0], [0], [0, 0, 1, 0], [], []>} : vector<8x8xf32>, vector<8x8xf32>, vector<8x8xf32> -> vector<8x8xf32>
    %c0_82 = arith.constant 0 : index
    %c0_83 = arith.constant 0 : index
    %c24 = arith.constant 24 : index
    %203 = vector.load %arg19[%c0_82, %c0_83, %c24] : memref<1x8x32xf32, #tpu.memory_space<vmem>>, vector<1x8x8xf32>
    %204 = vector.shape_cast %203 : vector<1x8x8xf32> to vector<8x8xf32>
    %205 = vector.shape_cast %202 : vector<8x8xf32> to vector<1x8x8xf32>
    tpu.vector_store %arg19[%c0_82, %c0_83, %c24], %205 {strides = array<i32>} : memref<1x8x32xf32, #tpu.memory_space<vmem>>, vector<1x8x8xf32>,
    %cst_84 = arith.constant dense<0xFF800000> : vector<8xf32>
    %206 = vector.multi_reduction <maximumf>, %202, %cst_84 [1] : vector<8x8xf32> to vector<8xf32>
    %207 = vector.shape_cast %206 : vector<8xf32> to vector<8x1xf32>
    %208 = vector.broadcast %207 : vector<8x1xf32> to vector<8x8xf32>
    %209 = arith.subf %202, %208 : vector<8x8xf32>
    %210 = math.exp %209 : vector<8x8xf32>
    %cst_85 = arith.constant dense<0.000000e+00> : vector<8xf32>
    %211 = vector.multi_reduction <add>, %210, %cst_85 [1] : vector<8x8xf32> to vector<8xf32>
    %212 = vector.shape_cast %211 : vector<8xf32> to vector<8x1xf32>
    %213 = vector.broadcast %212 : vector<8x1xf32> to vector<8x8xf32>
    %214 = arith.divf %210, %213 : vector<8x8xf32>
    %215 = vector.extract_strided_slice %137 {offsets = [0, 24], sizes = [8, 8], strides = [1, 1]} : vector<8x32xf32> to vector<8x8xf32>
    %cst_86 = arith.constant dense<0.000000e+00> : vector<8x8xf32>
    %216 = tpu.matmul %214, %215, %cst_86 {dimension_numbers = #tpu.dot_dimension_numbers<[1], [0], [0], [1], [0, 0, 1, 1], [], []>} : vector<8x8xf32>, vector<8x8xf32>, vector<8x8xf32> -> vector<8x8xf32>
    %217 = vector.extract_strided_slice %138 {offsets = [24, 0], sizes = [8, 32], strides = [1, 1]} : vector<32x32xf32> to vector<8x32xf32>
    %cst_87 = arith.constant dense<0.000000e+00> : vector<8x32xf32>
    %218 = tpu.matmul %216, %217, %cst_87 {dimension_numbers = #tpu.dot_dimension_numbers<[1], [0], [0], [1], [0, 0, 1, 1], [], []>} : vector<8x8xf32>, vector<8x32xf32>, vector<8x32xf32> -> vector<8x32xf32>
    %219 = arith.addf %199, %218 : vector<8x32xf32>
    %220 = arith.addf %105, %219 : vector<8x32xf32>
    %cst_88 = arith.constant dense<0.000000e+00> : vector<8xf32>
    %221 = vector.multi_reduction <add>, %220, %cst_88 [1] : vector<8x32xf32> to vector<8xf32>
    %222 = vector.shape_cast %221 : vector<8xf32> to vector<8x1xf32>
    %cst_89 = arith.constant 3.200000e+01 : f32
    %223 = vector.broadcast %cst_89 : f32 to vector<8x1xf32>
    %224 = arith.divf %222, %223 : vector<8x1xf32>
    %225 = vector.broadcast %224 : vector<8x1xf32> to vector<8x32xf32>
    %226 = arith.subf %220, %225 : vector<8x32xf32>
    %227 = arith.mulf %226, %226 : vector<8x32xf32>
    %cst_90 = arith.constant dense<0.000000e+00> : vector<8xf32>
    %228 = vector.multi_reduction <add>, %227, %cst_90 [1] : vector<8x32xf32> to vector<8xf32>
    %229 = vector.shape_cast %228 : vector<8xf32> to vector<8x1xf32>
    %cst_91 = arith.constant 3.200000e+01 : f32
    %230 = vector.broadcast %cst_91 : f32 to vector<8x1xf32>
    %231 = arith.divf %229, %230 : vector<8x1xf32>
    %232 = vector.broadcast %224 : vector<8x1xf32> to vector<8x32xf32>
    %233 = arith.subf %220, %232 : vector<8x32xf32>
    %cst_92 = arith.constant 9.99999974E-6 : f32
    %234 = vector.broadcast %cst_92 : f32 to vector<8x1xf32>
    %235 = arith.addf %231, %234 : vector<8x1xf32>
    %236 = math.rsqrt %235 : vector<8x1xf32>
    %237 = vector.broadcast %236 : vector<8x1xf32> to vector<8x32xf32>
    %238 = arith.mulf %233, %237 : vector<8x32xf32>
    %c0_93 = arith.constant 0 : index
    %c0_94 = arith.constant 0 : index
    %239 = vector.load %arg7[%c0_93, %c0_94] : memref<1x32xf32, #tpu.memory_space<vmem>>, vector<1x32xf32>
    %240 = vector.broadcast %239 : vector<1x32xf32> to vector<8x32xf32>
    %241 = arith.mulf %238, %240 : vector<8x32xf32>
    %c0_95 = arith.constant 0 : index
    %c0_96 = arith.constant 0 : index
    %242 = vector.load %arg8[%c0_95, %c0_96] : memref<1x32xf32, #tpu.memory_space<vmem>>, vector<1x32xf32>
    %243 = vector.broadcast %242 : vector<1x32xf32> to vector<8x32xf32>
    %244 = arith.addf %241, %243 : vector<8x32xf32>
    %cst_97 = arith.constant 0.000000e+00 : f32
    %245 = vector.broadcast %cst_97 : f32 to vector<8x32xf32>
    %246 = tpu.concatenate %245, %244 in 0 : vector<8x32xf32>, vector<8x32xf32> -> vector<16x32xf32>
    %cst_98 = arith.constant 0.000000e+00 : f32
    %247 = vector.broadcast %cst_98 : f32 to vector<8x128xf32>
    %248 = vector.extract_strided_slice %246 {offsets = [0, 0], sizes = [8, 32], strides = [1, 1]} : vector<16x32xf32> to vector<8x32xf32>
    %c0_99 = arith.constant 0 : index
    %c0_100 = arith.constant 0 : index
    %c0_101 = arith.constant 0 : index
    %249 = vector.load %arg14[%c0_99, %c0_100, %c0_101] : memref<9x32x128xf32, #tpu.memory_space<vmem>>, vector<1x32x128xf32>
    %250 = vector.shape_cast %249 : vector<1x32x128xf32> to vector<32x128xf32>
    %cst_102 = arith.constant dense<0.000000e+00> : vector<8x128xf32>
    %251 = tpu.matmul %248, %250, %cst_102 {dimension_numbers = #tpu.dot_dimension_numbers<[1], [0], [0], [1], [0, 0, 1, 1], [], []>} : vector<8x32xf32>, vector<32x128xf32>, vector<8x128xf32> -> vector<8x128xf32>
    %252 = arith.addf %247, %251 : vector<8x128xf32>
    %253 = vector.extract_strided_slice %246 {offsets = [1, 0], sizes = [8, 32], strides = [1, 1]} : vector<16x32xf32> to vector<8x32xf32>
    %c1 = arith.constant 1 : index
    %c0_103 = arith.constant 0 : index
    %c0_104 = arith.constant 0 : index
    %254 = vector.load %arg14[%c1, %c0_103, %c0_104] : memref<9x32x128xf32, #tpu.memory_space<vmem>>, vector<1x32x128xf32>
    %255 = vector.shape_cast %254 : vector<1x32x128xf32> to vector<32x128xf32>
    %cst_105 = arith.constant dense<0.000000e+00> : vector<8x128xf32>
    %256 = tpu.matmul %253, %255, %cst_105 {dimension_numbers = #tpu.dot_dimension_numbers<[1], [0], [0], [1], [0, 0, 1, 1], [], []>} : vector<8x32xf32>, vector<32x128xf32>, vector<8x128xf32> -> vector<8x128xf32>
    %257 = arith.addf %252, %256 : vector<8x128xf32>
    %258 = vector.extract_strided_slice %246 {offsets = [2, 0], sizes = [8, 32], strides = [1, 1]} : vector<16x32xf32> to vector<8x32xf32>
    %c2 = arith.constant 2 : index
    %c0_106 = arith.constant 0 : index
    %c0_107 = arith.constant 0 : index
    %259 = vector.load %arg14[%c2, %c0_106, %c0_107] : memref<9x32x128xf32, #tpu.memory_space<vmem>>, vector<1x32x128xf32>
    %260 = vector.shape_cast %259 : vector<1x32x128xf32> to vector<32x128xf32>
    %cst_108 = arith.constant dense<0.000000e+00> : vector<8x128xf32>
    %261 = tpu.matmul %258, %260, %cst_108 {dimension_numbers = #tpu.dot_dimension_numbers<[1], [0], [0], [1], [0, 0, 1, 1], [], []>} : vector<8x32xf32>, vector<32x128xf32>, vector<8x128xf32> -> vector<8x128xf32>
    %262 = arith.addf %257, %261 : vector<8x128xf32>
    %263 = vector.extract_strided_slice %246 {offsets = [3, 0], sizes = [8, 32], strides = [1, 1]} : vector<16x32xf32> to vector<8x32xf32>
    %c3 = arith.constant 3 : index
    %c0_109 = arith.constant 0 : index
    %c0_110 = arith.constant 0 : index
    %264 = vector.load %arg14[%c3, %c0_109, %c0_110] : memref<9x32x128xf32, #tpu.memory_space<vmem>>, vector<1x32x128xf32>
    %265 = vector.shape_cast %264 : vector<1x32x128xf32> to vector<32x128xf32>
    %cst_111 = arith.constant dense<0.000000e+00> : vector<8x128xf32>
    %266 = tpu.matmul %263, %265, %cst_111 {dimension_numbers = #tpu.dot_dimension_numbers<[1], [0], [0], [1], [0, 0, 1, 1], [], []>} : vector<8x32xf32>, vector<32x128xf32>, vector<8x128xf32> -> vector<8x128xf32>
    %267 = arith.addf %262, %266 : vector<8x128xf32>
    %268 = vector.extract_strided_slice %246 {offsets = [4, 0], sizes = [8, 32], strides = [1, 1]} : vector<16x32xf32> to vector<8x32xf32>
    %c4 = arith.constant 4 : index
    %c0_112 = arith.constant 0 : index
    %c0_113 = arith.constant 0 : index
    %269 = vector.load %arg14[%c4, %c0_112, %c0_113] : memref<9x32x128xf32, #tpu.memory_space<vmem>>, vector<1x32x128xf32>
    %270 = vector.shape_cast %269 : vector<1x32x128xf32> to vector<32x128xf32>
    %cst_114 = arith.constant dense<0.000000e+00> : vector<8x128xf32>
    %271 = tpu.matmul %268, %270, %cst_114 {dimension_numbers = #tpu.dot_dimension_numbers<[1], [0], [0], [1], [0, 0, 1, 1], [], []>} : vector<8x32xf32>, vector<32x128xf32>, vector<8x128xf32> -> vector<8x128xf32>
    %272 = arith.addf %267, %271 : vector<8x128xf32>
    %273 = vector.extract_strided_slice %246 {offsets = [5, 0], sizes = [8, 32], strides = [1, 1]} : vector<16x32xf32> to vector<8x32xf32>
    %c5 = arith.constant 5 : index
    %c0_115 = arith.constant 0 : index
    %c0_116 = arith.constant 0 : index
    %274 = vector.load %arg14[%c5, %c0_115, %c0_116] : memref<9x32x128xf32, #tpu.memory_space<vmem>>, vector<1x32x128xf32>
    %275 = vector.shape_cast %274 : vector<1x32x128xf32> to vector<32x128xf32>
    %cst_117 = arith.constant dense<0.000000e+00> : vector<8x128xf32>
    %276 = tpu.matmul %273, %275, %cst_117 {dimension_numbers = #tpu.dot_dimension_numbers<[1], [0], [0], [1], [0, 0, 1, 1], [], []>} : vector<8x32xf32>, vector<32x128xf32>, vector<8x128xf32> -> vector<8x128xf32>
    %277 = arith.addf %272, %276 : vector<8x128xf32>
    %278 = vector.extract_strided_slice %246 {offsets = [6, 0], sizes = [8, 32], strides = [1, 1]} : vector<16x32xf32> to vector<8x32xf32>
    %c6 = arith.constant 6 : index
    %c0_118 = arith.constant 0 : index
    %c0_119 = arith.constant 0 : index
    %279 = vector.load %arg14[%c6, %c0_118, %c0_119] : memref<9x32x128xf32, #tpu.memory_space<vmem>>, vector<1x32x128xf32>
    %280 = vector.shape_cast %279 : vector<1x32x128xf32> to vector<32x128xf32>
    %cst_120 = arith.constant dense<0.000000e+00> : vector<8x128xf32>
    %281 = tpu.matmul %278, %280, %cst_120 {dimension_numbers = #tpu.dot_dimension_numbers<[1], [0], [0], [1], [0, 0, 1, 1], [], []>} : vector<8x32xf32>, vector<32x128xf32>, vector<8x128xf32> -> vector<8x128xf32>
    %282 = arith.addf %277, %281 : vector<8x128xf32>
    %283 = vector.extract_strided_slice %246 {offsets = [7, 0], sizes = [8, 32], strides = [1, 1]} : vector<16x32xf32> to vector<8x32xf32>
    %c7 = arith.constant 7 : index
    %c0_121 = arith.constant 0 : index
    %c0_122 = arith.constant 0 : index
    %284 = vector.load %arg14[%c7, %c0_121, %c0_122] : memref<9x32x128xf32, #tpu.memory_space<vmem>>, vector<1x32x128xf32>
    %285 = vector.shape_cast %284 : vector<1x32x128xf32> to vector<32x128xf32>
    %cst_123 = arith.constant dense<0.000000e+00> : vector<8x128xf32>
    %286 = tpu.matmul %283, %285, %cst_123 {dimension_numbers = #tpu.dot_dimension_numbers<[1], [0], [0], [1], [0, 0, 1, 1], [], []>} : vector<8x32xf32>, vector<32x128xf32>, vector<8x128xf32> -> vector<8x128xf32>
    %287 = arith.addf %282, %286 : vector<8x128xf32>
    %288 = vector.extract_strided_slice %246 {offsets = [8, 0], sizes = [8, 32], strides = [1, 1]} : vector<16x32xf32> to vector<8x32xf32>
    %c8_124 = arith.constant 8 : index
    %c0_125 = arith.constant 0 : index
    %c0_126 = arith.constant 0 : index
    %289 = vector.load %arg14[%c8_124, %c0_125, %c0_126] : memref<9x32x128xf32, #tpu.memory_space<vmem>>, vector<1x32x128xf32>
    %290 = vector.shape_cast %289 : vector<1x32x128xf32> to vector<32x128xf32>
    %cst_127 = arith.constant dense<0.000000e+00> : vector<8x128xf32>
    %291 = tpu.matmul %288, %290, %cst_127 {dimension_numbers = #tpu.dot_dimension_numbers<[1], [0], [0], [1], [0, 0, 1, 1], [], []>} : vector<8x32xf32>, vector<32x128xf32>, vector<8x128xf32> -> vector<8x128xf32>
    %292 = arith.addf %287, %291 : vector<8x128xf32>
    %c0_128 = arith.constant 0 : index
    %c0_129 = arith.constant 0 : index
    %293 = vector.load %arg15[%c0_128, %c0_129] : memref<1x128xf32, #tpu.memory_space<vmem>>, vector<1x128xf32>
    %294 = vector.broadcast %293 : vector<1x128xf32> to vector<8x128xf32>
    %295 = arith.addf %292, %294 : vector<8x128xf32>
    %cst_130 = arith.constant 0.333333343 : f32
    %296 = vector.broadcast %cst_130 : f32 to vector<8x128xf32>
    %297 = arith.mulf %295, %296 : vector<8x128xf32>
    %cst_131 = arith.constant 5.000000e-01 : f32
    %298 = vector.broadcast %cst_131 : f32 to vector<8x128xf32>
    %299 = arith.mulf %298, %297 : vector<8x128xf32>
    %cst_132 = arith.constant 0.707106769 : f32
    %300 = vector.broadcast %cst_132 : f32 to vector<8x128xf32>
    %301 = arith.mulf %297, %300 : vector<8x128xf32>
    %302 = math.erf %301 : vector<8x128xf32>
    %cst_133 = arith.constant 1.000000e+00 : f32
    %303 = vector.broadcast %cst_133 : f32 to vector<8x128xf32>
    %304 = arith.addf %303, %302 : vector<8x128xf32>
    %305 = arith.mulf %299, %304 : vector<8x128xf32>
    %c0_134 = arith.constant 0 : index
    %c0_135 = arith.constant 0 : index
    %306 = vector.load %arg16[%c0_134, %c0_135] : memref<128x32xf32, #tpu.memory_space<vmem>>, vector<128x32xf32>
    %cst_136 = arith.constant dense<0.000000e+00> : vector<8x32xf32>
    %307 = tpu.matmul %305, %306, %cst_136 {dimension_numbers = #tpu.dot_dimension_numbers<[1], [0], [0], [1], [0, 0, 1, 1], [], []>} : vector<8x128xf32>, vector<128x32xf32>, vector<8x32xf32> -> vector<8x32xf32>
    %c0_137 = arith.constant 0 : index
    %c0_138 = arith.constant 0 : index
    %308 = vector.load %arg17[%c0_137, %c0_138] : memref<1x32xf32, #tpu.memory_space<vmem>>, vector<1x32xf32>
    %309 = vector.broadcast %308 : vector<1x32xf32> to vector<8x32xf32>
    %310 = arith.addf %307, %309 : vector<8x32xf32>
    %311 = arith.addf %220, %310 : vector<8x32xf32>
    %c0_139 = arith.constant 0 : index
    %c0_140 = arith.constant 0 : index
    %c0_141 = arith.constant 0 : index
    %312 = vector.load %arg18[%c0_139, %c0_140, %c0_141] : memref<1x8x32xf32, #tpu.memory_space<vmem>>, vector<1x8x32xf32>
    %313 = vector.shape_cast %312 : vector<1x8x32xf32> to vector<8x32xf32>
    %314 = vector.shape_cast %311 : vector<8x32xf32> to vector<1x8x32xf32>
    tpu.vector_store %arg18[%c0_139, %c0_140, %c0_141], %314 {strides = array<i32>} : memref<1x8x32xf32, #tpu.memory_space<vmem>>, vector<1x8x32xf32>,
    return
  }
  func.func @transform_0(%arg0: i32) -> (i32, i32, i32) {
    %c0_i32 = arith.constant 0 : i32
    %c0_i32_0 = arith.constant 0 : i32
    %c0_i32_1 = arith.constant 0 : i32
    return %arg0, %c0_i32, %c0_i32_0 : i32, i32, i32
  }
  func.func @transform_1(%arg0: i32) -> (i32, i32, i32) {
    %c0_i32 = arith.constant 0 : i32
    %c0_i32_0 = arith.constant 0 : i32
    %c0_i32_1 = arith.constant 0 : i32
    return %arg0, %c0_i32, %c0_i32_0 : i32, i32, i32
  }
  func.func @transform_2(%arg0: i32) -> (i32, i32) {
    %c0_i32 = arith.constant 0 : i32
    %c0_i32_0 = arith.constant 0 : i32
    %c0_i32_1 = arith.constant 0 : i32
    return %c0_i32, %c0_i32_0 : i32, i32
  }
  func.func @transform_3(%arg0: i32) -> (i32, i32) {
    %c0_i32 = arith.constant 0 : i32
    %c0_i32_0 = arith.constant 0 : i32
    %c0_i32_1 = arith.constant 0 : i32
    return %c0_i32, %c0_i32_0 : i32, i32
  }
  func.func @transform_4(%arg0: i32) -> (i32, i32) {
    %c0_i32 = arith.constant 0 : i32
    %c0_i32_0 = arith.constant 0 : i32
    %c0_i32_1 = arith.constant 0 : i32
    return %c0_i32, %c0_i32_0 : i32, i32
  }
  func.func @transform_5(%arg0: i32) -> (i32, i32) {
    %c0_i32 = arith.constant 0 : i32
    %c0_i32_0 = arith.constant 0 : i32
    %c0_i32_1 = arith.constant 0 : i32
    return %c0_i32, %c0_i32_0 : i32, i32
  }
  func.func @transform_6(%arg0: i32) -> (i32, i32) {
    %c0_i32 = arith.constant 0 : i32
    %c0_i32_0 = arith.constant 0 : i32
    %c0_i32_1 = arith.constant 0 : i32
    return %c0_i32, %c0_i32_0 : i32, i32
  }
  func.func @transform_7(%arg0: i32) -> (i32, i32) {
    %c0_i32 = arith.constant 0 : i32
    %c0_i32_0 = arith.constant 0 : i32
    %c0_i32_1 = arith.constant 0 : i32
    return %c0_i32, %c0_i32_0 : i32, i32
  }
  func.func @transform_8(%arg0: i32) -> (i32, i32) {
    %c0_i32 = arith.constant 0 : i32
    %c0_i32_0 = arith.constant 0 : i32
    %c0_i32_1 = arith.constant 0 : i32
    return %c0_i32, %c0_i32_0 : i32, i32
  }
  func.func @transform_9(%arg0: i32) -> (i32, i32) {
    %c0_i32 = arith.constant 0 : i32
    %c0_i32_0 = arith.constant 0 : i32
    %c0_i32_1 = arith.constant 0 : i32
    return %c0_i32, %c0_i32_0 : i32, i32
  }
  func.func @transform_10(%arg0: i32) -> (i32, i32) {
    %c0_i32 = arith.constant 0 : i32
    %c0_i32_0 = arith.constant 0 : i32
    %c0_i32_1 = arith.constant 0 : i32
    return %c0_i32, %c0_i32_0 : i32, i32
  }
  func.func @transform_11(%arg0: i32) -> (i32, i32) {
    %c0_i32 = arith.constant 0 : i32
    %c0_i32_0 = arith.constant 0 : i32
    %c0_i32_1 = arith.constant 0 : i32
    return %c0_i32, %c0_i32_0 : i32, i32
  }
  func.func @transform_12(%arg0: i32) -> (i32, i32) {
    %c0_i32 = arith.constant 0 : i32
    %c0_i32_0 = arith.constant 0 : i32
    %c0_i32_1 = arith.constant 0 : i32
    return %c0_i32, %c0_i32_0 : i32, i32
  }
  func.func @transform_13(%arg0: i32) -> (i32, i32, i32) {
    %c0_i32 = arith.constant 0 : i32
    %c0_i32_0 = arith.constant 0 : i32
    %c0_i32_1 = arith.constant 0 : i32
    %c0_i32_2 = arith.constant 0 : i32
    return %c0_i32, %c0_i32_0, %c0_i32_1 : i32, i32, i32
  }
  func.func @transform_14(%arg0: i32) -> (i32, i32) {
    %c0_i32 = arith.constant 0 : i32
    %c0_i32_0 = arith.constant 0 : i32
    %c0_i32_1 = arith.constant 0 : i32
    return %c0_i32, %c0_i32_0 : i32, i32
  }
  func.func @transform_15(%arg0: i32) -> (i32, i32) {
    %c0_i32 = arith.constant 0 : i32
    %c0_i32_0 = arith.constant 0 : i32
    %c0_i32_1 = arith.constant 0 : i32
    return %c0_i32, %c0_i32_0 : i32, i32
  }
  func.func @transform_16(%arg0: i32) -> (i32, i32) {
    %c0_i32 = arith.constant 0 : i32
    %c0_i32_0 = arith.constant 0 : i32
    %c0_i32_1 = arith.constant 0 : i32
    return %c0_i32, %c0_i32_0 : i32, i32
  }
  func.func @transform_17(%arg0: i32) -> (i32, i32, i32) {
    %c0_i32 = arith.constant 0 : i32
    %c0_i32_0 = arith.constant 0 : i32
    %c0_i32_1 = arith.constant 0 : i32
    return %arg0, %c0_i32, %c0_i32_0 : i32, i32, i32
  }
  func.func @transform_18(%arg0: i32) -> (i32, i32, i32) {
    %c0_i32 = arith.constant 0 : i32
    %c0_i32_0 = arith.constant 0 : i32
    %c0_i32_1 = arith.constant 0 : i32
    return %arg0, %c0_i32, %c0_i32_0 : i32, i32, i32
  }
}

</mosaic_0001>

<llo_original>
// kernel: tpu_custom_call.1
$region0: #{tpu_custom_call.1}
  #allocation0 [shape = 'u32[]', space=smem, size = 0x4, offset = 0x4, fixed_abs, tag = 'smem constant byte address 0x4 - core index']
  #allocation1 [shape = 'u32[144,128]{1,0:T(1,128)}', space=vmem, size = 0x12000, scoped, tag = 'internal scratch']
  %s0 = inlined_call_operand.hbm [shape: f32[2,8,32], index: 0, kind: input, shape index: {}]
  %s1 = inlined_call_operand.hbm [shape: f32[2,8,32], index: 1, kind: input, shape index: {}]
  %s2 = inlined_call_operand.vmem [shape: f32[1,32], index: 2, kind: input, shape index: {}]
  %s3 = inlined_call_operand.vmem [shape: f32[1,32], index: 3, kind: input, shape index: {}]
  %s4 = inlined_call_operand.vmem [shape: f32[1,32], index: 4, kind: input, shape index: {}]
  %s5 = inlined_call_operand.vmem [shape: f32[1,32], index: 5, kind: input, shape index: {}]
  %s6 = inlined_call_operand.vmem [shape: f32[1,32], index: 6, kind: input, shape index: {}]
  %s7 = inlined_call_operand.vmem [shape: f32[1,32], index: 7, kind: input, shape index: {}]
  %s8 = inlined_call_operand.vmem [shape: f32[32,96], index: 8, kind: input, shape index: {}]
  %s9 = inlined_call_operand.vmem [shape: f32[32,32], index: 9, kind: input, shape index: {}]
  %s10 = inlined_call_operand.vmem [shape: f32[32,32], index: 10, kind: input, shape index: {}]
  %s11 = inlined_call_operand.vmem [shape: f32[32,64], index: 11, kind: input, shape index: {}]
  %s12 = inlined_call_operand.vmem [shape: f32[32,32], index: 12, kind: input, shape index: {}]
  %s13 = inlined_call_operand.hbm [shape: f32[9,32,128], index: 13, kind: input, shape index: {}]
  %s14 = inlined_call_operand.vmem [shape: f32[1,128], index: 14, kind: input, shape index: {}]
  %s15 = inlined_call_operand.vmem [shape: f32[128,32], index: 15, kind: input, shape index: {}]
  %s16 = inlined_call_operand.vmem [shape: f32[1,32], index: 16, kind: input, shape index: {}]
  %s17 = inlined_call_operand.hbm [shape: f32[2,8,32], index: 17, kind: output, shape index: {0}]
  %s18 = inlined_call_operand.hbm [shape: f32[2,8,32], index: 18, kind: output, shape index: {1}]
  %19 = xla_tuple %s17, %s18
  %s20 = sld [smem:[#allocation0]]
  $region121: #{tpu_custom_call.1} parent=0
    _
  %s22 = ssub.s32 1, %s20
  %s23 = scalar_select 0, %s22, %s20
  $region1: #{tpu_custom_call.1} parent=0
    #allocation2 [shape = 'u8[8192]{0}', space=vmem, size = 0x2000, scoped, tag = 'input window, operand 0']
    #allocation3 [shape = 's32[2]{0}', space=sflag, size = 0x8, scoped, tag = 'scoped memory for tpu_custom_call.1']
    #allocation4 [shape = 's32[2]{0}', space=sflag, size = 0x8, scoped, tag = 'scoped memory for tpu_custom_call.1']
    #allocation5 [shape = 'u8[8192]{0}', space=vmem, size = 0x2000, scoped, tag = 'input window, operand 1']
    #allocation6 [shape = 's32[2]{0}', space=sflag, size = 0x8, scoped, tag = 'scoped memory for tpu_custom_call.1']
    #allocation7 [shape = 'u8[147456]{0}', space=vmem, size = 0x24000, scoped, tag = 'input window, operand 13, single buffered']
    #allocation8 [shape = 'u8[8192]{0}', space=vmem, size = 0x2000, scoped, tag = 'output window, operand 0']
    #allocation9 [shape = 'u8[8192]{0}', space=vmem, size = 0x2000, scoped, tag = 'output window, operand 1']
    #allocation10 [shape = 's32[2]{0}', space=sflag, size = 0x8, scoped, tag = 'scoped memory for tpu_custom_call.1']
    %24 = vsyncpa [#allocation3], 0
    %s25 = scalar_lea.sflag [#allocation3], 1
    %26 = vsyncpa %s25, 0
    %27 = vsyncpa [#allocation6], 0
    %s28 = scalar_lea.sflag [#allocation6], 1
    %29 = vsyncpa %s28, 0
    %30 = vsyncpa [#allocation4], 0
    %s31 = scalar_lea.sflag [#allocation4], 1
    %32 = vsyncpa %s31, 0
    %33 = vsyncpa [#allocation10], 0
    %s34 = scalar_lea.sflag [#allocation10], 1
    %35 = vsyncpa %s34, 0
    loop: start=0, step=1, limit=4
    $region2: #{tpu_custom_call.1} parent=1 // loop_pre_header
      _
    $region3: #{tpu_custom_call.1} parent=1 // loop_header
      %s37 = sphi 0, %s41
      %p38 = scmp.ge.s32.totalorder %s37, 4
      %s47 = sphi 0, %s49
      %s50 = sphi 0, %s47
      %s51 = sphi 0, %s50
      %s67 = sphi 0, %s51
      %s73 = sphi 0, %s75
      %s76 = sphi 0, %s73
      %s77 = sphi 0, %s76
      %s93 = sphi 0, %s77
      %s97 = sphi 0, %s97
      %s99 = sphi 0, %s97
      %s100 = sphi 0, %s99
      %s114 = sphi 0, %s100
      %s118 = sphi 0, %s118
      %s120 = sphi 0, %s118
      %s121 = sphi 0, %s120
      %s135 = sphi 0, %s121
      %s139 = sphi 0, %s139
      %s141 = sphi 0, %s139
      %s142 = sphi 0, %s141
      %s156 = sphi 0, %s142
      %s160 = sphi 0, %s160
      %s162 = sphi 0, %s160
      %s163 = sphi 0, %s162
      %s177 = sphi 0, %s163
      %s181 = sphi 0, %s181
      %s183 = sphi 0, %s181
      %s184 = sphi 0, %s183
      %s198 = sphi 0, %s184
      %s202 = sphi 0, %s202
      %s204 = sphi 0, %s202
      %s205 = sphi 0, %s204
      %s219 = sphi 0, %s205
      %s223 = sphi 0, %s223
      %s225 = sphi 0, %s223
      %s226 = sphi 0, %s225
      %s240 = sphi 0, %s226
      %s244 = sphi 0, %s244
      %s246 = sphi 0, %s244
      %s247 = sphi 0, %s246
      %s261 = sphi 0, %s247
      %s265 = sphi 0, %s265
      %s267 = sphi 0, %s265
      %s268 = sphi 0, %s267
      %s282 = sphi 0, %s268
      %s286 = sphi 0, %s286
      %s288 = sphi 0, %s286
      %s289 = sphi 0, %s288
      %s303 = sphi 0, %s289
      %s307 = sphi 0, %s307
      %s309 = sphi 0, %s307
      %s310 = sphi 0, %s309
      %s324 = sphi 0, %s310
      %s328 = sphi 0, %s328
      %s330 = sphi 0, %s328
      %s331 = sphi 0, %s330
      %s345 = sphi 0, %s331
      %s349 = sphi 0, %s349
      %s351 = sphi 0, %s349
      %s352 = sphi 0, %s351
      %s366 = sphi 0, %s352
      %s370 = sphi 0, %s370
      %s372 = sphi 0, %s370
      %s373 = sphi 0, %s372
      %s387 = sphi 0, %s373
      %s391 = sphi 0, %s391
      %s393 = sphi 0, %s391
      %s394 = sphi 0, %s393
      %s408 = sphi 0, %s394
      %s414 = sphi 0, %s416
      %s417 = sphi 0, %s414
      %s418 = sphi 0, %s417
      %s434 = sphi 0, %s418
      %s440 = sphi 0, %s442
      %s443 = sphi 0, %s440
      %s444 = sphi 0, %s443
      %s460 = sphi 0, %s444
    $region4: #{tpu_custom_call.1} parent=1 // loop_header_branch
      %40 = sbr.rel (%p38) target = $region8
    $region5: #{tpu_custom_call.1} parent=1 // loop_body
      %s42 = ssub.s32 %s37, 1
      %s43 = ssub.s32 %s37, 2
      %s44 = sadd.s32 %s37, 1
      %s45 = ssub.s32 %s37, %s44
      %p46 = scmp.eq.s32.totalorder %s45, 0
      %s48 = sadd.s32 %s47, 1
      %s49 = scalar_select %p46, %s47, %s48
      %p52 = pneg %p46
      %p53 = scmp.eq.s32.totalorder %s37, 1
      %p54 = por %p52, %p53
      %p55 = scmp.ne.s32.totalorder %s47, %s50
      %p56 = scmp.eq.s32.totalorder %s37, 0
      %p57 = por %p55, %p56
      %p58 = scmp.ne.s32.totalorder %s47, %s50
      %p59 = scmp.eq.s32.totalorder %s42, 1
      %p60 = por %p58, %p59
      %p61 = scmp.ne.s32.totalorder %s50, %s51
      %p62 = scmp.eq.s32.totalorder %s42, 0
      %p63 = por %p61, %p62
      %p64 = scmp.ne.s32.totalorder %s50, %s51
      %p65 = scmp.eq.s32.totalorder %s43, 1
      %p66 = por %p64, %p65
      %p68 = scmp.ne.s32.totalorder %s51, %s67
      %p69 = scmp.eq.s32.totalorder %s43, 0
      %p70 = por %p68, %p69
      %s71 = ssub.s32 %s37, %s44
      %p72 = scmp.eq.s32.totalorder %s71, 0
      %s74 = sadd.s32 %s73, 1
      %s75 = scalar_select %p72, %s73, %s74
      %p78 = pneg %p72
      %p79 = scmp.eq.s32.totalorder %s37, 1
      %p80 = por %p78, %p79
      %p81 = scmp.ne.s32.totalorder %s73, %s76
      %p82 = scmp.eq.s32.totalorder %s37, 0
      %p83 = por %p81, %p82
      %p84 = scmp.ne.s32.totalorder %s73, %s76
      %p85 = scmp.eq.s32.totalorder %s42, 1
      %p86 = por %p84, %p85
      %p87 = scmp.ne.s32.totalorder %s76, %s77
      %p88 = scmp.eq.s32.totalorder %s42, 0
      %p89 = por %p87, %p88
      %p90 = scmp.ne.s32.totalorder %s76, %s77
      %p91 = scmp.eq.s32.totalorder %s43, 1
      %p92 = por %p90, %p91
      %p94 = scmp.ne.s32.totalorder %s77, %s93
      %p95 = scmp.eq.s32.totalorder %s43, 0
      %p96 = por %p94, %p95
      %s98 = sadd.s32 %s97, 1
      %p101 = scmp.eq.s32.totalorder %s37, 1
      %p102 = scmp.ne.s32.totalorder %s97, %s99
      %p103 = scmp.eq.s32.totalorder %s37, 0
      %p104 = por %p102, %p103
      %p105 = scmp.ne.s32.totalorder %s97, %s99
      %p106 = scmp.eq.s32.totalorder %s42, 1
      %p107 = por %p105, %p106
      %p108 = scmp.ne.s32.totalorder %s99, %s100
      %p109 = scmp.eq.s32.totalorder %s42, 0
      %p110 = por %p108, %p109
      %p111 = scmp.ne.s32.totalorder %s99, %s100
      %p112 = scmp.eq.s32.totalorder %s43, 1
      %p113 = por %p111, %p112
      %p115 = scmp.ne.s32.totalorder %s100, %s114
      %p116 = scmp.eq.s32.totalorder %s43, 0
      %p117 = por %p115, %p116
      %s119 = sadd.s32 %s118, 1
      %p122 = scmp.eq.s32.totalorder %s37, 1
      %p123 = scmp.ne.s32.totalorder %s118, %s120
      %p124 = scmp.eq.s32.totalorder %s37, 0
      %p125 = por %p123, %p124
      %p126 = scmp.ne.s32.totalorder %s118, %s120
      %p127 = scmp.eq.s32.totalorder %s42, 1
      %p128 = por %p126, %p127
      %p129 = scmp.ne.s32.totalorder %s120, %s121
      %p130 = scmp.eq.s32.totalorder %s42, 0
      %p131 = por %p129, %p130
      %p132 = scmp.ne.s32.totalorder %s120, %s121
      %p133 = scmp.eq.s32.totalorder %s43, 1
      %p134 = por %p132, %p133
      %p136 = scmp.ne.s32.totalorder %s121, %s135
      %p137 = scmp.eq.s32.totalorder %s43, 0
      %p138 = por %p136, %p137
      %s140 = sadd.s32 %s139, 1
      %p143 = scmp.eq.s32.totalorder %s37, 1
      %p144 = scmp.ne.s32.totalorder %s139, %s141
      %p145 = scmp.eq.s32.totalorder %s37, 0
      %p146 = por %p144, %p145
      %p147 = scmp.ne.s32.totalorder %s139, %s141
      %p148 = scmp.eq.s32.totalorder %s42, 1
      %p149 = por %p147, %p148
      %p150 = scmp.ne.s32.totalorder %s141, %s142
      %p151 = scmp.eq.s32.totalorder %s42, 0
      %p152 = por %p150, %p151
      %p153 = scmp.ne.s32.totalorder %s141, %s142
      %p154 = scmp.eq.s32.totalorder %s43, 1
      %p155 = por %p153, %p154
      %p157 = scmp.ne.s32.totalorder %s142, %s156
      %p158 = scmp.eq.s32.totalorder %s43, 0
      %p159 = por %p157, %p158
      %s161 = sadd.s32 %s160, 1
      %p164 = scmp.eq.s32.totalorder %s37, 1
      %p165 = scmp.ne.s32.totalorder %s160, %s162
      %p166 = scmp.eq.s32.totalorder %s37, 0
      %p167 = por %p165, %p166
      %p168 = scmp.ne.s32.totalorder %s160, %s162
      %p169 = scmp.eq.s32.totalorder %s42, 1
      %p170 = por %p168, %p169
      %p171 = scmp.ne.s32.totalorder %s162, %s163
      %p172 = scmp.eq.s32.totalorder %s42, 0
      %p173 = por %p171, %p172
      %p174 = scmp.ne.s32.totalorder %s162, %s163
      %p175 = scmp.eq.s32.totalorder %s43, 1
      %p176 = por %p174, %p175
      %p178 = scmp.ne.s32.totalorder %s163, %s177
      %p179 = scmp.eq.s32.totalorder %s43, 0
      %p180 = por %p178, %p179
      %s182 = sadd.s32 %s181, 1
      %p185 = scmp.eq.s32.totalorder %s37, 1
      %p186 = scmp.ne.s32.totalorder %s181, %s183
      %p187 = scmp.eq.s32.totalorder %s37, 0
      %p188 = por %p186, %p187
      %p189 = scmp.ne.s32.totalorder %s181, %s183
      %p190 = scmp.eq.s32.totalorder %s42, 1
      %p191 = por %p189, %p190
      %p192 = scmp.ne.s32.totalorder %s183, %s184
      %p193 = scmp.eq.s32.totalorder %s42, 0
      %p194 = por %p192, %p193
      %p195 = scmp.ne.s32.totalorder %s183, %s184
      %p196 = scmp.eq.s32.totalorder %s43, 1
      %p197 = por %p195, %p196
      %p199 = scmp.ne.s32.totalorder %s184, %s198
      %p200 = scmp.eq.s32.totalorder %s43, 0
      %p201 = por %p199, %p200
      %s203 = sadd.s32 %s202, 1
      %p206 = scmp.eq.s32.totalorder %s37, 1
      %p207 = scmp.ne.s32.totalorder %s202, %s204
      %p208 = scmp.eq.s32.totalorder %s37, 0
      %p209 = por %p207, %p208
      %p210 = scmp.ne.s32.totalorder %s202, %s204
      %p211 = scmp.eq.s32.totalorder %s42, 1
      %p212 = por %p210, %p211
      %p213 = scmp.ne.s32.totalorder %s204, %s205
      %p214 = scmp.eq.s32.totalorder %s42, 0
      %p215 = por %p213, %p214
      %p216 = scmp.ne.s32.totalorder %s204, %s205
      %p217 = scmp.eq.s32.totalorder %s43, 1
      %p218 = por %p216, %p217
      %p220 = scmp.ne.s32.totalorder %s205, %s219
      %p221 = scmp.eq.s32.totalorder %s43, 0
      %p222 = por %p220, %p221
      %s224 = sadd.s32 %s223, 1
      %p227 = scmp.eq.s32.totalorder %s37, 1
      %p228 = scmp.ne.s32.totalorder %s223, %s225
      %p229 = scmp.eq.s32.totalorder %s37, 0
      %p230 = por %p228, %p229
      %p231 = scmp.ne.s32.totalorder %s223, %s225
      %p232 = scmp.eq.s32.totalorder %s42, 1
      %p233 = por %p231, %p232
      %p234 = scmp.ne.s32.totalorder %s225, %s226
      %p235 = scmp.eq.s32.totalorder %s42, 0
      %p236 = por %p234, %p235
      %p237 = scmp.ne.s32.totalorder %s225, %s226
      %p238 = scmp.eq.s32.totalorder %s43, 1
      %p239 = por %p237, %p238
      %p241 = scmp.ne.s32.totalorder %s226, %s240
      %p242 = scmp.eq.s32.totalorder %s43, 0
      %p243 = por %p241, %p242
      %s245 = sadd.s32 %s244, 1
      %p248 = scmp.eq.s32.totalorder %s37, 1
      %p249 = scmp.ne.s32.totalorder %s244, %s246
      %p250 = scmp.eq.s32.totalorder %s37, 0
      %p251 = por %p249, %p250
      %p252 = scmp.ne.s32.totalorder %s244, %s246
      %p253 = scmp.eq.s32.totalorder %s42, 1
      %p254 = por %p252, %p253
      %p255 = scmp.ne.s32.totalorder %s246, %s247
      %p256 = scmp.eq.s32.totalorder %s42, 0
      %p257 = por %p255, %p256
      %p258 = scmp.ne.s32.totalorder %s246, %s247
      %p259 = scmp.eq.s32.totalorder %s43, 1
      %p260 = por %p258, %p259
      %p262 = scmp.ne.s32.totalorder %s247, %s261
      %p263 = scmp.eq.s32.totalorder %s43, 0
      %p264 = por %p262, %p263
      %s266 = sadd.s32 %s265, 1
      %p269 = scmp.eq.s32.totalorder %s37, 1
      %p270 = scmp.ne.s32.totalorder %s265, %s267
      %p271 = scmp.eq.s32.totalorder %s37, 0
      %p272 = por %p270, %p271
      %p273 = scmp.ne.s32.totalorder %s265, %s267
      %p274 = scmp.eq.s32.totalorder %s42, 1
      %p275 = por %p273, %p274
      %p276 = scmp.ne.s32.totalorder %s267, %s268
      %p277 = scmp.eq.s32.totalorder %s42, 0
      %p278 = por %p276, %p277
      %p279 = scmp.ne.s32.totalorder %s267, %s268
      %p280 = scmp.eq.s32.totalorder %s43, 1
      %p281 = por %p279, %p280
      %p283 = scmp.ne.s32.totalorder %s268, %s282
      %p284 = scmp.eq.s32.totalorder %s43, 0
      %p285 = por %p283, %p284
      %s287 = sadd.s32 %s286, 1
      %p290 = scmp.eq.s32.totalorder %s37, 1
      %p291 = scmp.ne.s32.totalorder %s286, %s288
      %p292 = scmp.eq.s32.totalorder %s37, 0
      %p293 = por %p291, %p292
      %p294 = scmp.ne.s32.totalorder %s286, %s288
      %p295 = scmp.eq.s32.totalorder %s42, 1
      %p296 = por %p294, %p295
      %p297 = scmp.ne.s32.totalorder %s288, %s289
      %p298 = scmp.eq.s32.totalorder %s42, 0
      %p299 = por %p297, %p298
      %p300 = scmp.ne.s32.totalorder %s288, %s289
      %p301 = scmp.eq.s32.totalorder %s43, 1
      %p302 = por %p300, %p301
      %p304 = scmp.ne.s32.totalorder %s289, %s303
      %p305 = scmp.eq.s32.totalorder %s43, 0
      %p306 = por %p304, %p305
      %s308 = sadd.s32 %s307, 1
      %p311 = scmp.eq.s32.totalorder %s37, 1
      %p312 = scmp.ne.s32.totalorder %s307, %s309
      %p313 = scmp.eq.s32.totalorder %s37, 0
      %p314 = por %p312, %p313
      %p315 = scmp.ne.s32.totalorder %s307, %s309
      %p316 = scmp.eq.s32.totalorder %s42, 1
      %p317 = por %p315, %p316
      %p318 = scmp.ne.s32.totalorder %s309, %s310
      %p319 = scmp.eq.s32.totalorder %s42, 0
      %p320 = por %p318, %p319
      %p321 = scmp.ne.s32.totalorder %s309, %s310
      %p322 = scmp.eq.s32.totalorder %s43, 1
      %p323 = por %p321, %p322
      %p325 = scmp.ne.s32.totalorder %s310, %s324
      %p326 = scmp.eq.s32.totalorder %s43, 0
      %p327 = por %p325, %p326
      %s329 = sadd.s32 %s328, 1
      %p332 = scmp.eq.s32.totalorder %s37, 1
      %p333 = scmp.ne.s32.totalorder %s328, %s330
      %p334 = scmp.eq.s32.totalorder %s37, 0
      %p335 = por %p333, %p334
      %p336 = scmp.ne.s32.totalorder %s328, %s330
      %p337 = scmp.eq.s32.totalorder %s42, 1
      %p338 = por %p336, %p337
      %p339 = scmp.ne.s32.totalorder %s330, %s331
      %p340 = scmp.eq.s32.totalorder %s42, 0
      %p341 = por %p339, %p340
      %p342 = scmp.ne.s32.totalorder %s330, %s331
      %p343 = scmp.eq.s32.totalorder %s43, 1
      %p344 = por %p342, %p343
      %p346 = scmp.ne.s32.totalorder %s331, %s345
      %p347 = scmp.eq.s32.totalorder %s43, 0
      %p348 = por %p346, %p347
      %s350 = sadd.s32 %s349, 1
      %p353 = scmp.eq.s32.totalorder %s37, 1
      %p354 = scmp.ne.s32.totalorder %s349, %s351
      %p355 = scmp.eq.s32.totalorder %s37, 0
      %p356 = por %p354, %p355
      %p357 = scmp.ne.s32.totalorder %s349, %s351
      %p358 = scmp.eq.s32.totalorder %s42, 1
      %p359 = por %p357, %p358
      %p360 = scmp.ne.s32.totalorder %s351, %s352
      %p361 = scmp.eq.s32.totalorder %s42, 0
      %p362 = por %p360, %p361
      %p363 = scmp.ne.s32.totalorder %s351, %s352
      %p364 = scmp.eq.s32.totalorder %s43, 1
      %p365 = por %p363, %p364
      %p367 = scmp.ne.s32.totalorder %s352, %s366
      %p368 = scmp.eq.s32.totalorder %s43, 0
      %p369 = por %p367, %p368
      %s371 = sadd.s32 %s370, 1
      %p374 = scmp.eq.s32.totalorder %s37, 1
      %p375 = scmp.ne.s32.totalorder %s370, %s372
      %p376 = scmp.eq.s32.totalorder %s37, 0
      %p377 = por %p375, %p376
      %p378 = scmp.ne.s32.totalorder %s370, %s372
      %p379 = scmp.eq.s32.totalorder %s42, 1
      %p380 = por %p378, %p379
      %p381 = scmp.ne.s32.totalorder %s372, %s373
      %p382 = scmp.eq.s32.totalorder %s42, 0
      %p383 = por %p381, %p382
      %p384 = scmp.ne.s32.totalorder %s372, %s373
      %p385 = scmp.eq.s32.totalorder %s43, 1
      %p386 = por %p384, %p385
      %p388 = scmp.ne.s32.totalorder %s373, %s387
      %p389 = scmp.eq.s32.totalorder %s43, 0
      %p390 = por %p388, %p389
      %s392 = sadd.s32 %s391, 1
      %p395 = scmp.eq.s32.totalorder %s37, 1
      %p396 = scmp.ne.s32.totalorder %s391, %s393
      %p397 = scmp.eq.s32.totalorder %s37, 0
      %p398 = por %p396, %p397
      %p399 = scmp.ne.s32.totalorder %s391, %s393
      %p400 = scmp.eq.s32.totalorder %s42, 1
      %p401 = por %p399, %p400
      %p402 = scmp.ne.s32.totalorder %s393, %s394
      %p403 = scmp.eq.s32.totalorder %s42, 0
      %p404 = por %p402, %p403
      %p405 = scmp.ne.s32.totalorder %s393, %s394
      %p406 = scmp.eq.s32.totalorder %s43, 1
      %p407 = por %p405, %p406
      %p409 = scmp.ne.s32.totalorder %s394, %s408
      %p410 = scmp.eq.s32.totalorder %s43, 0
      %p411 = por %p409, %p410
      %s412 = ssub.s32 %s37, %s44
      %p413 = scmp.eq.s32.totalorder %s412, 0
      %s415 = sadd.s32 %s414, 1
      %s416 = scalar_select %p413, %s414, %s415
      %p419 = pneg %p413
      %p420 = scmp.eq.s32.totalorder %s37, 1
      %p421 = por %p419, %p420
      %p422 = scmp.ne.s32.totalorder %s414, %s417
      %p423 = scmp.eq.s32.totalorder %s37, 0
      %p424 = por %p422, %p423
      %p425 = scmp.ne.s32.totalorder %s414, %s417
      %p426 = scmp.eq.s32.totalorder %s42, 1
      %p427 = por %p425, %p426
      %p428 = scmp.ne.s32.totalorder %s417, %s418
      %p429 = scmp.eq.s32.totalorder %s42, 0
      %p430 = por %p428, %p429
      %p431 = scmp.ne.s32.totalorder %s417, %s418
      %p432 = scmp.eq.s32.totalorder %s43, 1
      %p433 = por %p431, %p432
      %p435 = scmp.ne.s32.totalorder %s418, %s434
      %p436 = scmp.eq.s32.totalorder %s43, 0
      %p437 = por %p435, %p436
      %s438 = ssub.s32 %s37, %s44
      %p439 = scmp.eq.s32.totalorder %s438, 0
      %s441 = sadd.s32 %s440, 1
      %s442 = scalar_select %p439, %s440, %s441
      %p445 = pneg %p439
      %p446 = scmp.eq.s32.totalorder %s37, 1
      %p447 = por %p445, %p446
      %p448 = scmp.ne.s32.totalorder %s440, %s443
      %p449 = scmp.eq.s32.totalorder %s37, 0
      %p450 = por %p448, %p449
      %p451 = scmp.ne.s32.totalorder %s440, %s443
      %p452 = scmp.eq.s32.totalorder %s42, 1
      %p453 = por %p451, %p452
      %p454 = scmp.ne.s32.totalorder %s443, %s444
      %p455 = scmp.eq.s32.totalorder %s42, 0
      %p456 = por %p454, %p455
      %p457 = scmp.ne.s32.totalorder %s443, %s444
      %p458 = scmp.eq.s32.totalorder %s43, 1
      %p459 = por %p457, %p458
      %p461 = scmp.ne.s32.totalorder %s444, %s460
      %p462 = scmp.eq.s32.totalorder %s43, 0
      %p463 = por %p461, %p462
      %p464 = scmp.le.s32.totalorder 1, %s37
      %p465 = scmp.lt.s32.totalorder %s37, 3
      %p466 = pnand %p464, %p465
      %p467 = pneg %p466
      // Predicated region
      $region9: #{tpu_custom_call.1} parent=5 // pred_check
        _
      $region10: #{tpu_custom_call.1} parent=5 // pred_check_branch
        %469 = sbr.rel (%p466) target = $region12
      $region11: #{tpu_custom_call.1} parent=5 // pred_region
        %s470 = ssub.s32 %s37, 1
        // Predicated region
        $region13: #{tpu_custom_call.1} parent=11 // pred_check
          %p471 = pneg %p110
        $region14: #{tpu_custom_call.1} parent=11 // pred_check_branch
          %473 = sbr.rel (%p471) target = $region16
        $region15: #{tpu_custom_call.1} parent=11 // pred_region
          _
        $region16: #{tpu_custom_call.1} parent=11 // pred_fallthru
          _
        // Predicated region
        $region17: #{tpu_custom_call.1} parent=11 // pred_check
          %p474 = pneg %p131
        $region18: #{tpu_custom_call.1} parent=11 // pred_check_branch
          %476 = sbr.rel (%p474) target = $region20
        $region19: #{tpu_custom_call.1} parent=11 // pred_region
          _
        $region20: #{tpu_custom_call.1} parent=11 // pred_fallthru
          _
        // Predicated region
        $region21: #{tpu_custom_call.1} parent=11 // pred_check
          %p477 = pneg %p152
        $region22: #{tpu_custom_call.1} parent=11 // pred_check_branch
          %479 = sbr.rel (%p477) target = $region24
        $region23: #{tpu_custom_call.1} parent=11 // pred_region
          _
        $region24: #{tpu_custom_call.1} parent=11 // pred_fallthru
          _
        // Predicated region
        $region25: #{tpu_custom_call.1} parent=11 // pred_check
          %p480 = pneg %p173
        $region26: #{tpu_custom_call.1} parent=11 // pred_check_branch
          %482 = sbr.rel (%p480) target = $region28
        $region27: #{tpu_custom_call.1} parent=11 // pred_region
          _
        $region28: #{tpu_custom_call.1} parent=11 // pred_fallthru
          _
        // Predicated region
        $region29: #{tpu_custom_call.1} parent=11 // pred_check
          %p483 = pneg %p194
        $region30: #{tpu_custom_call.1} parent=11 // pred_check_branch
          %485 = sbr.rel (%p483) target = $region32
        $region31: #{tpu_custom_call.1} parent=11 // pred_region
          _
        $region32: #{tpu_custom_call.1} parent=11 // pred_fallthru
          _
        // Predicated region
        $region33: #{tpu_custom_call.1} parent=11 // pred_check
          %p486 = pneg %p215
        $region34: #{tpu_custom_call.1} parent=11 // pred_check_branch
          %488 = sbr.rel (%p486) target = $region36
        $region35: #{tpu_custom_call.1} parent=11 // pred_region
          _
        $region36: #{tpu_custom_call.1} parent=11 // pred_fallthru
          _
        // Predicated region
        $region37: #{tpu_custom_call.1} parent=11 // pred_check
          %p489 = pneg %p236
        $region38: #{tpu_custom_call.1} parent=11 // pred_check_branch
          %491 = sbr.rel (%p489) target = $region40
        $region39: #{tpu_custom_call.1} parent=11 // pred_region
          _
        $region40: #{tpu_custom_call.1} parent=11 // pred_fallthru
          _
        // Predicated region
        $region41: #{tpu_custom_call.1} parent=11 // pred_check
          %p492 = pneg %p257
        $region42: #{tpu_custom_call.1} parent=11 // pred_check_branch
          %494 = sbr.rel (%p492) target = $region44
        $region43: #{tpu_custom_call.1} parent=11 // pred_region
          _
        $region44: #{tpu_custom_call.1} parent=11 // pred_fallthru
          _
        // Predicated region
        $region45: #{tpu_custom_call.1} parent=11 // pred_check
          %p495 = pneg %p278
        $region46: #{tpu_custom_call.1} parent=11 // pred_check_branch
          %497 = sbr.rel (%p495) target = $region48
        $region47: #{tpu_custom_call.1} parent=11 // pred_region
          _
        $region48: #{tpu_custom_call.1} parent=11 // pred_fallthru
          _
        // Predicated region
        $region49: #{tpu_custom_call.1} parent=11 // pred_check
          %p498 = pneg %p299
        $region50: #{tpu_custom_call.1} parent=11 // pred_check_branch
          %500 = sbr.rel (%p498) target = $region52
        $region51: #{tpu_custom_call.1} parent=11 // pred_region
          _
        $region52: #{tpu_custom_call.1} parent=11 // pred_fallthru
          _
        // Predicated region
        $region53: #{tpu_custom_call.1} parent=11 // pred_check
          %p501 = pneg %p320
        $region54: #{tpu_custom_call.1} parent=11 // pred_check_branch
          %503 = sbr.rel (%p501) target = $region56
        $region55: #{tpu_custom_call.1} parent=11 // pred_region
          _
        $region56: #{tpu_custom_call.1} parent=11 // pred_fallthru
          _
        // Predicated region
        $region57: #{tpu_custom_call.1} parent=11 // pred_check
          %p504 = pneg %p341
        $region58: #{tpu_custom_call.1} parent=11 // pred_check_branch
          %506 = sbr.rel (%p504) target = $region60
        $region59: #{tpu_custom_call.1} parent=11 // pred_region
          %s508 = ssub.s32 4608, 4608
          %509 = vsyncadd [#allocation6], %s508
          %s510 = sshll.u32 [#allocation7], 4
          %s511 = int_to_ptr.vmem [resolvable:$true] %s510
          %516 = dma.hbm_to_vmem [thread:$0]  %s13, 4608, %s511, [#allocation6], 128, 128, 8
        $region60: #{tpu_custom_call.1} parent=11 // pred_fallthru
          _
        // Predicated region
        $region61: #{tpu_custom_call.1} parent=11 // pred_check
          %p517 = pneg %p362
        $region62: #{tpu_custom_call.1} parent=11 // pred_check_branch
          %519 = sbr.rel (%p517) target = $region64
        $region63: #{tpu_custom_call.1} parent=11 // pred_region
          _
        $region64: #{tpu_custom_call.1} parent=11 // pred_fallthru
          _
        // Predicated region
        $region65: #{tpu_custom_call.1} parent=11 // pred_check
          %p520 = pneg %p383
        $region66: #{tpu_custom_call.1} parent=11 // pred_check_branch
          %522 = sbr.rel (%p520) target = $region68
        $region67: #{tpu_custom_call.1} parent=11 // pred_region
          _
        $region68: #{tpu_custom_call.1} parent=11 // pred_fallthru
          _
        // Predicated region
        $region69: #{tpu_custom_call.1} parent=11 // pred_check
          %p523 = pneg %p404
        $region70: #{tpu_custom_call.1} parent=11 // pred_check_branch
          %525 = sbr.rel (%p523) target = $region72
        $region71: #{tpu_custom_call.1} parent=11 // pred_region
          _
        $region72: #{tpu_custom_call.1} parent=11 // pred_fallthru
          _
      $region12: #{tpu_custom_call.1} parent=5 // pred_fallthru
        _
      %p526 = scmp.lt.s32.totalorder %s37, 2
      // Predicated region
      $region73: #{tpu_custom_call.1} parent=5 // pred_check
        %p527 = pneg %p526
      $region74: #{tpu_custom_call.1} parent=5 // pred_check_branch
        %529 = sbr.rel (%p527) target = $region76
      $region75: #{tpu_custom_call.1} parent=5 // pred_region
        // Predicated region
        $region77: #{tpu_custom_call.1} parent=75 // pred_check
          %p530 = pneg %p57
        $region78: #{tpu_custom_call.1} parent=75 // pred_check_branch
          %532 = sbr.rel (%p530) target = $region80
        $region79: #{tpu_custom_call.1} parent=75 // pred_region
          %s533 = sand.u32 %s47, 1
          %s534 = scalar_lea.sflag [#allocation3], %s533
          %s535 = sand.u32 %s47, 1
          %s536 = smul.addr %s535, 8
          %s537 = scalar_lea.vmem [#allocation2], %s536
          %s539 = ssub.s32 128, 128
          %540 = vsyncadd %s534, %s539
          %s541 = smul.addr %s37, 128
          %s542 = scalar_lea.hbm %s0, %s541
          %s544 = sshll.u32 %s537, 4
          %s545 = int_to_ptr.vmem [resolvable:$true] %s544
          %547 = dma.hbm_to_vmem [thread:$0]  %s542, 128, %s545, %s534
        $region80: #{tpu_custom_call.1} parent=75 // pred_fallthru
          _
        // Predicated region
        $region81: #{tpu_custom_call.1} parent=75 // pred_check
          %p548 = pneg %p83
        $region82: #{tpu_custom_call.1} parent=75 // pred_check_branch
          %550 = sbr.rel (%p548) target = $region84
        $region83: #{tpu_custom_call.1} parent=75 // pred_region
          %s551 = sand.u32 %s37, 1
          %s552 = scalar_lea.sflag [#allocation6], %s551
          %s553 = sand.u32 %s73, 1
          %s554 = smul.addr %s553, 8
          %s555 = scalar_lea.vmem [#allocation5], %s554
          %s557 = ssub.s32 128, 128
          %558 = vsyncadd %s552, %s557
          %s559 = smul.addr %s37, 128
          %s560 = scalar_lea.hbm %s1, %s559
          %s562 = sshll.u32 %s555, 4
          %s563 = int_to_ptr.vmem [resolvable:$true] %s562
          %565 = dma.hbm_to_vmem [thread:$0]  %s560, 128, %s563, %s552
        $region84: #{tpu_custom_call.1} parent=75 // pred_fallthru
          _
      $region76: #{tpu_custom_call.1} parent=5 // pred_fallthru
        _
      %p566 = scmp.le.s32.totalorder 1, %s37
      %p567 = scmp.lt.s32.totalorder %s37, 3
      %p568 = pnand %p566, %p567
      %p569 = pneg %p568
      // Predicated region
      $region85: #{tpu_custom_call.1} parent=5 // pred_check
        _
      $region86: #{tpu_custom_call.1} parent=5 // pred_check_branch
        %571 = sbr.rel (%p568) target = $region88
      $region87: #{tpu_custom_call.1} parent=5 // pred_region
        %s572 = ssub.s32 %s37, 1
        %s573 = sand.u32 %s50, 1
        %s574 = scalar_lea.sflag [#allocation3], %s573
        %s575 = sand.u32 %s50, 1
        %s576 = smul.addr %s575, 8
        %s577 = scalar_lea.vmem [#allocation2], %s576
        // Predicated region
        $region89: #{tpu_custom_call.1} parent=87 // pred_check
          %p578 = pneg %p63
        $region90: #{tpu_custom_call.1} parent=87 // pred_check_branch
          %580 = sbr.rel (%p578) target = $region92
        $region91: #{tpu_custom_call.1} parent=87 // pred_region
          %581 = dma.done %s574, 128
        $region92: #{tpu_custom_call.1} parent=87 // pred_fallthru
          _
        %s582 = sand.u32 %s42, 1
        %s583 = scalar_lea.sflag [#allocation6], %s582
        %s584 = sand.u32 %s76, 1
        %s585 = smul.addr %s584, 8
        %s586 = scalar_lea.vmem [#allocation5], %s585
        // Predicated region
        $region93: #{tpu_custom_call.1} parent=87 // pred_check
          %p587 = pneg %p89
        $region94: #{tpu_custom_call.1} parent=87 // pred_check_branch
          %589 = sbr.rel (%p587) target = $region96
        $region95: #{tpu_custom_call.1} parent=87 // pred_region
          %590 = dma.done %s583, 128
        $region96: #{tpu_custom_call.1} parent=87 // pred_fallthru
          _
        // Predicated region
        $region97: #{tpu_custom_call.1} parent=87 // pred_check
          %p591 = pneg %p341
        $region98: #{tpu_custom_call.1} parent=87 // pred_check_branch
          %593 = sbr.rel (%p591) target = $region100
        $region99: #{tpu_custom_call.1} parent=87 // pred_region
          %594 = dma.done [#allocation6], 4608
        $region100: #{tpu_custom_call.1} parent=87 // pred_fallthru
          _
        %s595 = sand.u32 %s50, 1
        %s596 = scalar_lea.sflag [#allocation3], %s595
        %s597 = sand.u32 %s50, 1
        %s598 = smul.addr %s597, 8
        %s599 = scalar_lea.vmem [#allocation2], %s598
        %p600 = pneg %p63
        %p601 = pneg %p60
        %s602 = sand.u32 %s42, 1
        %s603 = scalar_lea.sflag [#allocation6], %s602
        %s604 = sand.u32 %s76, 1
        %s605 = smul.addr %s604, 8
        %s606 = scalar_lea.vmem [#allocation5], %s605
        %p607 = pneg %p89
        %p608 = pneg %p86
        %p609 = pneg %p110
        %p610 = pneg %p107
        %p611 = pneg %p131
        %p612 = pneg %p128
        %p613 = pneg %p152
        %p614 = pneg %p149
        %p615 = pneg %p173
        %p616 = pneg %p170
        %p617 = pneg %p194
        %p618 = pneg %p191
        %p619 = pneg %p215
        %p620 = pneg %p212
        %p621 = pneg %p236
        %p622 = pneg %p233
        %p623 = pneg %p257
        %p624 = pneg %p254
        %p625 = pneg %p278
        %p626 = pneg %p275
        %p627 = pneg %p299
        %p628 = pneg %p296
        %p629 = pneg %p320
        %p630 = pneg %p317
        %p631 = pneg %p341
        %p632 = pneg %p338
        %p633 = pneg %p362
        %p634 = pneg %p359
        %p635 = pneg %p383
        %p636 = pneg %p380
        %p637 = pneg %p404
        %p638 = pneg %p401
        %p639 = pneg %p430
        %p640 = pneg %p427
        %s641 = sand.u32 %s417, 1
        %s642 = scalar_lea.sflag [#allocation4], %s641
        %s643 = sand.u32 %s417, 1
        %s644 = smul.addr %s643, 8
        %s645 = scalar_lea.vmem [#allocation8], %s644
        %p646 = pneg %p456
        %p647 = pneg %p453
        %s648 = sand.u32 %s443, 1
        %s649 = scalar_lea.sflag [#allocation10], %s648
        %s650 = sand.u32 %s443, 1
        %s651 = smul.addr %s650, 8
        %s652 = scalar_lea.vmem [#allocation9], %s651
        %v653 = vld [vmem:[%s577] sm:$0xff]
        %v654 = vld [vmem:[%s586] sm:$0xff]
        %vm655 = vcmask 261120
        %v656 = vsel %vm655, %v653, 0.0
        %657 = vadd.xlane.f32.xlu0 %v656
        %v658 = vpop.xlane.xlu0 %657
        %v659 = vrcp.pop 32.0
        %v660 = vmul.f32 %v658, %v659
        %v661 = vsub.f32 %v653, %v660
        %v662 = vmul.f32 %v661, %v661
        %v663 = vsel %vm655, %v662, 0.0
        %664 = vadd.xlane.f32.xlu0 %v663
        %v665 = vpop.xlane.xlu0 %664
        %v666 = vmul.f32 %v665, %v659
        %v667 = vadd.f32 %v666, 1e-05
        %v668 = vrsqrt.pop %v667
        %v669 = vmul.f32 %v661, %v668
        %v670 = vld [vmem:[%s2] sm:$0x1]
        %v672 = vlaneseq
        %v673 = vshrl.u32 %v672, 7
        %v674 = vsub.s32 0, %v673
        %v675 = vrot.slane %v670, %v674
        %v677 = vmul.f32 %v669, %v675
        %v678 = vld [vmem:[%s3] sm:$0x1]
        %v680 = vlaneseq
        %v681 = vshrl.u32 %v680, 7
        %v682 = vsub.s32 0, %v681
        %v683 = vrot.slane %v678, %v682
        %v685 = vadd.f32 %v677, %v683
        %v686 = vld [vmem:[%s8] sm:$0xff]
        %v687 = vld [vmem:[%s8 + $0x8] sm:$0xff]
        %v688 = vld [vmem:[%s8 + $0x10] sm:$0xff]
        %v689 = vld [vmem:[%s8 + $0x18] sm:$0xff]
        %v691 = vsel %vm655, %v685, 0
        %693 = vmatprep.subr.mxu0 0.0
        %694 = vmatpush1.msra.mxu0 %v686
        %695 = vmatprep.subr.mxu0 0.0
        %696 = vmatpush1.msra.mxu0 %v687
        %697 = vmatprep.subr.mxu0 0.0
        %698 = vmatpush1.msra.mxu0 %v688
        %699 = vmatprep.subr.mxu0 0.0
        %700 = vmatpush1.msra.mxu0 %v689
        %701 = vmatprep.subr.mxu0 0.0
        %702 = vmatpush1.msra.mxu0 0.0
        %703 = vmatprep.subr.mxu0 0.0
        %704 = vmatpush1.msra.mxu0 0.0
        %705 = vmatprep.subr.mxu0 0.0
        %706 = vmatpush1.msra.mxu0 0.0
        %707 = vmatprep.subr.mxu0 0.0
        %708 = vmatpush1.msra.mxu0 0.0
        %709 = vmatprep.subr.mxu0 0.0
        %710 = vmatpush1.msra.mxu0 0.0
        %711 = vmatprep.subr.mxu0 0.0
        %712 = vmatpush1.msra.mxu0 0.0
        %713 = vmatprep.subr.mxu0 0.0
        %714 = vmatpush1.msra.mxu0 0.0
        %715 = vmatprep.subr.mxu0 0.0
        %716 = vmatpush1.msra.mxu0 0.0
        %717 = vmatprep.subr.mxu0 0.0
        %718 = vmatpush1.msra.mxu0 0.0
        %719 = vmatprep.subr.mxu0 0.0
        %720 = vmatpush1.msra.mxu0 0.0
        %721 = vmatprep.subr.mxu0 0.0
        %722 = vmatpush1.msra.mxu0 0.0
        %723 = vmatprep.subr.mxu0 0.0
        %724 = vmatpush1.msra.mxu0 0.0
        %725 = vmatprep.subr.mxu0 0.0
        %726 = vmatpush1.msra.mxu0 0.0
        %727 = vmatprep.subr.mxu0 0.0
        %728 = vmatpush1.msra.mxu0 0.0
        %729 = vmatprep.subr.mxu0 0.0
        %730 = vmatpush1.msra.mxu0 0.0
        %731 = vmatprep.subr.mxu0 0.0
        %732 = vmatpush1.msra.mxu0 0.0
        %733 = vmatprep.subr.mxu0 0.0
        %734 = vmatpush1.msra.mxu0 0.0
        %735 = vmatprep.subr.mxu0 0.0
        %736 = vmatpush1.msra.mxu0 0.0
        %737 = vmatprep.subr.mxu0 0.0
        %738 = vmatpush1.msra.mxu0 0.0
        %739 = vmatprep.subr.mxu0 0.0
        %740 = vmatpush1.msra.mxu0 0.0
        %741 = vmatprep.subr.mxu0 0.0
        %742 = vmatpush1.msra.mxu0 0.0
        %743 = vmatprep.subr.mxu0 0.0
        %744 = vmatpush1.msra.mxu0 0.0
        %745 = vmatprep.subr.mxu0 0.0
        %746 = vmatpush1.msra.mxu0 0.0
        %747 = vmatprep.subr.mxu0 0.0
        %748 = vmatpush1.msra.mxu0 0.0
        %749 = vmatprep.subr.mxu0 0.0
        %750 = vmatpush1.msra.mxu0 0.0
        %751 = vmatprep.subr.mxu0 0.0
        %752 = vmatpush1.msra.mxu0 0.0
        %753 = vmatprep.subr.mxu0 0.0
        %754 = vmatpush1.msra.mxu0 0.0
        %755 = vmatprep.subr.mxu0 0.0
        %756 = vmatpush1.msra.mxu0 0.0
        %757 = vmatprep.mubr.f32.mxu0 0.0
        %758 = vmatmul.mubr.f32.gmra.mrb[0].mxu0 %v691
        %v759 = vpop.f32.mrb[0].mxu0
        %v760 = vadd.f32 0.0, %v759
        %v761 = vpop.f32.mrb[0].mxu0
        %762 = vdwg.mxu0
        %v763 = vmul.f32 %v760, 0.35355338
        %v764 = vld [vmem:[%s9] sm:$0xff]
        %v765 = vld [vmem:[%s9 + $0x8] sm:$0xff]
        %v766 = vld [vmem:[%s9 + $0x10] sm:$0xff]
        %v767 = vld [vmem:[%s9 + $0x18] sm:$0xff]
        %769 = vrot.lane.b32.xlu0 %v760, 96
        %v770 = vpop.permute.xlu0 %769
        %vm771 = vcmask 64512
        %v773 = vsel %vm771, %v763, 0
        %v775 = vsel %vm771, %v770, 0
        %777 = vmatprep.subr.mxu0 0.0
        %778 = vmatpush1.xpose.msra.mxu0 %v775
        %779 = vmatprep.subr.mxu0 0.0
        %780 = vmatpush1.xpose.msra.mxu0 0.0
        %781 = vmatprep.subr.mxu0 0.0
        %782 = vmatpush1.xpose.msra.mxu0 0.0
        %783 = vmatprep.subr.mxu0 0.0
        %784 = vmatpush1.xpose.msra.mxu0 0.0
        %785 = vmatprep.subr.mxu0 0.0
        %786 = vmatpush1.xpose.msra.mxu0 0.0
        %787 = vmatprep.subr.mxu0 0.0
        %788 = vmatpush1.xpose.msra.mxu0 0.0
        %789 = vmatprep.subr.mxu0 0.0
        %790 = vmatpush1.xpose.msra.mxu0 0.0
        %791 = vmatprep.subr.mxu0 0.0
        %792 = vmatpush1.xpose.msra.mxu0 0.0
        %793 = vmatprep.subr.mxu0 0.0
        %794 = vmatpush1.xpose.msra.mxu0 0.0
        %795 = vmatprep.subr.mxu0 0.0
        %796 = vmatpush1.xpose.msra.mxu0 0.0
        %797 = vmatprep.subr.mxu0 0.0
        %798 = vmatpush1.xpose.msra.mxu0 0.0
        %799 = vmatprep.subr.mxu0 0.0
        %800 = vmatpush1.xpose.msra.mxu0 0.0
        %801 = vmatprep.subr.mxu0 0.0
        %802 = vmatpush1.xpose.msra.mxu0 0.0
        %803 = vmatprep.subr.mxu0 0.0
        %804 = vmatpush1.xpose.msra.mxu0 0.0
        %805 = vmatprep.subr.mxu0 0.0
        %806 = vmatpush1.xpose.msra.mxu0 0.0
        %807 = vmatprep.subr.mxu0 0.0
        %808 = vmatpush1.xpose.msra.mxu0 0.0
        %809 = vmatprep.subr.mxu0 0.0
        %810 = vmatpush1.xpose.msra.mxu0 0.0
        %811 = vmatprep.subr.mxu0 0.0
        %812 = vmatpush1.xpose.msra.mxu0 0.0
        %813 = vmatprep.subr.mxu0 0.0
        %814 = vmatpush1.xpose.msra.mxu0 0.0
        %815 = vmatprep.subr.mxu0 0.0
        %816 = vmatpush1.xpose.msra.mxu0 0.0
        %817 = vmatprep.subr.mxu0 0.0
        %818 = vmatpush1.xpose.msra.mxu0 0.0
        %819 = vmatprep.subr.mxu0 0.0
        %820 = vmatpush1.xpose.msra.mxu0 0.0
        %821 = vmatprep.subr.mxu0 0.0
        %822 = vmatpush1.xpose.msra.mxu0 0.0
        %823 = vmatprep.subr.mxu0 0.0
        %824 = vmatpush1.xpose.msra.mxu0 0.0
        %825 = vmatprep.subr.mxu0 0.0
        %826 = vmatpush1.xpose.msra.mxu0 0.0
        %827 = vmatprep.subr.mxu0 0.0
        %828 = vmatpush1.xpose.msra.mxu0 0.0
        %829 = vmatprep.subr.mxu0 0.0
        %830 = vmatpush1.xpose.msra.mxu0 0.0
        %831 = vmatprep.subr.mxu0 0.0
        %832 = vmatpush1.xpose.msra.mxu0 0.0
        %833 = vmatprep.subr.mxu0 0.0
        %834 = vmatpush1.xpose.msra.mxu0 0.0
        %835 = vmatprep.subr.mxu0 0.0
        %836 = vmatpush1.xpose.msra.mxu0 0.0
        %837 = vmatprep.subr.mxu0 0.0
        %838 = vmatpush1.xpose.msra.mxu0 0.0
        %839 = vmatprep.subr.mxu0 0.0
        %840 = vmatpush1.xpose.msra.mxu0 0.0
        %841 = vmatprep.mubr.f32.mxu0 0.0
        %842 = vmatmul.mubr.f32.gmra.mrb[0].mxu0 %v773
        %v843 = vpop.f32.mrb[0].mxu0
        %v844 = vadd.f32 0.0, %v843
        %v845 = vpop.f32.mrb[0].mxu0
        %846 = vdwg.mxu0
        %v847 = vsel %vm771, %v844, -inf
        %848 = vmax.xlane.f32.xlu0 %v847
        %v849 = vpop.xlane.xlu0 %848
        %v850 = vsub.f32 %v844, %v849
        %v851 = vmul.f32 %v850, 1.442695
        %v852 = vpow.pop %v851
        %v853 = vsel %vm771, %v852, 0.0
        %854 = vadd.xlane.f32.xlu0 %v853
        %v855 = vpop.xlane.xlu0 %854
        %v856 = vrcp.pop %v855
        %v857 = vmul.f32 %v852, %v856
        %858 = vrot.lane.b32.xlu0 %v760, 64
        %v859 = vpop.permute.xlu0 %858
        %v862 = vsel %vm771, %v857, 0
        %864 = vmatprep.subr.mxu0 0.0
        %865 = vmatpush1.msra.mxu0 %v859
        %866 = vmatprep.subr.mxu0 0.0
        %867 = vmatpush1.msra.mxu0 0.0
        %868 = vmatprep.subr.mxu0 0.0
        %869 = vmatpush1.msra.mxu0 0.0
        %870 = vmatprep.subr.mxu0 0.0
        %871 = vmatpush1.msra.mxu0 0.0
        %872 = vmatprep.subr.mxu0 0.0
        %873 = vmatpush1.msra.mxu0 0.0
        %874 = vmatprep.subr.mxu0 0.0
        %875 = vmatpush1.msra.mxu0 0.0
        %876 = vmatprep.subr.mxu0 0.0
        %877 = vmatpush1.msra.mxu0 0.0
        %878 = vmatprep.subr.mxu0 0.0
        %879 = vmatpush1.msra.mxu0 0.0
        %880 = vmatprep.subr.mxu0 0.0
        %881 = vmatpush1.msra.mxu0 0.0
        %882 = vmatprep.subr.mxu0 0.0
        %883 = vmatpush1.msra.mxu0 0.0
        %884 = vmatprep.subr.mxu0 0.0
        %885 = vmatpush1.msra.mxu0 0.0
        %886 = vmatprep.subr.mxu0 0.0
        %887 = vmatpush1.msra.mxu0 0.0
        %888 = vmatprep.subr.mxu0 0.0
        %889 = vmatpush1.msra.mxu0 0.0
        %890 = vmatprep.subr.mxu0 0.0
        %891 = vmatpush1.msra.mxu0 0.0
        %892 = vmatprep.subr.mxu0 0.0
        %893 = vmatpush1.msra.mxu0 0.0
        %894 = vmatprep.subr.mxu0 0.0
        %895 = vmatpush1.msra.mxu0 0.0
        %896 = vmatprep.subr.mxu0 0.0
        %897 = vmatpush1.msra.mxu0 0.0
        %898 = vmatprep.subr.mxu0 0.0
        %899 = vmatpush1.msra.mxu0 0.0
        %900 = vmatprep.subr.mxu0 0.0
        %901 = vmatpush1.msra.mxu0 0.0
        %902 = vmatprep.subr.mxu0 0.0
        %903 = vmatpush1.msra.mxu0 0.0
        %904 = vmatprep.subr.mxu0 0.0
        %905 = vmatpush1.msra.mxu0 0.0
        %906 = vmatprep.subr.mxu0 0.0
        %907 = vmatpush1.msra.mxu0 0.0
        %908 = vmatprep.subr.mxu0 0.0
        %909 = vmatpush1.msra.mxu0 0.0
        %910 = vmatprep.subr.mxu0 0.0
        %911 = vmatpush1.msra.mxu0 0.0
        %912 = vmatprep.subr.mxu0 0.0
        %913 = vmatpush1.msra.mxu0 0.0
        %914 = vmatprep.subr.mxu0 0.0
        %915 = vmatpush1.msra.mxu0 0.0
        %916 = vmatprep.subr.mxu0 0.0
        %917 = vmatpush1.msra.mxu0 0.0
        %918 = vmatprep.subr.mxu0 0.0
        %919 = vmatpush1.msra.mxu0 0.0
        %920 = vmatprep.subr.mxu0 0.0
        %921 = vmatpush1.msra.mxu0 0.0
        %922 = vmatprep.subr.mxu0 0.0
        %923 = vmatpush1.msra.mxu0 0.0
        %924 = vmatprep.subr.mxu0 0.0
        %925 = vmatpush1.msra.mxu0 0.0
        %926 = vmatprep.subr.mxu0 0.0
        %927 = vmatpush1.msra.mxu0 0.0
        %928 = vmatprep.mubr.f32.mxu0 0.0
        %929 = vmatmul.mubr.f32.gmra.mrb[0].mxu0 %v862
        %v930 = vpop.f32.mrb[0].mxu0
        %v931 = vadd.f32 0.0, %v930
        %v932 = vpop.f32.mrb[0].mxu0
        %933 = vdwg.mxu0
        %934 = vrot.lane.b32.xlu0 %v763, 120
        %v935 = vpop.permute.xlu0 %934
        %936 = vrot.lane.b32.xlu0 %v760, 88
        %v937 = vpop.permute.xlu0 %936
        %v938 = vsel %vm771, %v935, 0
        %v940 = vsel %vm771, %v937, 0
        %942 = vmatprep.subr.mxu0 0.0
        %943 = vmatpush1.xpose.msra.mxu0 %v940
        %944 = vmatprep.subr.mxu0 0.0
        %945 = vmatpush1.xpose.msra.mxu0 0.0
        %946 = vmatprep.subr.mxu0 0.0
        %947 = vmatpush1.xpose.msra.mxu0 0.0
        %948 = vmatprep.subr.mxu0 0.0
        %949 = vmatpush1.xpose.msra.mxu0 0.0
        %950 = vmatprep.subr.mxu0 0.0
        %951 = vmatpush1.xpose.msra.mxu0 0.0
        %952 = vmatprep.subr.mxu0 0.0
        %953 = vmatpush1.xpose.msra.mxu0 0.0
        %954 = vmatprep.subr.mxu0 0.0
        %955 = vmatpush1.xpose.msra.mxu0 0.0
        %956 = vmatprep.subr.mxu0 0.0
        %957 = vmatpush1.xpose.msra.mxu0 0.0
        %958 = vmatprep.subr.mxu0 0.0
        %959 = vmatpush1.xpose.msra.mxu0 0.0
        %960 = vmatprep.subr.mxu0 0.0
        %961 = vmatpush1.xpose.msra.mxu0 0.0
        %962 = vmatprep.subr.mxu0 0.0
        %963 = vmatpush1.xpose.msra.mxu0 0.0
        %964 = vmatprep.subr.mxu0 0.0
        %965 = vmatpush1.xpose.msra.mxu0 0.0
        %966 = vmatprep.subr.mxu0 0.0
        %967 = vmatpush1.xpose.msra.mxu0 0.0
        %968 = vmatprep.subr.mxu0 0.0
        %969 = vmatpush1.xpose.msra.mxu0 0.0
        %970 = vmatprep.subr.mxu0 0.0
        %971 = vmatpush1.xpose.msra.mxu0 0.0
        %972 = vmatprep.subr.mxu0 0.0
        %973 = vmatpush1.xpose.msra.mxu0 0.0
        %974 = vmatprep.subr.mxu0 0.0
        %975 = vmatpush1.xpose.msra.mxu0 0.0
        %976 = vmatprep.subr.mxu0 0.0
        %977 = vmatpush1.xpose.msra.mxu0 0.0
        %978 = vmatprep.subr.mxu0 0.0
        %979 = vmatpush1.xpose.msra.mxu0 0.0
        %980 = vmatprep.subr.mxu0 0.0
        %981 = vmatpush1.xpose.msra.mxu0 0.0
        %982 = vmatprep.subr.mxu0 0.0
        %983 = vmatpush1.xpose.msra.mxu0 0.0
        %984 = vmatprep.subr.mxu0 0.0
        %985 = vmatpush1.xpose.msra.mxu0 0.0
        %986 = vmatprep.subr.mxu0 0.0
        %987 = vmatpush1.xpose.msra.mxu0 0.0
        %988 = vmatprep.subr.mxu0 0.0
        %989 = vmatpush1.xpose.msra.mxu0 0.0
        %990 = vmatprep.subr.mxu0 0.0
        %991 = vmatpush1.xpose.msra.mxu0 0.0
        %992 = vmatprep.subr.mxu0 0.0
        %993 = vmatpush1.xpose.msra.mxu0 0.0
        %994 = vmatprep.subr.mxu0 0.0
        %995 = vmatpush1.xpose.msra.mxu0 0.0
        %996 = vmatprep.subr.mxu0 0.0
        %997 = vmatpush1.xpose.msra.mxu0 0.0
        %998 = vmatprep.subr.mxu0 0.0
        %999 = vmatpush1.xpose.msra.mxu0 0.0
        %1000 = vmatprep.subr.mxu0 0.0
        %1001 = vmatpush1.xpose.msra.mxu0 0.0
        %1002 = vmatprep.subr.mxu0 0.0
        %1003 = vmatpush1.xpose.msra.mxu0 0.0
        %1004 = vmatprep.subr.mxu0 0.0
        %1005 = vmatpush1.xpose.msra.mxu0 0.0
        %1006 = vmatprep.mubr.f32.mxu0 0.0
        %1007 = vmatmul.mubr.f32.gmra.mrb[0].mxu0 %v938
        %v1008 = vpop.f32.mrb[0].mxu0
        %v1009 = vadd.f32 0.0, %v1008
        %v1010 = vpop.f32.mrb[0].mxu0
        %1011 = vdwg.mxu0
        %v1012 = vsel %vm771, %v1009, -inf
        %1013 = vmax.xlane.f32.xlu0 %v1012
        %v1014 = vpop.xlane.xlu0 %1013
        %v1015 = vsub.f32 %v1009, %v1014
        %v1016 = vmul.f32 %v1015, 1.442695
        %v1017 = vpow.pop %v1016
        %v1018 = vsel %vm771, %v1017, 0.0
        %1019 = vadd.xlane.f32.xlu0 %v1018
        %v1020 = vpop.xlane.xlu0 %1019
        %v1021 = vrcp.pop %v1020
        %v1022 = vmul.f32 %v1017, %v1021
        %1023 = vrot.lane.b32.xlu0 %v760, 56
        %v1024 = vpop.permute.xlu0 %1023
        %v1027 = vsel %vm771, %v1022, 0
        %1029 = vmatprep.subr.mxu0 0.0
        %1030 = vmatpush1.msra.mxu0 %v1024
        %1031 = vmatprep.subr.mxu0 0.0
        %1032 = vmatpush1.msra.mxu0 0.0
        %1033 = vmatprep.subr.mxu0 0.0
        %1034 = vmatpush1.msra.mxu0 0.0
        %1035 = vmatprep.subr.mxu0 0.0
        %1036 = vmatpush1.msra.mxu0 0.0
        %1037 = vmatprep.subr.mxu0 0.0
        %1038 = vmatpush1.msra.mxu0 0.0
        %1039 = vmatprep.subr.mxu0 0.0
        %1040 = vmatpush1.msra.mxu0 0.0
        %1041 = vmatprep.subr.mxu0 0.0
        %1042 = vmatpush1.msra.mxu0 0.0
        %1043 = vmatprep.subr.mxu0 0.0
        %1044 = vmatpush1.msra.mxu0 0.0
        %1045 = vmatprep.subr.mxu0 0.0
        %1046 = vmatpush1.msra.mxu0 0.0
        %1047 = vmatprep.subr.mxu0 0.0
        %1048 = vmatpush1.msra.mxu0 0.0
        %1049 = vmatprep.subr.mxu0 0.0
        %1050 = vmatpush1.msra.mxu0 0.0
        %1051 = vmatprep.subr.mxu0 0.0
        %1052 = vmatpush1.msra.mxu0 0.0
        %1053 = vmatprep.subr.mxu0 0.0
        %1054 = vmatpush1.msra.mxu0 0.0
        %1055 = vmatprep.subr.mxu0 0.0
        %1056 = vmatpush1.msra.mxu0 0.0
        %1057 = vmatprep.subr.mxu0 0.0
        %1058 = vmatpush1.msra.mxu0 0.0
        %1059 = vmatprep.subr.mxu0 0.0
        %1060 = vmatpush1.msra.mxu0 0.0
        %1061 = vmatprep.subr.mxu0 0.0
        %1062 = vmatpush1.msra.mxu0 0.0
        %1063 = vmatprep.subr.mxu0 0.0
        %1064 = vmatpush1.msra.mxu0 0.0
        %1065 = vmatprep.subr.mxu0 0.0
        %1066 = vmatpush1.msra.mxu0 0.0
        %1067 = vmatprep.subr.mxu0 0.0
        %1068 = vmatpush1.msra.mxu0 0.0
        %1069 = vmatprep.subr.mxu0 0.0
        %1070 = vmatpush1.msra.mxu0 0.0
        %1071 = vmatprep.subr.mxu0 0.0
        %1072 = vmatpush1.msra.mxu0 0.0
        %1073 = vmatprep.subr.mxu0 0.0
        %1074 = vmatpush1.msra.mxu0 0.0
        %1075 = vmatprep.subr.mxu0 0.0
        %1076 = vmatpush1.msra.mxu0 0.0
        %1077 = vmatprep.subr.mxu0 0.0
        %1078 = vmatpush1.msra.mxu0 0.0
        %1079 = vmatprep.subr.mxu0 0.0
        %1080 = vmatpush1.msra.mxu0 0.0
        %1081 = vmatprep.subr.mxu0 0.0
        %1082 = vmatpush1.msra.mxu0 0.0
        %1083 = vmatprep.subr.mxu0 0.0
        %1084 = vmatpush1.msra.mxu0 0.0
        %1085 = vmatprep.subr.mxu0 0.0
        %1086 = vmatpush1.msra.mxu0 0.0
        %1087 = vmatprep.subr.mxu0 0.0
        %1088 = vmatpush1.msra.mxu0 0.0
        %1089 = vmatprep.subr.mxu0 0.0
        %1090 = vmatpush1.msra.mxu0 0.0
        %1091 = vmatprep.subr.mxu0 0.0
        %1092 = vmatpush1.msra.mxu0 0.0
        %1093 = vmatprep.mubr.f32.mxu0 0.0
        %1094 = vmatmul.mubr.f32.gmra.mrb[0].mxu0 %v1027
        %v1095 = vpop.f32.mrb[0].mxu0
        %v1096 = vadd.f32 0.0, %v1095
        %v1097 = vpop.f32.mrb[0].mxu0
        %1098 = vdwg.mxu0
        %v1100 = vsel %vm771, %v1096, 0
        %1102 = vmatprep.subr.mxu0 0.0
        %1103 = vmatpush1.msra.mxu0 %v765
        %1104 = vmatprep.subr.mxu0 0.0
        %1105 = vmatpush1.msra.mxu0 0.0
        %1106 = vmatprep.subr.mxu0 0.0
        %1107 = vmatpush1.msra.mxu0 0.0
        %1108 = vmatprep.subr.mxu0 0.0
        %1109 = vmatpush1.msra.mxu0 0.0
        %1110 = vmatprep.subr.mxu0 0.0
        %1111 = vmatpush1.msra.mxu0 0.0
        %1112 = vmatprep.subr.mxu0 0.0
        %1113 = vmatpush1.msra.mxu0 0.0
        %1114 = vmatprep.subr.mxu0 0.0
        %1115 = vmatpush1.msra.mxu0 0.0
        %1116 = vmatprep.subr.mxu0 0.0
        %1117 = vmatpush1.msra.mxu0 0.0
        %1118 = vmatprep.subr.mxu0 0.0
        %1119 = vmatpush1.msra.mxu0 0.0
        %1120 = vmatprep.subr.mxu0 0.0
        %1121 = vmatpush1.msra.mxu0 0.0
        %1122 = vmatprep.subr.mxu0 0.0
        %1123 = vmatpush1.msra.mxu0 0.0
        %1124 = vmatprep.subr.mxu0 0.0
        %1125 = vmatpush1.msra.mxu0 0.0
        %1126 = vmatprep.subr.mxu0 0.0
        %1127 = vmatpush1.msra.mxu0 0.0
        %1128 = vmatprep.subr.mxu0 0.0
        %1129 = vmatpush1.msra.mxu0 0.0
        %1130 = vmatprep.subr.mxu0 0.0
        %1131 = vmatpush1.msra.mxu0 0.0
        %1132 = vmatprep.subr.mxu0 0.0
        %1133 = vmatpush1.msra.mxu0 0.0
        %1134 = vmatprep.subr.mxu0 0.0
        %1135 = vmatpush1.msra.mxu0 0.0
        %1136 = vmatprep.subr.mxu0 0.0
        %1137 = vmatpush1.msra.mxu0 0.0
        %1138 = vmatprep.subr.mxu0 0.0
        %1139 = vmatpush1.msra.mxu0 0.0
        %1140 = vmatprep.subr.mxu0 0.0
        %1141 = vmatpush1.msra.mxu0 0.0
        %1142 = vmatprep.subr.mxu0 0.0
        %1143 = vmatpush1.msra.mxu0 0.0
        %1144 = vmatprep.subr.mxu0 0.0
        %1145 = vmatpush1.msra.mxu0 0.0
        %1146 = vmatprep.subr.mxu0 0.0
        %1147 = vmatpush1.msra.mxu0 0.0
        %1148 = vmatprep.subr.mxu0 0.0
        %1149 = vmatpush1.msra.mxu0 0.0
        %1150 = vmatprep.subr.mxu0 0.0
        %1151 = vmatpush1.msra.mxu0 0.0
        %1152 = vmatprep.subr.mxu0 0.0
        %1153 = vmatpush1.msra.mxu0 0.0
        %1154 = vmatprep.subr.mxu0 0.0
        %1155 = vmatpush1.msra.mxu0 0.0
        %1156 = vmatprep.subr.mxu0 0.0
        %1157 = vmatpush1.msra.mxu0 0.0
        %1158 = vmatprep.subr.mxu0 0.0
        %1159 = vmatpush1.msra.mxu0 0.0
        %1160 = vmatprep.subr.mxu0 0.0
        %1161 = vmatpush1.msra.mxu0 0.0
        %1162 = vmatprep.subr.mxu0 0.0
        %1163 = vmatpush1.msra.mxu0 0.0
        %1164 = vmatprep.subr.mxu0 0.0
        %1165 = vmatpush1.msra.mxu0 0.0
        %1166 = vmatprep.mubr.f32.mxu0 0.0
        %1167 = vmatmul.mubr.f32.gmra.mrb[0].mxu0 %v1100
        %v1168 = vpop.f32.mrb[0].mxu0
        %v1169 = vadd.f32 0.0, %v1168
        %v1170 = vpop.f32.mrb[0].mxu0
        %1171 = vdwg.mxu0
        %v1173 = vsel %vm771, %v931, 0
        %1175 = vmatprep.subr.mxu0 0.0
        %1176 = vmatpush1.msra.mxu0 %v764
        %1177 = vmatprep.subr.mxu0 0.0
        %1178 = vmatpush1.msra.mxu0 0.0
        %1179 = vmatprep.subr.mxu0 0.0
        %1180 = vmatpush1.msra.mxu0 0.0
        %1181 = vmatprep.subr.mxu0 0.0
        %1182 = vmatpush1.msra.mxu0 0.0
        %1183 = vmatprep.subr.mxu0 0.0
        %1184 = vmatpush1.msra.mxu0 0.0
        %1185 = vmatprep.subr.mxu0 0.0
        %1186 = vmatpush1.msra.mxu0 0.0
        %1187 = vmatprep.subr.mxu0 0.0
        %1188 = vmatpush1.msra.mxu0 0.0
        %1189 = vmatprep.subr.mxu0 0.0
        %1190 = vmatpush1.msra.mxu0 0.0
        %1191 = vmatprep.subr.mxu0 0.0
        %1192 = vmatpush1.msra.mxu0 0.0
        %1193 = vmatprep.subr.mxu0 0.0
        %1194 = vmatpush1.msra.mxu0 0.0
        %1195 = vmatprep.subr.mxu0 0.0
        %1196 = vmatpush1.msra.mxu0 0.0
        %1197 = vmatprep.subr.mxu0 0.0
        %1198 = vmatpush1.msra.mxu0 0.0
        %1199 = vmatprep.subr.mxu0 0.0
        %1200 = vmatpush1.msra.mxu0 0.0
        %1201 = vmatprep.subr.mxu0 0.0
        %1202 = vmatpush1.msra.mxu0 0.0
        %1203 = vmatprep.subr.mxu0 0.0
        %1204 = vmatpush1.msra.mxu0 0.0
        %1205 = vmatprep.subr.mxu0 0.0
        %1206 = vmatpush1.msra.mxu0 0.0
        %1207 = vmatprep.subr.mxu0 0.0
        %1208 = vmatpush1.msra.mxu0 0.0
        %1209 = vmatprep.subr.mxu0 0.0
        %1210 = vmatpush1.msra.mxu0 0.0
        %1211 = vmatprep.subr.mxu0 0.0
        %1212 = vmatpush1.msra.mxu0 0.0
        %1213 = vmatprep.subr.mxu0 0.0
        %1214 = vmatpush1.msra.mxu0 0.0
        %1215 = vmatprep.subr.mxu0 0.0
        %1216 = vmatpush1.msra.mxu0 0.0
        %1217 = vmatprep.subr.mxu0 0.0
        %1218 = vmatpush1.msra.mxu0 0.0
        %1219 = vmatprep.subr.mxu0 0.0
        %1220 = vmatpush1.msra.mxu0 0.0
        %1221 = vmatprep.subr.mxu0 0.0
        %1222 = vmatpush1.msra.mxu0 0.0
        %1223 = vmatprep.subr.mxu0 0.0
        %1224 = vmatpush1.msra.mxu0 0.0
        %1225 = vmatprep.subr.mxu0 0.0
        %1226 = vmatpush1.msra.mxu0 0.0
        %1227 = vmatprep.subr.mxu0 0.0
        %1228 = vmatpush1.msra.mxu0 0.0
        %1229 = vmatprep.subr.mxu0 0.0
        %1230 = vmatpush1.msra.mxu0 0.0
        %1231 = vmatprep.subr.mxu0 0.0
        %1232 = vmatpush1.msra.mxu0 0.0
        %1233 = vmatprep.subr.mxu0 0.0
        %1234 = vmatpush1.msra.mxu0 0.0
        %1235 = vmatprep.subr.mxu0 0.0
        %1236 = vmatpush1.msra.mxu0 0.0
        %1237 = vmatprep.subr.mxu0 0.0
        %1238 = vmatpush1.msra.mxu0 0.0
        %1239 = vmatprep.mubr.f32.mxu0 0.0
        %1240 = vmatmul.mubr.f32.gmra.mrb[0].mxu0 %v1173
        %v1241 = vpop.f32.mrb[0].mxu0
        %v1242 = vadd.f32 %v1169, %v1241
        %v1243 = vpop.f32.mrb[0].mxu0
        %1244 = vdwg.mxu0
        %1245 = vrot.lane.b32.xlu0 %v763, 112
        %v1246 = vpop.permute.xlu0 %1245
        %1247 = vrot.lane.b32.xlu0 %v760, 80
        %v1248 = vpop.permute.xlu0 %1247
        %v1249 = vsel %vm771, %v1246, 0
        %v1251 = vsel %vm771, %v1248, 0
        %1253 = vmatprep.subr.mxu0 0.0
        %1254 = vmatpush1.xpose.msra.mxu0 %v1251
        %1255 = vmatprep.subr.mxu0 0.0
        %1256 = vmatpush1.xpose.msra.mxu0 0.0
        %1257 = vmatprep.subr.mxu0 0.0
        %1258 = vmatpush1.xpose.msra.mxu0 0.0
        %1259 = vmatprep.subr.mxu0 0.0
        %1260 = vmatpush1.xpose.msra.mxu0 0.0
        %1261 = vmatprep.subr.mxu0 0.0
        %1262 = vmatpush1.xpose.msra.mxu0 0.0
        %1263 = vmatprep.subr.mxu0 0.0
        %1264 = vmatpush1.xpose.msra.mxu0 0.0
        %1265 = vmatprep.subr.mxu0 0.0
        %1266 = vmatpush1.xpose.msra.mxu0 0.0
        %1267 = vmatprep.subr.mxu0 0.0
        %1268 = vmatpush1.xpose.msra.mxu0 0.0
        %1269 = vmatprep.subr.mxu0 0.0
        %1270 = vmatpush1.xpose.msra.mxu0 0.0
        %1271 = vmatprep.subr.mxu0 0.0
        %1272 = vmatpush1.xpose.msra.mxu0 0.0
        %1273 = vmatprep.subr.mxu0 0.0
        %1274 = vmatpush1.xpose.msra.mxu0 0.0
        %1275 = vmatprep.subr.mxu0 0.0
        %1276 = vmatpush1.xpose.msra.mxu0 0.0
        %1277 = vmatprep.subr.mxu0 0.0
        %1278 = vmatpush1.xpose.msra.mxu0 0.0
        %1279 = vmatprep.subr.mxu0 0.0
        %1280 = vmatpush1.xpose.msra.mxu0 0.0
        %1281 = vmatprep.subr.mxu0 0.0
        %1282 = vmatpush1.xpose.msra.mxu0 0.0
        %1283 = vmatprep.subr.mxu0 0.0
        %1284 = vmatpush1.xpose.msra.mxu0 0.0
        %1285 = vmatprep.subr.mxu0 0.0
        %1286 = vmatpush1.xpose.msra.mxu0 0.0
        %1287 = vmatprep.subr.mxu0 0.0
        %1288 = vmatpush1.xpose.msra.mxu0 0.0
        %1289 = vmatprep.subr.mxu0 0.0
        %1290 = vmatpush1.xpose.msra.mxu0 0.0
        %1291 = vmatprep.subr.mxu0 0.0
        %1292 = vmatpush1.xpose.msra.mxu0 0.0
        %1293 = vmatprep.subr.mxu0 0.0
        %1294 = vmatpush1.xpose.msra.mxu0 0.0
        %1295 = vmatprep.subr.mxu0 0.0
        %1296 = vmatpush1.xpose.msra.mxu0 0.0
        %1297 = vmatprep.subr.mxu0 0.0
        %1298 = vmatpush1.xpose.msra.mxu0 0.0
        %1299 = vmatprep.subr.mxu0 0.0
        %1300 = vmatpush1.xpose.msra.mxu0 0.0
        %1301 = vmatprep.subr.mxu0 0.0
        %1302 = vmatpush1.xpose.msra.mxu0 0.0
        %1303 = vmatprep.subr.mxu0 0.0
        %1304 = vmatpush1.xpose.msra.mxu0 0.0
        %1305 = vmatprep.subr.mxu0 0.0
        %1306 = vmatpush1.xpose.msra.mxu0 0.0
        %1307 = vmatprep.subr.mxu0 0.0
        %1308 = vmatpush1.xpose.msra.mxu0 0.0
        %1309 = vmatprep.subr.mxu0 0.0
        %1310 = vmatpush1.xpose.msra.mxu0 0.0
        %1311 = vmatprep.subr.mxu0 0.0
        %1312 = vmatpush1.xpose.msra.mxu0 0.0
        %1313 = vmatprep.subr.mxu0 0.0
        %1314 = vmatpush1.xpose.msra.mxu0 0.0
        %1315 = vmatprep.subr.mxu0 0.0
        %1316 = vmatpush1.xpose.msra.mxu0 0.0
        %1317 = vmatprep.mubr.f32.mxu0 0.0
        %1318 = vmatmul.mubr.f32.gmra.mrb[0].mxu0 %v1249
        %v1319 = vpop.f32.mrb[0].mxu0
        %v1320 = vadd.f32 0.0, %v1319
        %v1321 = vpop.f32.mrb[0].mxu0
        %1322 = vdwg.mxu0
        %v1323 = vsel %vm771, %v1320, -inf
        %1324 = vmax.xlane.f32.xlu0 %v1323
        %v1325 = vpop.xlane.xlu0 %1324
        %v1326 = vsub.f32 %v1320, %v1325
        %v1327 = vmul.f32 %v1326, 1.442695
        %v1328 = vpow.pop %v1327
        %v1329 = vsel %vm771, %v1328, 0.0
        %1330 = vadd.xlane.f32.xlu0 %v1329
        %v1331 = vpop.xlane.xlu0 %1330
        %v1332 = vrcp.pop %v1331
        %v1333 = vmul.f32 %v1328, %v1332
        %1334 = vrot.lane.b32.xlu0 %v760, 48
        %v1335 = vpop.permute.xlu0 %1334
        %v1338 = vsel %vm771, %v1333, 0
        %1340 = vmatprep.subr.mxu0 0.0
        %1341 = vmatpush1.msra.mxu0 %v1335
        %1342 = vmatprep.subr.mxu0 0.0
        %1343 = vmatpush1.msra.mxu0 0.0
        %1344 = vmatprep.subr.mxu0 0.0
        %1345 = vmatpush1.msra.mxu0 0.0
        %1346 = vmatprep.subr.mxu0 0.0
        %1347 = vmatpush1.msra.mxu0 0.0
        %1348 = vmatprep.subr.mxu0 0.0
        %1349 = vmatpush1.msra.mxu0 0.0
        %1350 = vmatprep.subr.mxu0 0.0
        %1351 = vmatpush1.msra.mxu0 0.0
        %1352 = vmatprep.subr.mxu0 0.0
        %1353 = vmatpush1.msra.mxu0 0.0
        %1354 = vmatprep.subr.mxu0 0.0
        %1355 = vmatpush1.msra.mxu0 0.0
        %1356 = vmatprep.subr.mxu0 0.0
        %1357 = vmatpush1.msra.mxu0 0.0
        %1358 = vmatprep.subr.mxu0 0.0
        %1359 = vmatpush1.msra.mxu0 0.0
        %1360 = vmatprep.subr.mxu0 0.0
        %1361 = vmatpush1.msra.mxu0 0.0
        %1362 = vmatprep.subr.mxu0 0.0
        %1363 = vmatpush1.msra.mxu0 0.0
        %1364 = vmatprep.subr.mxu0 0.0
        %1365 = vmatpush1.msra.mxu0 0.0
        %1366 = vmatprep.subr.mxu0 0.0
        %1367 = vmatpush1.msra.mxu0 0.0
        %1368 = vmatprep.subr.mxu0 0.0
        %1369 = vmatpush1.msra.mxu0 0.0
        %1370 = vmatprep.subr.mxu0 0.0
        %1371 = vmatpush1.msra.mxu0 0.0
        %1372 = vmatprep.subr.mxu0 0.0
        %1373 = vmatpush1.msra.mxu0 0.0
        %1374 = vmatprep.subr.mxu0 0.0
        %1375 = vmatpush1.msra.mxu0 0.0
        %1376 = vmatprep.subr.mxu0 0.0
        %1377 = vmatpush1.msra.mxu0 0.0
        %1378 = vmatprep.subr.mxu0 0.0
        %1379 = vmatpush1.msra.mxu0 0.0
        %1380 = vmatprep.subr.mxu0 0.0
        %1381 = vmatpush1.msra.mxu0 0.0
        %1382 = vmatprep.subr.mxu0 0.0
        %1383 = vmatpush1.msra.mxu0 0.0
        %1384 = vmatprep.subr.mxu0 0.0
        %1385 = vmatpush1.msra.mxu0 0.0
        %1386 = vmatprep.subr.mxu0 0.0
        %1387 = vmatpush1.msra.mxu0 0.0
        %1388 = vmatprep.subr.mxu0 0.0
        %1389 = vmatpush1.msra.mxu0 0.0
        %1390 = vmatprep.subr.mxu0 0.0
        %1391 = vmatpush1.msra.mxu0 0.0
        %1392 = vmatprep.subr.mxu0 0.0
        %1393 = vmatpush1.msra.mxu0 0.0
        %1394 = vmatprep.subr.mxu0 0.0
        %1395 = vmatpush1.msra.mxu0 0.0
        %1396 = vmatprep.subr.mxu0 0.0
        %1397 = vmatpush1.msra.mxu0 0.0
        %1398 = vmatprep.subr.mxu0 0.0
        %1399 = vmatpush1.msra.mxu0 0.0
        %1400 = vmatprep.subr.mxu0 0.0
        %1401 = vmatpush1.msra.mxu0 0.0
        %1402 = vmatprep.subr.mxu0 0.0
        %1403 = vmatpush1.msra.mxu0 0.0
        %1404 = vmatprep.mubr.f32.mxu0 0.0
        %1405 = vmatmul.mubr.f32.gmra.mrb[0].mxu0 %v1338
        %v1406 = vpop.f32.mrb[0].mxu0
        %v1407 = vadd.f32 0.0, %v1406
        %v1408 = vpop.f32.mrb[0].mxu0
        %1409 = vdwg.mxu0
        %v1411 = vsel %vm771, %v1407, 0
        %1413 = vmatprep.subr.mxu0 0.0
        %1414 = vmatpush1.msra.mxu0 %v766
        %1415 = vmatprep.subr.mxu0 0.0
        %1416 = vmatpush1.msra.mxu0 0.0
        %1417 = vmatprep.subr.mxu0 0.0
        %1418 = vmatpush1.msra.mxu0 0.0
        %1419 = vmatprep.subr.mxu0 0.0
        %1420 = vmatpush1.msra.mxu0 0.0
        %1421 = vmatprep.subr.mxu0 0.0
        %1422 = vmatpush1.msra.mxu0 0.0
        %1423 = vmatprep.subr.mxu0 0.0
        %1424 = vmatpush1.msra.mxu0 0.0
        %1425 = vmatprep.subr.mxu0 0.0
        %1426 = vmatpush1.msra.mxu0 0.0
        %1427 = vmatprep.subr.mxu0 0.0
        %1428 = vmatpush1.msra.mxu0 0.0
        %1429 = vmatprep.subr.mxu0 0.0
        %1430 = vmatpush1.msra.mxu0 0.0
        %1431 = vmatprep.subr.mxu0 0.0
        %1432 = vmatpush1.msra.mxu0 0.0
        %1433 = vmatprep.subr.mxu0 0.0
        %1434 = vmatpush1.msra.mxu0 0.0
        %1435 = vmatprep.subr.mxu0 0.0
        %1436 = vmatpush1.msra.mxu0 0.0
        %1437 = vmatprep.subr.mxu0 0.0
        %1438 = vmatpush1.msra.mxu0 0.0
        %1439 = vmatprep.subr.mxu0 0.0
        %1440 = vmatpush1.msra.mxu0 0.0
        %1441 = vmatprep.subr.mxu0 0.0
        %1442 = vmatpush1.msra.mxu0 0.0
        %1443 = vmatprep.subr.mxu0 0.0
        %1444 = vmatpush1.msra.mxu0 0.0
        %1445 = vmatprep.subr.mxu0 0.0
        %1446 = vmatpush1.msra.mxu0 0.0
        %1447 = vmatprep.subr.mxu0 0.0
        %1448 = vmatpush1.msra.mxu0 0.0
        %1449 = vmatprep.subr.mxu0 0.0
        %1450 = vmatpush1.msra.mxu0 0.0
        %1451 = vmatprep.subr.mxu0 0.0
        %1452 = vmatpush1.msra.mxu0 0.0
        %1453 = vmatprep.subr.mxu0 0.0
        %1454 = vmatpush1.msra.mxu0 0.0
        %1455 = vmatprep.subr.mxu0 0.0
        %1456 = vmatpush1.msra.mxu0 0.0
        %1457 = vmatprep.subr.mxu0 0.0
        %1458 = vmatpush1.msra.mxu0 0.0
        %1459 = vmatprep.subr.mxu0 0.0
        %1460 = vmatpush1.msra.mxu0 0.0
        %1461 = vmatprep.subr.mxu0 0.0
        %1462 = vmatpush1.msra.mxu0 0.0
        %1463 = vmatprep.subr.mxu0 0.0
        %1464 = vmatpush1.msra.mxu0 0.0
        %1465 = vmatprep.subr.mxu0 0.0
        %1466 = vmatpush1.msra.mxu0 0.0
        %1467 = vmatprep.subr.mxu0 0.0
        %1468 = vmatpush1.msra.mxu0 0.0
        %1469 = vmatprep.subr.mxu0 0.0
        %1470 = vmatpush1.msra.mxu0 0.0
        %1471 = vmatprep.subr.mxu0 0.0
        %1472 = vmatpush1.msra.mxu0 0.0
        %1473 = vmatprep.subr.mxu0 0.0
        %1474 = vmatpush1.msra.mxu0 0.0
        %1475 = vmatprep.subr.mxu0 0.0
        %1476 = vmatpush1.msra.mxu0 0.0
        %1477 = vmatprep.mubr.f32.mxu0 0.0
        %1478 = vmatmul.mubr.f32.gmra.mrb[0].mxu0 %v1411
        %v1479 = vpop.f32.mrb[0].mxu0
        %v1480 = vadd.f32 0.0, %v1479
        %v1481 = vpop.f32.mrb[0].mxu0
        %1482 = vdwg.mxu0
        %v1483 = vadd.f32 %v1242, %v1480
        %1484 = vrot.lane.b32.xlu0 %v763, 104
        %v1485 = vpop.permute.xlu0 %1484
        %1486 = vrot.lane.b32.xlu0 %v760, 72
        %v1487 = vpop.permute.xlu0 %1486
        %v1488 = vsel %vm771, %v1485, 0
        %v1490 = vsel %vm771, %v1487, 0
        %1492 = vmatprep.subr.mxu0 0.0
        %1493 = vmatpush1.xpose.msra.mxu0 %v1490
        %1494 = vmatprep.subr.mxu0 0.0
        %1495 = vmatpush1.xpose.msra.mxu0 0.0
        %1496 = vmatprep.subr.mxu0 0.0
        %1497 = vmatpush1.xpose.msra.mxu0 0.0
        %1498 = vmatprep.subr.mxu0 0.0
        %1499 = vmatpush1.xpose.msra.mxu0 0.0
        %1500 = vmatprep.subr.mxu0 0.0
        %1501 = vmatpush1.xpose.msra.mxu0 0.0
        %1502 = vmatprep.subr.mxu0 0.0
        %1503 = vmatpush1.xpose.msra.mxu0 0.0
        %1504 = vmatprep.subr.mxu0 0.0
        %1505 = vmatpush1.xpose.msra.mxu0 0.0
        %1506 = vmatprep.subr.mxu0 0.0
        %1507 = vmatpush1.xpose.msra.mxu0 0.0
        %1508 = vmatprep.subr.mxu0 0.0
        %1509 = vmatpush1.xpose.msra.mxu0 0.0
        %1510 = vmatprep.subr.mxu0 0.0
        %1511 = vmatpush1.xpose.msra.mxu0 0.0
        %1512 = vmatprep.subr.mxu0 0.0
        %1513 = vmatpush1.xpose.msra.mxu0 0.0
        %1514 = vmatprep.subr.mxu0 0.0
        %1515 = vmatpush1.xpose.msra.mxu0 0.0
        %1516 = vmatprep.subr.mxu0 0.0
        %1517 = vmatpush1.xpose.msra.mxu0 0.0
        %1518 = vmatprep.subr.mxu0 0.0
        %1519 = vmatpush1.xpose.msra.mxu0 0.0
        %1520 = vmatprep.subr.mxu0 0.0
        %1521 = vmatpush1.xpose.msra.mxu0 0.0
        %1522 = vmatprep.subr.mxu0 0.0
        %1523 = vmatpush1.xpose.msra.mxu0 0.0
        %1524 = vmatprep.subr.mxu0 0.0
        %1525 = vmatpush1.xpose.msra.mxu0 0.0
        %1526 = vmatprep.subr.mxu0 0.0
        %1527 = vmatpush1.xpose.msra.mxu0 0.0
        %1528 = vmatprep.subr.mxu0 0.0
        %1529 = vmatpush1.xpose.msra.mxu0 0.0
        %1530 = vmatprep.subr.mxu0 0.0
        %1531 = vmatpush1.xpose.msra.mxu0 0.0
        %1532 = vmatprep.subr.mxu0 0.0
        %1533 = vmatpush1.xpose.msra.mxu0 0.0
        %1534 = vmatprep.subr.mxu0 0.0
        %1535 = vmatpush1.xpose.msra.mxu0 0.0
        %1536 = vmatprep.subr.mxu0 0.0
        %1537 = vmatpush1.xpose.msra.mxu0 0.0
        %1538 = vmatprep.subr.mxu0 0.0
        %1539 = vmatpush1.xpose.msra.mxu0 0.0
        %1540 = vmatprep.subr.mxu0 0.0
        %1541 = vmatpush1.xpose.msra.mxu0 0.0
        %1542 = vmatprep.subr.mxu0 0.0
        %1543 = vmatpush1.xpose.msra.mxu0 0.0
        %1544 = vmatprep.subr.mxu0 0.0
        %1545 = vmatpush1.xpose.msra.mxu0 0.0
        %1546 = vmatprep.subr.mxu0 0.0
        %1547 = vmatpush1.xpose.msra.mxu0 0.0
        %1548 = vmatprep.subr.mxu0 0.0
        %1549 = vmatpush1.xpose.msra.mxu0 0.0
        %1550 = vmatprep.subr.mxu0 0.0
        %1551 = vmatpush1.xpose.msra.mxu0 0.0
        %1552 = vmatprep.subr.mxu0 0.0
        %1553 = vmatpush1.xpose.msra.mxu0 0.0
        %1554 = vmatprep.subr.mxu0 0.0
        %1555 = vmatpush1.xpose.msra.mxu0 0.0
        %1556 = vmatprep.mubr.f32.mxu0 0.0
        %1557 = vmatmul.mubr.f32.gmra.mrb[0].mxu0 %v1488
        %v1558 = vpop.f32.mrb[0].mxu0
        %v1559 = vadd.f32 0.0, %v1558
        %v1560 = vpop.f32.mrb[0].mxu0
        %1561 = vdwg.mxu0
        %v1562 = vsel %vm771, %v1559, -inf
        %1563 = vmax.xlane.f32.xlu0 %v1562
        %v1564 = vpop.xlane.xlu0 %1563
        %v1565 = vsub.f32 %v1559, %v1564
        %v1566 = vmul.f32 %v1565, 1.442695
        %v1567 = vpow.pop %v1566
        %v1568 = vsel %vm771, %v1567, 0.0
        %1569 = vadd.xlane.f32.xlu0 %v1568
        %v1570 = vpop.xlane.xlu0 %1569
        %v1571 = vrcp.pop %v1570
        %v1572 = vmul.f32 %v1567, %v1571
        %1573 = vrot.lane.b32.xlu0 %v760, 40
        %v1574 = vpop.permute.xlu0 %1573
        %v1577 = vsel %vm771, %v1572, 0
        %1579 = vmatprep.subr.mxu0 0.0
        %1580 = vmatpush1.msra.mxu0 %v1574
        %1581 = vmatprep.subr.mxu0 0.0
        %1582 = vmatpush1.msra.mxu0 0.0
        %1583 = vmatprep.subr.mxu0 0.0
        %1584 = vmatpush1.msra.mxu0 0.0
        %1585 = vmatprep.subr.mxu0 0.0
        %1586 = vmatpush1.msra.mxu0 0.0
        %1587 = vmatprep.subr.mxu0 0.0
        %1588 = vmatpush1.msra.mxu0 0.0
        %1589 = vmatprep.subr.mxu0 0.0
        %1590 = vmatpush1.msra.mxu0 0.0
        %1591 = vmatprep.subr.mxu0 0.0
        %1592 = vmatpush1.msra.mxu0 0.0
        %1593 = vmatprep.subr.mxu0 0.0
        %1594 = vmatpush1.msra.mxu0 0.0
        %1595 = vmatprep.subr.mxu0 0.0
        %1596 = vmatpush1.msra.mxu0 0.0
        %1597 = vmatprep.subr.mxu0 0.0
        %1598 = vmatpush1.msra.mxu0 0.0
        %1599 = vmatprep.subr.mxu0 0.0
        %1600 = vmatpush1.msra.mxu0 0.0
        %1601 = vmatprep.subr.mxu0 0.0
        %1602 = vmatpush1.msra.mxu0 0.0
        %1603 = vmatprep.subr.mxu0 0.0
        %1604 = vmatpush1.msra.mxu0 0.0
        %1605 = vmatprep.subr.mxu0 0.0
        %1606 = vmatpush1.msra.mxu0 0.0
        %1607 = vmatprep.subr.mxu0 0.0
        %1608 = vmatpush1.msra.mxu0 0.0
        %1609 = vmatprep.subr.mxu0 0.0
        %1610 = vmatpush1.msra.mxu0 0.0
        %1611 = vmatprep.subr.mxu0 0.0
        %1612 = vmatpush1.msra.mxu0 0.0
        %1613 = vmatprep.subr.mxu0 0.0
        %1614 = vmatpush1.msra.mxu0 0.0
        %1615 = vmatprep.subr.mxu0 0.0
        %1616 = vmatpush1.msra.mxu0 0.0
        %1617 = vmatprep.subr.mxu0 0.0
        %1618 = vmatpush1.msra.mxu0 0.0
        %1619 = vmatprep.subr.mxu0 0.0
        %1620 = vmatpush1.msra.mxu0 0.0
        %1621 = vmatprep.subr.mxu0 0.0
        %1622 = vmatpush1.msra.mxu0 0.0
        %1623 = vmatprep.subr.mxu0 0.0
        %1624 = vmatpush1.msra.mxu0 0.0
        %1625 = vmatprep.subr.mxu0 0.0
        %1626 = vmatpush1.msra.mxu0 0.0
        %1627 = vmatprep.subr.mxu0 0.0
        %1628 = vmatpush1.msra.mxu0 0.0
        %1629 = vmatprep.subr.mxu0 0.0
        %1630 = vmatpush1.msra.mxu0 0.0
        %1631 = vmatprep.subr.mxu0 0.0
        %1632 = vmatpush1.msra.mxu0 0.0
        %1633 = vmatprep.subr.mxu0 0.0
        %1634 = vmatpush1.msra.mxu0 0.0
        %1635 = vmatprep.subr.mxu0 0.0
        %1636 = vmatpush1.msra.mxu0 0.0
        %1637 = vmatprep.subr.mxu0 0.0
        %1638 = vmatpush1.msra.mxu0 0.0
        %1639 = vmatprep.subr.mxu0 0.0
        %1640 = vmatpush1.msra.mxu0 0.0
        %1641 = vmatprep.subr.mxu0 0.0
        %1642 = vmatpush1.msra.mxu0 0.0
        %1643 = vmatprep.mubr.f32.mxu0 0.0
        %1644 = vmatmul.mubr.f32.gmra.mrb[0].mxu0 %v1577
        %v1645 = vpop.f32.mrb[0].mxu0
        %v1646 = vadd.f32 0.0, %v1645
        %v1647 = vpop.f32.mrb[0].mxu0
        %1648 = vdwg.mxu0
        %v1650 = vsel %vm771, %v1646, 0
        %1652 = vmatprep.subr.mxu0 0.0
        %1653 = vmatpush1.msra.mxu0 %v767
        %1654 = vmatprep.subr.mxu0 0.0
        %1655 = vmatpush1.msra.mxu0 0.0
        %1656 = vmatprep.subr.mxu0 0.0
        %1657 = vmatpush1.msra.mxu0 0.0
        %1658 = vmatprep.subr.mxu0 0.0
        %1659 = vmatpush1.msra.mxu0 0.0
        %1660 = vmatprep.subr.mxu0 0.0
        %1661 = vmatpush1.msra.mxu0 0.0
        %1662 = vmatprep.subr.mxu0 0.0
        %1663 = vmatpush1.msra.mxu0 0.0
        %1664 = vmatprep.subr.mxu0 0.0
        %1665 = vmatpush1.msra.mxu0 0.0
        %1666 = vmatprep.subr.mxu0 0.0
        %1667 = vmatpush1.msra.mxu0 0.0
        %1668 = vmatprep.subr.mxu0 0.0
        %1669 = vmatpush1.msra.mxu0 0.0
        %1670 = vmatprep.subr.mxu0 0.0
        %1671 = vmatpush1.msra.mxu0 0.0
        %1672 = vmatprep.subr.mxu0 0.0
        %1673 = vmatpush1.msra.mxu0 0.0
        %1674 = vmatprep.subr.mxu0 0.0
        %1675 = vmatpush1.msra.mxu0 0.0
        %1676 = vmatprep.subr.mxu0 0.0
        %1677 = vmatpush1.msra.mxu0 0.0
        %1678 = vmatprep.subr.mxu0 0.0
        %1679 = vmatpush1.msra.mxu0 0.0
        %1680 = vmatprep.subr.mxu0 0.0
        %1681 = vmatpush1.msra.mxu0 0.0
        %1682 = vmatprep.subr.mxu0 0.0
        %1683 = vmatpush1.msra.mxu0 0.0
        %1684 = vmatprep.subr.mxu0 0.0
        %1685 = vmatpush1.msra.mxu0 0.0
        %1686 = vmatprep.subr.mxu0 0.0
        %1687 = vmatpush1.msra.mxu0 0.0
        %1688 = vmatprep.subr.mxu0 0.0
        %1689 = vmatpush1.msra.mxu0 0.0
        %1690 = vmatprep.subr.mxu0 0.0
        %1691 = vmatpush1.msra.mxu0 0.0
        %1692 = vmatprep.subr.mxu0 0.0
        %1693 = vmatpush1.msra.mxu0 0.0
        %1694 = vmatprep.subr.mxu0 0.0
        %1695 = vmatpush1.msra.mxu0 0.0
        %1696 = vmatprep.subr.mxu0 0.0
        %1697 = vmatpush1.msra.mxu0 0.0
        %1698 = vmatprep.subr.mxu0 0.0
        %1699 = vmatpush1.msra.mxu0 0.0
        %1700 = vmatprep.subr.mxu0 0.0
        %1701 = vmatpush1.msra.mxu0 0.0
        %1702 = vmatprep.subr.mxu0 0.0
        %1703 = vmatpush1.msra.mxu0 0.0
        %1704 = vmatprep.subr.mxu0 0.0
        %1705 = vmatpush1.msra.mxu0 0.0
        %1706 = vmatprep.subr.mxu0 0.0
        %1707 = vmatpush1.msra.mxu0 0.0
        %1708 = vmatprep.subr.mxu0 0.0
        %1709 = vmatpush1.msra.mxu0 0.0
        %1710 = vmatprep.subr.mxu0 0.0
        %1711 = vmatpush1.msra.mxu0 0.0
        %1712 = vmatprep.subr.mxu0 0.0
        %1713 = vmatpush1.msra.mxu0 0.0
        %1714 = vmatprep.subr.mxu0 0.0
        %1715 = vmatpush1.msra.mxu0 0.0
        %1716 = vmatprep.mubr.f32.mxu0 0.0
        %1717 = vmatmul.mubr.f32.gmra.mrb[0].mxu0 %v1650
        %v1718 = vpop.f32.mrb[0].mxu0
        %v1719 = vadd.f32 0.0, %v1718
        %v1720 = vpop.f32.mrb[0].mxu0
        %1721 = vdwg.mxu0
        %v1722 = vadd.f32 %v1483, %v1719
        %v1723 = vadd.f32 %v653, %v1722
        %v1724 = vsel %vm655, %v1723, 0.0
        %1725 = vadd.xlane.f32.xlu0 %v1724
        %v1726 = vpop.xlane.xlu0 %1725
        %v1727 = vmul.f32 %v1726, %v659
        %v1728 = vsub.f32 %v1723, %v1727
        %v1729 = vmul.f32 %v1728, %v1728
        %v1730 = vsel %vm655, %v1729, 0.0
        %1731 = vadd.xlane.f32.xlu0 %v1730
        %v1732 = vpop.xlane.xlu0 %1731
        %v1733 = vmul.f32 %v1732, %v659
        %v1734 = vadd.f32 %v1733, 1e-05
        %v1735 = vrsqrt.pop %v1734
        %v1736 = vmul.f32 %v1728, %v1735
        %v1737 = vld [vmem:[%s4] sm:$0x1]
        %v1739 = vlaneseq
        %v1740 = vshrl.u32 %v1739, 7
        %v1741 = vsub.s32 0, %v1740
        %v1742 = vrot.slane %v1737, %v1741
        %v1744 = vmul.f32 %v1736, %v1742
        %v1745 = vld [vmem:[%s5] sm:$0x1]
        %v1747 = vlaneseq
        %v1748 = vshrl.u32 %v1747, 7
        %v1749 = vsub.s32 0, %v1748
        %v1750 = vrot.slane %v1745, %v1749
        %v1752 = vadd.f32 %v1744, %v1750
        %v1753 = vld [vmem:[%s10] sm:$0xff]
        %v1754 = vld [vmem:[%s10 + $0x8] sm:$0xff]
        %v1755 = vld [vmem:[%s10 + $0x10] sm:$0xff]
        %v1756 = vld [vmem:[%s10 + $0x18] sm:$0xff]
        %v1758 = vsel %vm655, %v1752, 0
        %1760 = vmatprep.subr.mxu0 0.0
        %1761 = vmatpush1.msra.mxu0 %v1753
        %1762 = vmatprep.subr.mxu0 0.0
        %1763 = vmatpush1.msra.mxu0 %v1754
        %1764 = vmatprep.subr.mxu0 0.0
        %1765 = vmatpush1.msra.mxu0 %v1755
        %1766 = vmatprep.subr.mxu0 0.0
        %1767 = vmatpush1.msra.mxu0 %v1756
        %1768 = vmatprep.subr.mxu0 0.0
        %1769 = vmatpush1.msra.mxu0 0.0
        %1770 = vmatprep.subr.mxu0 0.0
        %1771 = vmatpush1.msra.mxu0 0.0
        %1772 = vmatprep.subr.mxu0 0.0
        %1773 = vmatpush1.msra.mxu0 0.0
        %1774 = vmatprep.subr.mxu0 0.0
        %1775 = vmatpush1.msra.mxu0 0.0
        %1776 = vmatprep.subr.mxu0 0.0
        %1777 = vmatpush1.msra.mxu0 0.0
        %1778 = vmatprep.subr.mxu0 0.0
        %1779 = vmatpush1.msra.mxu0 0.0
        %1780 = vmatprep.subr.mxu0 0.0
        %1781 = vmatpush1.msra.mxu0 0.0
        %1782 = vmatprep.subr.mxu0 0.0
        %1783 = vmatpush1.msra.mxu0 0.0
        %1784 = vmatprep.subr.mxu0 0.0
        %1785 = vmatpush1.msra.mxu0 0.0
        %1786 = vmatprep.subr.mxu0 0.0
        %1787 = vmatpush1.msra.mxu0 0.0
        %1788 = vmatprep.subr.mxu0 0.0
        %1789 = vmatpush1.msra.mxu0 0.0
        %1790 = vmatprep.subr.mxu0 0.0
        %1791 = vmatpush1.msra.mxu0 0.0
        %1792 = vmatprep.subr.mxu0 0.0
        %1793 = vmatpush1.msra.mxu0 0.0
        %1794 = vmatprep.subr.mxu0 0.0
        %1795 = vmatpush1.msra.mxu0 0.0
        %1796 = vmatprep.subr.mxu0 0.0
        %1797 = vmatpush1.msra.mxu0 0.0
        %1798 = vmatprep.subr.mxu0 0.0
        %1799 = vmatpush1.msra.mxu0 0.0
        %1800 = vmatprep.subr.mxu0 0.0
        %1801 = vmatpush1.msra.mxu0 0.0
        %1802 = vmatprep.subr.mxu0 0.0
        %1803 = vmatpush1.msra.mxu0 0.0
        %1804 = vmatprep.subr.mxu0 0.0
        %1805 = vmatpush1.msra.mxu0 0.0
        %1806 = vmatprep.subr.mxu0 0.0
        %1807 = vmatpush1.msra.mxu0 0.0
        %1808 = vmatprep.subr.mxu0 0.0
        %1809 = vmatpush1.msra.mxu0 0.0
        %1810 = vmatprep.subr.mxu0 0.0
        %1811 = vmatpush1.msra.mxu0 0.0
        %1812 = vmatprep.subr.mxu0 0.0
        %1813 = vmatpush1.msra.mxu0 0.0
        %1814 = vmatprep.subr.mxu0 0.0
        %1815 = vmatpush1.msra.mxu0 0.0
        %1816 = vmatprep.subr.mxu0 0.0
        %1817 = vmatpush1.msra.mxu0 0.0
        %1818 = vmatprep.subr.mxu0 0.0
        %1819 = vmatpush1.msra.mxu0 0.0
        %1820 = vmatprep.subr.mxu0 0.0
        %1821 = vmatpush1.msra.mxu0 0.0
        %1822 = vmatprep.subr.mxu0 0.0
        %1823 = vmatpush1.msra.mxu0 0.0
        %1824 = vmatprep.mubr.f32.mxu0 0.0
        %1825 = vmatmul.mubr.f32.gmra.mrb[0].mxu0 %v1758
        %v1826 = vpop.f32.mrb[0].mxu0
        %v1827 = vadd.f32 0.0, %v1826
        %v1828 = vpop.f32.mrb[0].mxu0
        %1829 = vdwg.mxu0
        %v1830 = vmul.f32 %v1827, 0.35355338
        %v1831 = vld [vmem:[%s11] sm:$0xff]
        %v1832 = vld [vmem:[%s11 + $0x8] sm:$0xff]
        %v1833 = vld [vmem:[%s11 + $0x10] sm:$0xff]
        %v1834 = vld [vmem:[%s11 + $0x18] sm:$0xff]
        %v1836 = vsel %vm655, %v654, 0
        %1838 = vmatprep.subr.mxu0 0.0
        %1839 = vmatpush1.msra.mxu0 %v1831
        %1840 = vmatprep.subr.mxu0 0.0
        %1841 = vmatpush1.msra.mxu0 %v1832
        %1842 = vmatprep.subr.mxu0 0.0
        %1843 = vmatpush1.msra.mxu0 %v1833
        %1844 = vmatprep.subr.mxu0 0.0
        %1845 = vmatpush1.msra.mxu0 %v1834
        %1846 = vmatprep.subr.mxu0 0.0
        %1847 = vmatpush1.msra.mxu0 0.0
        %1848 = vmatprep.subr.mxu0 0.0
        %1849 = vmatpush1.msra.mxu0 0.0
        %1850 = vmatprep.subr.mxu0 0.0
        %1851 = vmatpush1.msra.mxu0 0.0
        %1852 = vmatprep.subr.mxu0 0.0
        %1853 = vmatpush1.msra.mxu0 0.0
        %1854 = vmatprep.subr.mxu0 0.0
        %1855 = vmatpush1.msra.mxu0 0.0
        %1856 = vmatprep.subr.mxu0 0.0
        %1857 = vmatpush1.msra.mxu0 0.0
        %1858 = vmatprep.subr.mxu0 0.0
        %1859 = vmatpush1.msra.mxu0 0.0
        %1860 = vmatprep.subr.mxu0 0.0
        %1861 = vmatpush1.msra.mxu0 0.0
        %1862 = vmatprep.subr.mxu0 0.0
        %1863 = vmatpush1.msra.mxu0 0.0
        %1864 = vmatprep.subr.mxu0 0.0
        %1865 = vmatpush1.msra.mxu0 0.0
        %1866 = vmatprep.subr.mxu0 0.0
        %1867 = vmatpush1.msra.mxu0 0.0
        %1868 = vmatprep.subr.mxu0 0.0
        %1869 = vmatpush1.msra.mxu0 0.0
        %1870 = vmatprep.subr.mxu0 0.0
        %1871 = vmatpush1.msra.mxu0 0.0
        %1872 = vmatprep.subr.mxu0 0.0
        %1873 = vmatpush1.msra.mxu0 0.0
        %1874 = vmatprep.subr.mxu0 0.0
        %1875 = vmatpush1.msra.mxu0 0.0
        %1876 = vmatprep.subr.mxu0 0.0
        %1877 = vmatpush1.msra.mxu0 0.0
        %1878 = vmatprep.subr.mxu0 0.0
        %1879 = vmatpush1.msra.mxu0 0.0
        %1880 = vmatprep.subr.mxu0 0.0
        %1881 = vmatpush1.msra.mxu0 0.0
        %1882 = vmatprep.subr.mxu0 0.0
        %1883 = vmatpush1.msra.mxu0 0.0
        %1884 = vmatprep.subr.mxu0 0.0
        %1885 = vmatpush1.msra.mxu0 0.0
        %1886 = vmatprep.subr.mxu0 0.0
        %1887 = vmatpush1.msra.mxu0 0.0
        %1888 = vmatprep.subr.mxu0 0.0
        %1889 = vmatpush1.msra.mxu0 0.0
        %1890 = vmatprep.subr.mxu0 0.0
        %1891 = vmatpush1.msra.mxu0 0.0
        %1892 = vmatprep.subr.mxu0 0.0
        %1893 = vmatpush1.msra.mxu0 0.0
        %1894 = vmatprep.subr.mxu0 0.0
        %1895 = vmatpush1.msra.mxu0 0.0
        %1896 = vmatprep.subr.mxu0 0.0
        %1897 = vmatpush1.msra.mxu0 0.0
        %1898 = vmatprep.subr.mxu0 0.0
        %1899 = vmatpush1.msra.mxu0 0.0
        %1900 = vmatprep.subr.mxu0 0.0
        %1901 = vmatpush1.msra.mxu0 0.0
        %1902 = vmatprep.mubr.f32.mxu0 0.0
        %1903 = vmatmul.mubr.f32.gmra.mrb[0].mxu0 %v1836
        %v1904 = vpop.f32.mrb[0].mxu0
        %v1905 = vadd.f32 0.0, %v1904
        %v1906 = vpop.f32.mrb[0].mxu0
        %1907 = vdwg.mxu0
        %v1908 = vld [vmem:[%s12] sm:$0xff]
        %v1909 = vld [vmem:[%s12 + $0x8] sm:$0xff]
        %v1910 = vld [vmem:[%s12 + $0x10] sm:$0xff]
        %v1911 = vld [vmem:[%s12 + $0x18] sm:$0xff]
        %v1913 = vsel %vm771, %v1830, 0
        %v1916 = vsel %vm771, %v1905, 0
        %1918 = vmatprep.subr.mxu0 0.0
        %1919 = vmatpush1.xpose.msra.mxu0 %v1916
        %1920 = vmatprep.subr.mxu0 0.0
        %1921 = vmatpush1.xpose.msra.mxu0 0.0
        %1922 = vmatprep.subr.mxu0 0.0
        %1923 = vmatpush1.xpose.msra.mxu0 0.0
        %1924 = vmatprep.subr.mxu0 0.0
        %1925 = vmatpush1.xpose.msra.mxu0 0.0
        %1926 = vmatprep.subr.mxu0 0.0
        %1927 = vmatpush1.xpose.msra.mxu0 0.0
        %1928 = vmatprep.subr.mxu0 0.0
        %1929 = vmatpush1.xpose.msra.mxu0 0.0
        %1930 = vmatprep.subr.mxu0 0.0
        %1931 = vmatpush1.xpose.msra.mxu0 0.0
        %1932 = vmatprep.subr.mxu0 0.0
        %1933 = vmatpush1.xpose.msra.mxu0 0.0
        %1934 = vmatprep.subr.mxu0 0.0
        %1935 = vmatpush1.xpose.msra.mxu0 0.0
        %1936 = vmatprep.subr.mxu0 0.0
        %1937 = vmatpush1.xpose.msra.mxu0 0.0
        %1938 = vmatprep.subr.mxu0 0.0
        %1939 = vmatpush1.xpose.msra.mxu0 0.0
        %1940 = vmatprep.subr.mxu0 0.0
        %1941 = vmatpush1.xpose.msra.mxu0 0.0
        %1942 = vmatprep.subr.mxu0 0.0
        %1943 = vmatpush1.xpose.msra.mxu0 0.0
        %1944 = vmatprep.subr.mxu0 0.0
        %1945 = vmatpush1.xpose.msra.mxu0 0.0
        %1946 = vmatprep.subr.mxu0 0.0
        %1947 = vmatpush1.xpose.msra.mxu0 0.0
        %1948 = vmatprep.subr.mxu0 0.0
        %1949 = vmatpush1.xpose.msra.mxu0 0.0
        %1950 = vmatprep.subr.mxu0 0.0
        %1951 = vmatpush1.xpose.msra.mxu0 0.0
        %1952 = vmatprep.subr.mxu0 0.0
        %1953 = vmatpush1.xpose.msra.mxu0 0.0
        %1954 = vmatprep.subr.mxu0 0.0
        %1955 = vmatpush1.xpose.msra.mxu0 0.0
        %1956 = vmatprep.subr.mxu0 0.0
        %1957 = vmatpush1.xpose.msra.mxu0 0.0
        %1958 = vmatprep.subr.mxu0 0.0
        %1959 = vmatpush1.xpose.msra.mxu0 0.0
        %1960 = vmatprep.subr.mxu0 0.0
        %1961 = vmatpush1.xpose.msra.mxu0 0.0
        %1962 = vmatprep.subr.mxu0 0.0
        %1963 = vmatpush1.xpose.msra.mxu0 0.0
        %1964 = vmatprep.subr.mxu0 0.0
        %1965 = vmatpush1.xpose.msra.mxu0 0.0
        %1966 = vmatprep.subr.mxu0 0.0
        %1967 = vmatpush1.xpose.msra.mxu0 0.0
        %1968 = vmatprep.subr.mxu0 0.0
        %1969 = vmatpush1.xpose.msra.mxu0 0.0
        %1970 = vmatprep.subr.mxu0 0.0
        %1971 = vmatpush1.xpose.msra.mxu0 0.0
        %1972 = vmatprep.subr.mxu0 0.0
        %1973 = vmatpush1.xpose.msra.mxu0 0.0
        %1974 = vmatprep.subr.mxu0 0.0
        %1975 = vmatpush1.xpose.msra.mxu0 0.0
        %1976 = vmatprep.subr.mxu0 0.0
        %1977 = vmatpush1.xpose.msra.mxu0 0.0
        %1978 = vmatprep.subr.mxu0 0.0
        %1979 = vmatpush1.xpose.msra.mxu0 0.0
        %1980 = vmatprep.subr.mxu0 0.0
        %1981 = vmatpush1.xpose.msra.mxu0 0.0
        %1982 = vmatprep.mubr.f32.mxu0 0.0
        %1983 = vmatmul.mubr.f32.gmra.mrb[0].mxu0 %v1913
        %v1984 = vpop.f32.mrb[0].mxu0
        %v1985 = vadd.f32 0.0, %v1984
        %v1986 = vpop.f32.mrb[0].mxu0
        %1987 = vdwg.mxu0
        %1988 = vst.msk [vmem:[%s652] sm:$0xff] %vm771, %v1985
        %v1989 = vsel %vm771, %v1985, -inf
        %1990 = vmax.xlane.f32.xlu0 %v1989
        %v1991 = vpop.xlane.xlu0 %1990
        %v1992 = vsub.f32 %v1985, %v1991
        %v1993 = vmul.f32 %v1992, 1.442695
        %v1994 = vpow.pop %v1993
        %v1995 = vsel %vm771, %v1994, 0.0
        %1996 = vadd.xlane.f32.xlu0 %v1995
        %v1997 = vpop.xlane.xlu0 %1996
        %v1998 = vrcp.pop %v1997
        %v1999 = vmul.f32 %v1994, %v1998
        %2000 = vrot.lane.b32.xlu0 %v1905, 96
        %v2001 = vpop.permute.xlu0 %2000
        %v2004 = vsel %vm771, %v1999, 0
        %2006 = vmatprep.subr.mxu0 0.0
        %2007 = vmatpush1.msra.mxu0 %v2001
        %2008 = vmatprep.subr.mxu0 0.0
        %2009 = vmatpush1.msra.mxu0 0.0
        %2010 = vmatprep.subr.mxu0 0.0
        %2011 = vmatpush1.msra.mxu0 0.0
        %2012 = vmatprep.subr.mxu0 0.0
        %2013 = vmatpush1.msra.mxu0 0.0
        %2014 = vmatprep.subr.mxu0 0.0
        %2015 = vmatpush1.msra.mxu0 0.0
        %2016 = vmatprep.subr.mxu0 0.0
        %2017 = vmatpush1.msra.mxu0 0.0
        %2018 = vmatprep.subr.mxu0 0.0
        %2019 = vmatpush1.msra.mxu0 0.0
        %2020 = vmatprep.subr.mxu0 0.0
        %2021 = vmatpush1.msra.mxu0 0.0
        %2022 = vmatprep.subr.mxu0 0.0
        %2023 = vmatpush1.msra.mxu0 0.0
        %2024 = vmatprep.subr.mxu0 0.0
        %2025 = vmatpush1.msra.mxu0 0.0
        %2026 = vmatprep.subr.mxu0 0.0
        %2027 = vmatpush1.msra.mxu0 0.0
        %2028 = vmatprep.subr.mxu0 0.0
        %2029 = vmatpush1.msra.mxu0 0.0
        %2030 = vmatprep.subr.mxu0 0.0
        %2031 = vmatpush1.msra.mxu0 0.0
        %2032 = vmatprep.subr.mxu0 0.0
        %2033 = vmatpush1.msra.mxu0 0.0
        %2034 = vmatprep.subr.mxu0 0.0
        %2035 = vmatpush1.msra.mxu0 0.0
        %2036 = vmatprep.subr.mxu0 0.0
        %2037 = vmatpush1.msra.mxu0 0.0
        %2038 = vmatprep.subr.mxu0 0.0
        %2039 = vmatpush1.msra.mxu0 0.0
        %2040 = vmatprep.subr.mxu0 0.0
        %2041 = vmatpush1.msra.mxu0 0.0
        %2042 = vmatprep.subr.mxu0 0.0
        %2043 = vmatpush1.msra.mxu0 0.0
        %2044 = vmatprep.subr.mxu0 0.0
        %2045 = vmatpush1.msra.mxu0 0.0
        %2046 = vmatprep.subr.mxu0 0.0
        %2047 = vmatpush1.msra.mxu0 0.0
        %2048 = vmatprep.subr.mxu0 0.0
        %2049 = vmatpush1.msra.mxu0 0.0
        %2050 = vmatprep.subr.mxu0 0.0
        %2051 = vmatpush1.msra.mxu0 0.0
        %2052 = vmatprep.subr.mxu0 0.0
        %2053 = vmatpush1.msra.mxu0 0.0
        %2054 = vmatprep.subr.mxu0 0.0
        %2055 = vmatpush1.msra.mxu0 0.0
        %2056 = vmatprep.subr.mxu0 0.0
        %2057 = vmatpush1.msra.mxu0 0.0
        %2058 = vmatprep.subr.mxu0 0.0
        %2059 = vmatpush1.msra.mxu0 0.0
        %2060 = vmatprep.subr.mxu0 0.0
        %2061 = vmatpush1.msra.mxu0 0.0
        %2062 = vmatprep.subr.mxu0 0.0
        %2063 = vmatpush1.msra.mxu0 0.0
        %2064 = vmatprep.subr.mxu0 0.0
        %2065 = vmatpush1.msra.mxu0 0.0
        %2066 = vmatprep.subr.mxu0 0.0
        %2067 = vmatpush1.msra.mxu0 0.0
        %2068 = vmatprep.subr.mxu0 0.0
        %2069 = vmatpush1.msra.mxu0 0.0
        %2070 = vmatprep.mubr.f32.mxu0 0.0
        %2071 = vmatmul.mubr.f32.gmra.mrb[0].mxu0 %v2004
        %v2072 = vpop.f32.mrb[0].mxu0
        %v2073 = vadd.f32 0.0, %v2072
        %v2074 = vpop.f32.mrb[0].mxu0
        %2075 = vdwg.mxu0
        %2076 = vrot.lane.b32.xlu0 %v1830, 120
        %v2077 = vpop.permute.xlu0 %2076
        %2078 = vrot.lane.b32.xlu0 %v1905, 120
        %v2079 = vpop.permute.xlu0 %2078
        %v2080 = vsel %vm771, %v2077, 0
        %v2082 = vsel %vm771, %v2079, 0
        %2084 = vmatprep.subr.mxu0 0.0
        %2085 = vmatpush1.xpose.msra.mxu0 %v2082
        %2086 = vmatprep.subr.mxu0 0.0
        %2087 = vmatpush1.xpose.msra.mxu0 0.0
        %2088 = vmatprep.subr.mxu0 0.0
        %2089 = vmatpush1.xpose.msra.mxu0 0.0
        %2090 = vmatprep.subr.mxu0 0.0
        %2091 = vmatpush1.xpose.msra.mxu0 0.0
        %2092 = vmatprep.subr.mxu0 0.0
        %2093 = vmatpush1.xpose.msra.mxu0 0.0
        %2094 = vmatprep.subr.mxu0 0.0
        %2095 = vmatpush1.xpose.msra.mxu0 0.0
        %2096 = vmatprep.subr.mxu0 0.0
        %2097 = vmatpush1.xpose.msra.mxu0 0.0
        %2098 = vmatprep.subr.mxu0 0.0
        %2099 = vmatpush1.xpose.msra.mxu0 0.0
        %2100 = vmatprep.subr.mxu0 0.0
        %2101 = vmatpush1.xpose.msra.mxu0 0.0
        %2102 = vmatprep.subr.mxu0 0.0
        %2103 = vmatpush1.xpose.msra.mxu0 0.0
        %2104 = vmatprep.subr.mxu0 0.0
        %2105 = vmatpush1.xpose.msra.mxu0 0.0
        %2106 = vmatprep.subr.mxu0 0.0
        %2107 = vmatpush1.xpose.msra.mxu0 0.0
        %2108 = vmatprep.subr.mxu0 0.0
        %2109 = vmatpush1.xpose.msra.mxu0 0.0
        %2110 = vmatprep.subr.mxu0 0.0
        %2111 = vmatpush1.xpose.msra.mxu0 0.0
        %2112 = vmatprep.subr.mxu0 0.0
        %2113 = vmatpush1.xpose.msra.mxu0 0.0
        %2114 = vmatprep.subr.mxu0 0.0
        %2115 = vmatpush1.xpose.msra.mxu0 0.0
        %2116 = vmatprep.subr.mxu0 0.0
        %2117 = vmatpush1.xpose.msra.mxu0 0.0
        %2118 = vmatprep.subr.mxu0 0.0
        %2119 = vmatpush1.xpose.msra.mxu0 0.0
        %2120 = vmatprep.subr.mxu0 0.0
        %2121 = vmatpush1.xpose.msra.mxu0 0.0
        %2122 = vmatprep.subr.mxu0 0.0
        %2123 = vmatpush1.xpose.msra.mxu0 0.0
        %2124 = vmatprep.subr.mxu0 0.0
        %2125 = vmatpush1.xpose.msra.mxu0 0.0
        %2126 = vmatprep.subr.mxu0 0.0
        %2127 = vmatpush1.xpose.msra.mxu0 0.0
        %2128 = vmatprep.subr.mxu0 0.0
        %2129 = vmatpush1.xpose.msra.mxu0 0.0
        %2130 = vmatprep.subr.mxu0 0.0
        %2131 = vmatpush1.xpose.msra.mxu0 0.0
        %2132 = vmatprep.subr.mxu0 0.0
        %2133 = vmatpush1.xpose.msra.mxu0 0.0
        %2134 = vmatprep.subr.mxu0 0.0
        %2135 = vmatpush1.xpose.msra.mxu0 0.0
        %2136 = vmatprep.subr.mxu0 0.0
        %2137 = vmatpush1.xpose.msra.mxu0 0.0
        %2138 = vmatprep.subr.mxu0 0.0
        %2139 = vmatpush1.xpose.msra.mxu0 0.0
        %2140 = vmatprep.subr.mxu0 0.0
        %2141 = vmatpush1.xpose.msra.mxu0 0.0
        %2142 = vmatprep.subr.mxu0 0.0
        %2143 = vmatpush1.xpose.msra.mxu0 0.0
        %2144 = vmatprep.subr.mxu0 0.0
        %2145 = vmatpush1.xpose.msra.mxu0 0.0
        %2146 = vmatprep.subr.mxu0 0.0
        %2147 = vmatpush1.xpose.msra.mxu0 0.0
        %2148 = vmatprep.mubr.f32.mxu0 0.0
        %2149 = vmatmul.mubr.f32.gmra.mrb[0].mxu0 %v2080
        %v2150 = vpop.f32.mrb[0].mxu0
        %v2151 = vadd.f32 0.0, %v2150
        %v2152 = vpop.f32.mrb[0].mxu0
        %2153 = vdwg.mxu0
        %2155 = vrot.lane.b32.xlu0 %v2151, 8
        %v2156 = vpop.permute.xlu0 %2155
        %vm2158 = vcmask 130112
        %2159 = vst.msk [vmem:[%s652] sm:$0xff] %vm2158, %v2156
        %v2160 = vsel %vm771, %v2151, -inf
        %2161 = vmax.xlane.f32.xlu0 %v2160
        %v2162 = vpop.xlane.xlu0 %2161
        %v2163 = vsub.f32 %v2151, %v2162
        %v2164 = vmul.f32 %v2163, 1.442695
        %v2165 = vpow.pop %v2164
        %v2166 = vsel %vm771, %v2165, 0.0
        %2167 = vadd.xlane.f32.xlu0 %v2166
        %v2168 = vpop.xlane.xlu0 %2167
        %v2169 = vrcp.pop %v2168
        %v2170 = vmul.f32 %v2165, %v2169
        %2171 = vrot.lane.b32.xlu0 %v1905, 88
        %v2172 = vpop.permute.xlu0 %2171
        %v2175 = vsel %vm771, %v2170, 0
        %2177 = vmatprep.subr.mxu0 0.0
        %2178 = vmatpush1.msra.mxu0 %v2172
        %2179 = vmatprep.subr.mxu0 0.0
        %2180 = vmatpush1.msra.mxu0 0.0
        %2181 = vmatprep.subr.mxu0 0.0
        %2182 = vmatpush1.msra.mxu0 0.0
        %2183 = vmatprep.subr.mxu0 0.0
        %2184 = vmatpush1.msra.mxu0 0.0
        %2185 = vmatprep.subr.mxu0 0.0
        %2186 = vmatpush1.msra.mxu0 0.0
        %2187 = vmatprep.subr.mxu0 0.0
        %2188 = vmatpush1.msra.mxu0 0.0
        %2189 = vmatprep.subr.mxu0 0.0
        %2190 = vmatpush1.msra.mxu0 0.0
        %2191 = vmatprep.subr.mxu0 0.0
        %2192 = vmatpush1.msra.mxu0 0.0
        %2193 = vmatprep.subr.mxu0 0.0
        %2194 = vmatpush1.msra.mxu0 0.0
        %2195 = vmatprep.subr.mxu0 0.0
        %2196 = vmatpush1.msra.mxu0 0.0
        %2197 = vmatprep.subr.mxu0 0.0
        %2198 = vmatpush1.msra.mxu0 0.0
        %2199 = vmatprep.subr.mxu0 0.0
        %2200 = vmatpush1.msra.mxu0 0.0
        %2201 = vmatprep.subr.mxu0 0.0
        %2202 = vmatpush1.msra.mxu0 0.0
        %2203 = vmatprep.subr.mxu0 0.0
        %2204 = vmatpush1.msra.mxu0 0.0
        %2205 = vmatprep.subr.mxu0 0.0
        %2206 = vmatpush1.msra.mxu0 0.0
        %2207 = vmatprep.subr.mxu0 0.0
        %2208 = vmatpush1.msra.mxu0 0.0
        %2209 = vmatprep.subr.mxu0 0.0
        %2210 = vmatpush1.msra.mxu0 0.0
        %2211 = vmatprep.subr.mxu0 0.0
        %2212 = vmatpush1.msra.mxu0 0.0
        %2213 = vmatprep.subr.mxu0 0.0
        %2214 = vmatpush1.msra.mxu0 0.0
        %2215 = vmatprep.subr.mxu0 0.0
        %2216 = vmatpush1.msra.mxu0 0.0
        %2217 = vmatprep.subr.mxu0 0.0
        %2218 = vmatpush1.msra.mxu0 0.0
        %2219 = vmatprep.subr.mxu0 0.0
        %2220 = vmatpush1.msra.mxu0 0.0
        %2221 = vmatprep.subr.mxu0 0.0
        %2222 = vmatpush1.msra.mxu0 0.0
        %2223 = vmatprep.subr.mxu0 0.0
        %2224 = vmatpush1.msra.mxu0 0.0
        %2225 = vmatprep.subr.mxu0 0.0
        %2226 = vmatpush1.msra.mxu0 0.0
        %2227 = vmatprep.subr.mxu0 0.0
        %2228 = vmatpush1.msra.mxu0 0.0
        %2229 = vmatprep.subr.mxu0 0.0
        %2230 = vmatpush1.msra.mxu0 0.0
        %2231 = vmatprep.subr.mxu0 0.0
        %2232 = vmatpush1.msra.mxu0 0.0
        %2233 = vmatprep.subr.mxu0 0.0
        %2234 = vmatpush1.msra.mxu0 0.0
        %2235 = vmatprep.subr.mxu0 0.0
        %2236 = vmatpush1.msra.mxu0 0.0
        %2237 = vmatprep.subr.mxu0 0.0
        %2238 = vmatpush1.msra.mxu0 0.0
        %2239 = vmatprep.subr.mxu0 0.0
        %2240 = vmatpush1.msra.mxu0 0.0
        %2241 = vmatprep.mubr.f32.mxu0 0.0
        %2242 = vmatmul.mubr.f32.gmra.mrb[0].mxu0 %v2175
        %v2243 = vpop.f32.mrb[0].mxu0
        %v2244 = vadd.f32 0.0, %v2243
        %v2245 = vpop.f32.mrb[0].mxu0
        %2246 = vdwg.mxu0
        %v2248 = vsel %vm771, %v2244, 0
        %2250 = vmatprep.subr.mxu0 0.0
        %2251 = vmatpush1.msra.mxu0 %v1909
        %2252 = vmatprep.subr.mxu0 0.0
        %2253 = vmatpush1.msra.mxu0 0.0
        %2254 = vmatprep.subr.mxu0 0.0
        %2255 = vmatpush1.msra.mxu0 0.0
        %2256 = vmatprep.subr.mxu0 0.0
        %2257 = vmatpush1.msra.mxu0 0.0
        %2258 = vmatprep.subr.mxu0 0.0
        %2259 = vmatpush1.msra.mxu0 0.0
        %2260 = vmatprep.subr.mxu0 0.0
        %2261 = vmatpush1.msra.mxu0 0.0
        %2262 = vmatprep.subr.mxu0 0.0
        %2263 = vmatpush1.msra.mxu0 0.0
        %2264 = vmatprep.subr.mxu0 0.0
        %2265 = vmatpush1.msra.mxu0 0.0
        %2266 = vmatprep.subr.mxu0 0.0
        %2267 = vmatpush1.msra.mxu0 0.0
        %2268 = vmatprep.subr.mxu0 0.0
        %2269 = vmatpush1.msra.mxu0 0.0
        %2270 = vmatprep.subr.mxu0 0.0
        %2271 = vmatpush1.msra.mxu0 0.0
        %2272 = vmatprep.subr.mxu0 0.0
        %2273 = vmatpush1.msra.mxu0 0.0
        %2274 = vmatprep.subr.mxu0 0.0
        %2275 = vmatpush1.msra.mxu0 0.0
        %2276 = vmatprep.subr.mxu0 0.0
        %2277 = vmatpush1.msra.mxu0 0.0
        %2278 = vmatprep.subr.mxu0 0.0
        %2279 = vmatpush1.msra.mxu0 0.0
        %2280 = vmatprep.subr.mxu0 0.0
        %2281 = vmatpush1.msra.mxu0 0.0
        %2282 = vmatprep.subr.mxu0 0.0
        %2283 = vmatpush1.msra.mxu0 0.0
        %2284 = vmatprep.subr.mxu0 0.0
        %2285 = vmatpush1.msra.mxu0 0.0
        %2286 = vmatprep.subr.mxu0 0.0
        %2287 = vmatpush1.msra.mxu0 0.0
        %2288 = vmatprep.subr.mxu0 0.0
        %2289 = vmatpush1.msra.mxu0 0.0
        %2290 = vmatprep.subr.mxu0 0.0
        %2291 = vmatpush1.msra.mxu0 0.0
        %2292 = vmatprep.subr.mxu0 0.0
        %2293 = vmatpush1.msra.mxu0 0.0
        %2294 = vmatprep.subr.mxu0 0.0
        %2295 = vmatpush1.msra.mxu0 0.0
        %2296 = vmatprep.subr.mxu0 0.0
        %2297 = vmatpush1.msra.mxu0 0.0
        %2298 = vmatprep.subr.mxu0 0.0
        %2299 = vmatpush1.msra.mxu0 0.0
        %2300 = vmatprep.subr.mxu0 0.0
        %2301 = vmatpush1.msra.mxu0 0.0
        %2302 = vmatprep.subr.mxu0 0.0
        %2303 = vmatpush1.msra.mxu0 0.0
        %2304 = vmatprep.subr.mxu0 0.0
        %2305 = vmatpush1.msra.mxu0 0.0
        %2306 = vmatprep.subr.mxu0 0.0
        %2307 = vmatpush1.msra.mxu0 0.0
        %2308 = vmatprep.subr.mxu0 0.0
        %2309 = vmatpush1.msra.mxu0 0.0
        %2310 = vmatprep.subr.mxu0 0.0
        %2311 = vmatpush1.msra.mxu0 0.0
        %2312 = vmatprep.subr.mxu0 0.0
        %2313 = vmatpush1.msra.mxu0 0.0
        %2314 = vmatprep.mubr.f32.mxu0 0.0
        %2315 = vmatmul.mubr.f32.gmra.mrb[0].mxu0 %v2248
        %v2316 = vpop.f32.mrb[0].mxu0
        %v2317 = vadd.f32 0.0, %v2316
        %v2318 = vpop.f32.mrb[0].mxu0
        %2319 = vdwg.mxu0
        %v2321 = vsel %vm771, %v2073, 0
        %2323 = vmatprep.subr.mxu0 0.0
        %2324 = vmatpush1.msra.mxu0 %v1908
        %2325 = vmatprep.subr.mxu0 0.0
        %2326 = vmatpush1.msra.mxu0 0.0
        %2327 = vmatprep.subr.mxu0 0.0
        %2328 = vmatpush1.msra.mxu0 0.0
        %2329 = vmatprep.subr.mxu0 0.0
        %2330 = vmatpush1.msra.mxu0 0.0
        %2331 = vmatprep.subr.mxu0 0.0
        %2332 = vmatpush1.msra.mxu0 0.0
        %2333 = vmatprep.subr.mxu0 0.0
        %2334 = vmatpush1.msra.mxu0 0.0
        %2335 = vmatprep.subr.mxu0 0.0
        %2336 = vmatpush1.msra.mxu0 0.0
        %2337 = vmatprep.subr.mxu0 0.0
        %2338 = vmatpush1.msra.mxu0 0.0
        %2339 = vmatprep.subr.mxu0 0.0
        %2340 = vmatpush1.msra.mxu0 0.0
        %2341 = vmatprep.subr.mxu0 0.0
        %2342 = vmatpush1.msra.mxu0 0.0
        %2343 = vmatprep.subr.mxu0 0.0
        %2344 = vmatpush1.msra.mxu0 0.0
        %2345 = vmatprep.subr.mxu0 0.0
        %2346 = vmatpush1.msra.mxu0 0.0
        %2347 = vmatprep.subr.mxu0 0.0
        %2348 = vmatpush1.msra.mxu0 0.0
        %2349 = vmatprep.subr.mxu0 0.0
        %2350 = vmatpush1.msra.mxu0 0.0
        %2351 = vmatprep.subr.mxu0 0.0
        %2352 = vmatpush1.msra.mxu0 0.0
        %2353 = vmatprep.subr.mxu0 0.0
        %2354 = vmatpush1.msra.mxu0 0.0
        %2355 = vmatprep.subr.mxu0 0.0
        %2356 = vmatpush1.msra.mxu0 0.0
        %2357 = vmatprep.subr.mxu0 0.0
        %2358 = vmatpush1.msra.mxu0 0.0
        %2359 = vmatprep.subr.mxu0 0.0
        %2360 = vmatpush1.msra.mxu0 0.0
        %2361 = vmatprep.subr.mxu0 0.0
        %2362 = vmatpush1.msra.mxu0 0.0
        %2363 = vmatprep.subr.mxu0 0.0
        %2364 = vmatpush1.msra.mxu0 0.0
        %2365 = vmatprep.subr.mxu0 0.0
        %2366 = vmatpush1.msra.mxu0 0.0
        %2367 = vmatprep.subr.mxu0 0.0
        %2368 = vmatpush1.msra.mxu0 0.0
        %2369 = vmatprep.subr.mxu0 0.0
        %2370 = vmatpush1.msra.mxu0 0.0
        %2371 = vmatprep.subr.mxu0 0.0
        %2372 = vmatpush1.msra.mxu0 0.0
        %2373 = vmatprep.subr.mxu0 0.0
        %2374 = vmatpush1.msra.mxu0 0.0
        %2375 = vmatprep.subr.mxu0 0.0
        %2376 = vmatpush1.msra.mxu0 0.0
        %2377 = vmatprep.subr.mxu0 0.0
        %2378 = vmatpush1.msra.mxu0 0.0
        %2379 = vmatprep.subr.mxu0 0.0
        %2380 = vmatpush1.msra.mxu0 0.0
        %2381 = vmatprep.subr.mxu0 0.0
        %2382 = vmatpush1.msra.mxu0 0.0
        %2383 = vmatprep.subr.mxu0 0.0
        %2384 = vmatpush1.msra.mxu0 0.0
        %2385 = vmatprep.subr.mxu0 0.0
        %2386 = vmatpush1.msra.mxu0 0.0
        %2387 = vmatprep.mubr.f32.mxu0 0.0
        %2388 = vmatmul.mubr.f32.gmra.mrb[0].mxu0 %v2321
        %v2389 = vpop.f32.mrb[0].mxu0
        %v2390 = vadd.f32 %v2317, %v2389
        %v2391 = vpop.f32.mrb[0].mxu0
        %2392 = vdwg.mxu0
        %2393 = vrot.lane.b32.xlu0 %v1830, 112
        %v2394 = vpop.permute.xlu0 %2393
        %2395 = vrot.lane.b32.xlu0 %v1905, 112
        %v2396 = vpop.permute.xlu0 %2395
        %v2397 = vsel %vm771, %v2394, 0
        %v2399 = vsel %vm771, %v2396, 0
        %2401 = vmatprep.subr.mxu0 0.0
        %2402 = vmatpush1.xpose.msra.mxu0 %v2399
        %2403 = vmatprep.subr.mxu0 0.0
        %2404 = vmatpush1.xpose.msra.mxu0 0.0
        %2405 = vmatprep.subr.mxu0 0.0
        %2406 = vmatpush1.xpose.msra.mxu0 0.0
        %2407 = vmatprep.subr.mxu0 0.0
        %2408 = vmatpush1.xpose.msra.mxu0 0.0
        %2409 = vmatprep.subr.mxu0 0.0
        %2410 = vmatpush1.xpose.msra.mxu0 0.0
        %2411 = vmatprep.subr.mxu0 0.0
        %2412 = vmatpush1.xpose.msra.mxu0 0.0
        %2413 = vmatprep.subr.mxu0 0.0
        %2414 = vmatpush1.xpose.msra.mxu0 0.0
        %2415 = vmatprep.subr.mxu0 0.0
        %2416 = vmatpush1.xpose.msra.mxu0 0.0
        %2417 = vmatprep.subr.mxu0 0.0
        %2418 = vmatpush1.xpose.msra.mxu0 0.0
        %2419 = vmatprep.subr.mxu0 0.0
        %2420 = vmatpush1.xpose.msra.mxu0 0.0
        %2421 = vmatprep.subr.mxu0 0.0
        %2422 = vmatpush1.xpose.msra.mxu0 0.0
        %2423 = vmatprep.subr.mxu0 0.0
        %2424 = vmatpush1.xpose.msra.mxu0 0.0
        %2425 = vmatprep.subr.mxu0 0.0
        %2426 = vmatpush1.xpose.msra.mxu0 0.0
        %2427 = vmatprep.subr.mxu0 0.0
        %2428 = vmatpush1.xpose.msra.mxu0 0.0
        %2429 = vmatprep.subr.mxu0 0.0
        %2430 = vmatpush1.xpose.msra.mxu0 0.0
        %2431 = vmatprep.subr.mxu0 0.0
        %2432 = vmatpush1.xpose.msra.mxu0 0.0
        %2433 = vmatprep.subr.mxu0 0.0
        %2434 = vmatpush1.xpose.msra.mxu0 0.0
        %2435 = vmatprep.subr.mxu0 0.0
        %2436 = vmatpush1.xpose.msra.mxu0 0.0
        %2437 = vmatprep.subr.mxu0 0.0
        %2438 = vmatpush1.xpose.msra.mxu0 0.0
        %2439 = vmatprep.subr.mxu0 0.0
        %2440 = vmatpush1.xpose.msra.mxu0 0.0
        %2441 = vmatprep.subr.mxu0 0.0
        %2442 = vmatpush1.xpose.msra.mxu0 0.0
        %2443 = vmatprep.subr.mxu0 0.0
        %2444 = vmatpush1.xpose.msra.mxu0 0.0
        %2445 = vmatprep.subr.mxu0 0.0
        %2446 = vmatpush1.xpose.msra.mxu0 0.0
        %2447 = vmatprep.subr.mxu0 0.0
        %2448 = vmatpush1.xpose.msra.mxu0 0.0
        %2449 = vmatprep.subr.mxu0 0.0
        %2450 = vmatpush1.xpose.msra.mxu0 0.0
        %2451 = vmatprep.subr.mxu0 0.0
        %2452 = vmatpush1.xpose.msra.mxu0 0.0
        %2453 = vmatprep.subr.mxu0 0.0
        %2454 = vmatpush1.xpose.msra.mxu0 0.0
        %2455 = vmatprep.subr.mxu0 0.0
        %2456 = vmatpush1.xpose.msra.mxu0 0.0
        %2457 = vmatprep.subr.mxu0 0.0
        %2458 = vmatpush1.xpose.msra.mxu0 0.0
        %2459 = vmatprep.subr.mxu0 0.0
        %2460 = vmatpush1.xpose.msra.mxu0 0.0
        %2461 = vmatprep.subr.mxu0 0.0
        %2462 = vmatpush1.xpose.msra.mxu0 0.0
        %2463 = vmatprep.subr.mxu0 0.0
        %2464 = vmatpush1.xpose.msra.mxu0 0.0
        %2465 = vmatprep.mubr.f32.mxu0 0.0
        %2466 = vmatmul.mubr.f32.gmra.mrb[0].mxu0 %v2397
        %v2467 = vpop.f32.mrb[0].mxu0
        %v2468 = vadd.f32 0.0, %v2467
        %v2469 = vpop.f32.mrb[0].mxu0
        %2470 = vdwg.mxu0
        %2472 = vrot.lane.b32.xlu0 %v2468, 16
        %v2473 = vpop.permute.xlu0 %2472
        %vm2475 = vcmask 195712
        %2476 = vst.msk [vmem:[%s652] sm:$0xff] %vm2475, %v2473
        %v2477 = vsel %vm771, %v2468, -inf
        %2478 = vmax.xlane.f32.xlu0 %v2477
        %v2479 = vpop.xlane.xlu0 %2478
        %v2480 = vsub.f32 %v2468, %v2479
        %v2481 = vmul.f32 %v2480, 1.442695
        %v2482 = vpow.pop %v2481
        %v2483 = vsel %vm771, %v2482, 0.0
        %2484 = vadd.xlane.f32.xlu0 %v2483
        %v2485 = vpop.xlane.xlu0 %2484
        %v2486 = vrcp.pop %v2485
        %v2487 = vmul.f32 %v2482, %v2486
        %2488 = vrot.lane.b32.xlu0 %v1905, 80
        %v2489 = vpop.permute.xlu0 %2488
        %v2492 = vsel %vm771, %v2487, 0
        %2494 = vmatprep.subr.mxu0 0.0
        %2495 = vmatpush1.msra.mxu0 %v2489
        %2496 = vmatprep.subr.mxu0 0.0
        %2497 = vmatpush1.msra.mxu0 0.0
        %2498 = vmatprep.subr.mxu0 0.0
        %2499 = vmatpush1.msra.mxu0 0.0
        %2500 = vmatprep.subr.mxu0 0.0
        %2501 = vmatpush1.msra.mxu0 0.0
        %2502 = vmatprep.subr.mxu0 0.0
        %2503 = vmatpush1.msra.mxu0 0.0
        %2504 = vmatprep.subr.mxu0 0.0
        %2505 = vmatpush1.msra.mxu0 0.0
        %2506 = vmatprep.subr.mxu0 0.0
        %2507 = vmatpush1.msra.mxu0 0.0
        %2508 = vmatprep.subr.mxu0 0.0
        %2509 = vmatpush1.msra.mxu0 0.0
        %2510 = vmatprep.subr.mxu0 0.0
        %2511 = vmatpush1.msra.mxu0 0.0
        %2512 = vmatprep.subr.mxu0 0.0
        %2513 = vmatpush1.msra.mxu0 0.0
        %2514 = vmatprep.subr.mxu0 0.0
        %2515 = vmatpush1.msra.mxu0 0.0
        %2516 = vmatprep.subr.mxu0 0.0
        %2517 = vmatpush1.msra.mxu0 0.0
        %2518 = vmatprep.subr.mxu0 0.0
        %2519 = vmatpush1.msra.mxu0 0.0
        %2520 = vmatprep.subr.mxu0 0.0
        %2521 = vmatpush1.msra.mxu0 0.0
        %2522 = vmatprep.subr.mxu0 0.0
        %2523 = vmatpush1.msra.mxu0 0.0
        %2524 = vmatprep.subr.mxu0 0.0
        %2525 = vmatpush1.msra.mxu0 0.0
        %2526 = vmatprep.subr.mxu0 0.0
        %2527 = vmatpush1.msra.mxu0 0.0
        %2528 = vmatprep.subr.mxu0 0.0
        %2529 = vmatpush1.msra.mxu0 0.0
        %2530 = vmatprep.subr.mxu0 0.0
        %2531 = vmatpush1.msra.mxu0 0.0
        %2532 = vmatprep.subr.mxu0 0.0
        %2533 = vmatpush1.msra.mxu0 0.0
        %2534 = vmatprep.subr.mxu0 0.0
        %2535 = vmatpush1.msra.mxu0 0.0
        %2536 = vmatprep.subr.mxu0 0.0
        %2537 = vmatpush1.msra.mxu0 0.0
        %2538 = vmatprep.subr.mxu0 0.0
        %2539 = vmatpush1.msra.mxu0 0.0
        %2540 = vmatprep.subr.mxu0 0.0
        %2541 = vmatpush1.msra.mxu0 0.0
        %2542 = vmatprep.subr.mxu0 0.0
        %2543 = vmatpush1.msra.mxu0 0.0
        %2544 = vmatprep.subr.mxu0 0.0
        %2545 = vmatpush1.msra.mxu0 0.0
        %2546 = vmatprep.subr.mxu0 0.0
        %2547 = vmatpush1.msra.mxu0 0.0
        %2548 = vmatprep.subr.mxu0 0.0
        %2549 = vmatpush1.msra.mxu0 0.0
        %2550 = vmatprep.subr.mxu0 0.0
        %2551 = vmatpush1.msra.mxu0 0.0
        %2552 = vmatprep.subr.mxu0 0.0
        %2553 = vmatpush1.msra.mxu0 0.0
        %2554 = vmatprep.subr.mxu0 0.0
        %2555 = vmatpush1.msra.mxu0 0.0
        %2556 = vmatprep.subr.mxu0 0.0
        %2557 = vmatpush1.msra.mxu0 0.0
        %2558 = vmatprep.mubr.f32.mxu0 0.0
        %2559 = vmatmul.mubr.f32.gmra.mrb[0].mxu0 %v2492
        %v2560 = vpop.f32.mrb[0].mxu0
        %v2561 = vadd.f32 0.0, %v2560
        %v2562 = vpop.f32.mrb[0].mxu0
        %2563 = vdwg.mxu0
        %v2565 = vsel %vm771, %v2561, 0
        %2567 = vmatprep.subr.mxu0 0.0
        %2568 = vmatpush1.msra.mxu0 %v1910
        %2569 = vmatprep.subr.mxu0 0.0
        %2570 = vmatpush1.msra.mxu0 0.0
        %2571 = vmatprep.subr.mxu0 0.0
        %2572 = vmatpush1.msra.mxu0 0.0
        %2573 = vmatprep.subr.mxu0 0.0
        %2574 = vmatpush1.msra.mxu0 0.0
        %2575 = vmatprep.subr.mxu0 0.0
        %2576 = vmatpush1.msra.mxu0 0.0
        %2577 = vmatprep.subr.mxu0 0.0
        %2578 = vmatpush1.msra.mxu0 0.0
        %2579 = vmatprep.subr.mxu0 0.0
        %2580 = vmatpush1.msra.mxu0 0.0
        %2581 = vmatprep.subr.mxu0 0.0
        %2582 = vmatpush1.msra.mxu0 0.0
        %2583 = vmatprep.subr.mxu0 0.0
        %2584 = vmatpush1.msra.mxu0 0.0
        %2585 = vmatprep.subr.mxu0 0.0
        %2586 = vmatpush1.msra.mxu0 0.0
        %2587 = vmatprep.subr.mxu0 0.0
        %2588 = vmatpush1.msra.mxu0 0.0
        %2589 = vmatprep.subr.mxu0 0.0
        %2590 = vmatpush1.msra.mxu0 0.0
        %2591 = vmatprep.subr.mxu0 0.0
        %2592 = vmatpush1.msra.mxu0 0.0
        %2593 = vmatprep.subr.mxu0 0.0
        %2594 = vmatpush1.msra.mxu0 0.0
        %2595 = vmatprep.subr.mxu0 0.0
        %2596 = vmatpush1.msra.mxu0 0.0
        %2597 = vmatprep.subr.mxu0 0.0
        %2598 = vmatpush1.msra.mxu0 0.0
        %2599 = vmatprep.subr.mxu0 0.0
        %2600 = vmatpush1.msra.mxu0 0.0
        %2601 = vmatprep.subr.mxu0 0.0
        %2602 = vmatpush1.msra.mxu0 0.0
        %2603 = vmatprep.subr.mxu0 0.0
        %2604 = vmatpush1.msra.mxu0 0.0
        %2605 = vmatprep.subr.mxu0 0.0
        %2606 = vmatpush1.msra.mxu0 0.0
        %2607 = vmatprep.subr.mxu0 0.0
        %2608 = vmatpush1.msra.mxu0 0.0
        %2609 = vmatprep.subr.mxu0 0.0
        %2610 = vmatpush1.msra.mxu0 0.0
        %2611 = vmatprep.subr.mxu0 0.0
        %2612 = vmatpush1.msra.mxu0 0.0
        %2613 = vmatprep.subr.mxu0 0.0
        %2614 = vmatpush1.msra.mxu0 0.0
        %2615 = vmatprep.subr.mxu0 0.0
        %2616 = vmatpush1.msra.mxu0 0.0
        %2617 = vmatprep.subr.mxu0 0.0
        %2618 = vmatpush1.msra.mxu0 0.0
        %2619 = vmatprep.subr.mxu0 0.0
        %2620 = vmatpush1.msra.mxu0 0.0
        %2621 = vmatprep.subr.mxu0 0.0
        %2622 = vmatpush1.msra.mxu0 0.0
        %2623 = vmatprep.subr.mxu0 0.0
        %2624 = vmatpush1.msra.mxu0 0.0
        %2625 = vmatprep.subr.mxu0 0.0
        %2626 = vmatpush1.msra.mxu0 0.0
        %2627 = vmatprep.subr.mxu0 0.0
        %2628 = vmatpush1.msra.mxu0 0.0
        %2629 = vmatprep.subr.mxu0 0.0
        %2630 = vmatpush1.msra.mxu0 0.0
        %2631 = vmatprep.mubr.f32.mxu0 0.0
        %2632 = vmatmul.mubr.f32.gmra.mrb[0].mxu0 %v2565
        %v2633 = vpop.f32.mrb[0].mxu0
        %v2634 = vadd.f32 0.0, %v2633
        %v2635 = vpop.f32.mrb[0].mxu0
        %2636 = vdwg.mxu0
        %v2637 = vadd.f32 %v2390, %v2634
        %2638 = vrot.lane.b32.xlu0 %v1830, 104
        %v2639 = vpop.permute.xlu0 %2638
        %2640 = vrot.lane.b32.xlu0 %v1905, 104
        %v2641 = vpop.permute.xlu0 %2640
        %v2642 = vsel %vm771, %v2639, 0
        %v2644 = vsel %vm771, %v2641, 0
        %2646 = vmatprep.subr.mxu0 0.0
        %2647 = vmatpush1.xpose.msra.mxu0 %v2644
        %2648 = vmatprep.subr.mxu0 0.0
        %2649 = vmatpush1.xpose.msra.mxu0 0.0
        %2650 = vmatprep.subr.mxu0 0.0
        %2651 = vmatpush1.xpose.msra.mxu0 0.0
        %2652 = vmatprep.subr.mxu0 0.0
        %2653 = vmatpush1.xpose.msra.mxu0 0.0
        %2654 = vmatprep.subr.mxu0 0.0
        %2655 = vmatpush1.xpose.msra.mxu0 0.0
        %2656 = vmatprep.subr.mxu0 0.0
        %2657 = vmatpush1.xpose.msra.mxu0 0.0
        %2658 = vmatprep.subr.mxu0 0.0
        %2659 = vmatpush1.xpose.msra.mxu0 0.0
        %2660 = vmatprep.subr.mxu0 0.0
        %2661 = vmatpush1.xpose.msra.mxu0 0.0
        %2662 = vmatprep.subr.mxu0 0.0
        %2663 = vmatpush1.xpose.msra.mxu0 0.0
        %2664 = vmatprep.subr.mxu0 0.0
        %2665 = vmatpush1.xpose.msra.mxu0 0.0
        %2666 = vmatprep.subr.mxu0 0.0
        %2667 = vmatpush1.xpose.msra.mxu0 0.0
        %2668 = vmatprep.subr.mxu0 0.0
        %2669 = vmatpush1.xpose.msra.mxu0 0.0
        %2670 = vmatprep.subr.mxu0 0.0
        %2671 = vmatpush1.xpose.msra.mxu0 0.0
        %2672 = vmatprep.subr.mxu0 0.0
        %2673 = vmatpush1.xpose.msra.mxu0 0.0
        %2674 = vmatprep.subr.mxu0 0.0
        %2675 = vmatpush1.xpose.msra.mxu0 0.0
        %2676 = vmatprep.subr.mxu0 0.0
        %2677 = vmatpush1.xpose.msra.mxu0 0.0
        %2678 = vmatprep.subr.mxu0 0.0
        %2679 = vmatpush1.xpose.msra.mxu0 0.0
        %2680 = vmatprep.subr.mxu0 0.0
        %2681 = vmatpush1.xpose.msra.mxu0 0.0
        %2682 = vmatprep.subr.mxu0 0.0
        %2683 = vmatpush1.xpose.msra.mxu0 0.0
        %2684 = vmatprep.subr.mxu0 0.0
        %2685 = vmatpush1.xpose.msra.mxu0 0.0
        %2686 = vmatprep.subr.mxu0 0.0
        %2687 = vmatpush1.xpose.msra.mxu0 0.0
        %2688 = vmatprep.subr.mxu0 0.0
        %2689 = vmatpush1.xpose.msra.mxu0 0.0
        %2690 = vmatprep.subr.mxu0 0.0
        %2691 = vmatpush1.xpose.msra.mxu0 0.0
        %2692 = vmatprep.subr.mxu0 0.0
        %2693 = vmatpush1.xpose.msra.mxu0 0.0
        %2694 = vmatprep.subr.mxu0 0.0
        %2695 = vmatpush1.xpose.msra.mxu0 0.0
        %2696 = vmatprep.subr.mxu0 0.0
        %2697 = vmatpush1.xpose.msra.mxu0 0.0
        %2698 = vmatprep.subr.mxu0 0.0
        %2699 = vmatpush1.xpose.msra.mxu0 0.0
        %2700 = vmatprep.subr.mxu0 0.0
        %2701 = vmatpush1.xpose.msra.mxu0 0.0
        %2702 = vmatprep.subr.mxu0 0.0
        %2703 = vmatpush1.xpose.msra.mxu0 0.0
        %2704 = vmatprep.subr.mxu0 0.0
        %2705 = vmatpush1.xpose.msra.mxu0 0.0
        %2706 = vmatprep.subr.mxu0 0.0
        %2707 = vmatpush1.xpose.msra.mxu0 0.0
        %2708 = vmatprep.subr.mxu0 0.0
        %2709 = vmatpush1.xpose.msra.mxu0 0.0
        %2710 = vmatprep.mubr.f32.mxu0 0.0
        %2711 = vmatmul.mubr.f32.gmra.mrb[0].mxu0 %v2642
        %v2712 = vpop.f32.mrb[0].mxu0
        %v2713 = vadd.f32 0.0, %v2712
        %v2714 = vpop.f32.mrb[0].mxu0
        %2715 = vdwg.mxu0
        %2717 = vrot.lane.b32.xlu0 %v2713, 24
        %v2718 = vpop.permute.xlu0 %2717
        %vm2720 = vcmask 261312
        %2721 = vst.msk [vmem:[%s652] sm:$0xff] %vm2720, %v2718
        %v2722 = vsel %vm771, %v2713, -inf
        %2723 = vmax.xlane.f32.xlu0 %v2722
        %v2724 = vpop.xlane.xlu0 %2723
        %v2725 = vsub.f32 %v2713, %v2724
        %v2726 = vmul.f32 %v2725, 1.442695
        %v2727 = vpow.pop %v2726
        %v2728 = vsel %vm771, %v2727, 0.0
        %2729 = vadd.xlane.f32.xlu0 %v2728
        %v2730 = vpop.xlane.xlu0 %2729
        %v2731 = vrcp.pop %v2730
        %v2732 = vmul.f32 %v2727, %v2731
        %2733 = vrot.lane.b32.xlu0 %v1905, 72
        %v2734 = vpop.permute.xlu0 %2733
        %v2737 = vsel %vm771, %v2732, 0
        %2739 = vmatprep.subr.mxu0 0.0
        %2740 = vmatpush1.msra.mxu0 %v2734
        %2741 = vmatprep.subr.mxu0 0.0
        %2742 = vmatpush1.msra.mxu0 0.0
        %2743 = vmatprep.subr.mxu0 0.0
        %2744 = vmatpush1.msra.mxu0 0.0
        %2745 = vmatprep.subr.mxu0 0.0
        %2746 = vmatpush1.msra.mxu0 0.0
        %2747 = vmatprep.subr.mxu0 0.0
        %2748 = vmatpush1.msra.mxu0 0.0
        %2749 = vmatprep.subr.mxu0 0.0
        %2750 = vmatpush1.msra.mxu0 0.0
        %2751 = vmatprep.subr.mxu0 0.0
        %2752 = vmatpush1.msra.mxu0 0.0
        %2753 = vmatprep.subr.mxu0 0.0
        %2754 = vmatpush1.msra.mxu0 0.0
        %2755 = vmatprep.subr.mxu0 0.0
        %2756 = vmatpush1.msra.mxu0 0.0
        %2757 = vmatprep.subr.mxu0 0.0
        %2758 = vmatpush1.msra.mxu0 0.0
        %2759 = vmatprep.subr.mxu0 0.0
        %2760 = vmatpush1.msra.mxu0 0.0
        %2761 = vmatprep.subr.mxu0 0.0
        %2762 = vmatpush1.msra.mxu0 0.0
        %2763 = vmatprep.subr.mxu0 0.0
        %2764 = vmatpush1.msra.mxu0 0.0
        %2765 = vmatprep.subr.mxu0 0.0
        %2766 = vmatpush1.msra.mxu0 0.0
        %2767 = vmatprep.subr.mxu0 0.0
        %2768 = vmatpush1.msra.mxu0 0.0
        %2769 = vmatprep.subr.mxu0 0.0
        %2770 = vmatpush1.msra.mxu0 0.0
        %2771 = vmatprep.subr.mxu0 0.0
        %2772 = vmatpush1.msra.mxu0 0.0
        %2773 = vmatprep.subr.mxu0 0.0
        %2774 = vmatpush1.msra.mxu0 0.0
        %2775 = vmatprep.subr.mxu0 0.0
        %2776 = vmatpush1.msra.mxu0 0.0
        %2777 = vmatprep.subr.mxu0 0.0
        %2778 = vmatpush1.msra.mxu0 0.0
        %2779 = vmatprep.subr.mxu0 0.0
        %2780 = vmatpush1.msra.mxu0 0.0
        %2781 = vmatprep.subr.mxu0 0.0
        %2782 = vmatpush1.msra.mxu0 0.0
        %2783 = vmatprep.subr.mxu0 0.0
        %2784 = vmatpush1.msra.mxu0 0.0
        %2785 = vmatprep.subr.mxu0 0.0
        %2786 = vmatpush1.msra.mxu0 0.0
        %2787 = vmatprep.subr.mxu0 0.0
        %2788 = vmatpush1.msra.mxu0 0.0
        %2789 = vmatprep.subr.mxu0 0.0
        %2790 = vmatpush1.msra.mxu0 0.0
        %2791 = vmatprep.subr.mxu0 0.0
        %2792 = vmatpush1.msra.mxu0 0.0
        %2793 = vmatprep.subr.mxu0 0.0
        %2794 = vmatpush1.msra.mxu0 0.0
        %2795 = vmatprep.subr.mxu0 0.0
        %2796 = vmatpush1.msra.mxu0 0.0
        %2797 = vmatprep.subr.mxu0 0.0
        %2798 = vmatpush1.msra.mxu0 0.0
        %2799 = vmatprep.subr.mxu0 0.0
        %2800 = vmatpush1.msra.mxu0 0.0
        %2801 = vmatprep.subr.mxu0 0.0
        %2802 = vmatpush1.msra.mxu0 0.0
        %2803 = vmatprep.mubr.f32.mxu0 0.0
        %2804 = vmatmul.mubr.f32.gmra.mrb[0].mxu0 %v2737
        %v2805 = vpop.f32.mrb[0].mxu0
        %v2806 = vadd.f32 0.0, %v2805
        %v2807 = vpop.f32.mrb[0].mxu0
        %2808 = vdwg.mxu0
        %v2810 = vsel %vm771, %v2806, 0
        %2812 = vmatprep.subr.mxu0 0.0
        %2813 = vmatpush1.msra.mxu0 %v1911
        %2814 = vmatprep.subr.mxu0 0.0
        %2815 = vmatpush1.msra.mxu0 0.0
        %2816 = vmatprep.subr.mxu0 0.0
        %2817 = vmatpush1.msra.mxu0 0.0
        %2818 = vmatprep.subr.mxu0 0.0
        %2819 = vmatpush1.msra.mxu0 0.0
        %2820 = vmatprep.subr.mxu0 0.0
        %2821 = vmatpush1.msra.mxu0 0.0
        %2822 = vmatprep.subr.mxu0 0.0
        %2823 = vmatpush1.msra.mxu0 0.0
        %2824 = vmatprep.subr.mxu0 0.0
        %2825 = vmatpush1.msra.mxu0 0.0
        %2826 = vmatprep.subr.mxu0 0.0
        %2827 = vmatpush1.msra.mxu0 0.0
        %2828 = vmatprep.subr.mxu0 0.0
        %2829 = vmatpush1.msra.mxu0 0.0
        %2830 = vmatprep.subr.mxu0 0.0
        %2831 = vmatpush1.msra.mxu0 0.0
        %2832 = vmatprep.subr.mxu0 0.0
        %2833 = vmatpush1.msra.mxu0 0.0
        %2834 = vmatprep.subr.mxu0 0.0
        %2835 = vmatpush1.msra.mxu0 0.0
        %2836 = vmatprep.subr.mxu0 0.0
        %2837 = vmatpush1.msra.mxu0 0.0
        %2838 = vmatprep.subr.mxu0 0.0
        %2839 = vmatpush1.msra.mxu0 0.0
        %2840 = vmatprep.subr.mxu0 0.0
        %2841 = vmatpush1.msra.mxu0 0.0
        %2842 = vmatprep.subr.mxu0 0.0
        %2843 = vmatpush1.msra.mxu0 0.0
        %2844 = vmatprep.subr.mxu0 0.0
        %2845 = vmatpush1.msra.mxu0 0.0
        %2846 = vmatprep.subr.mxu0 0.0
        %2847 = vmatpush1.msra.mxu0 0.0
        %2848 = vmatprep.subr.mxu0 0.0
        %2849 = vmatpush1.msra.mxu0 0.0
        %2850 = vmatprep.subr.mxu0 0.0
        %2851 = vmatpush1.msra.mxu0 0.0
        %2852 = vmatprep.subr.mxu0 0.0
        %2853 = vmatpush1.msra.mxu0 0.0
        %2854 = vmatprep.subr.mxu0 0.0
        %2855 = vmatpush1.msra.mxu0 0.0
        %2856 = vmatprep.subr.mxu0 0.0
        %2857 = vmatpush1.msra.mxu0 0.0
        %2858 = vmatprep.subr.mxu0 0.0
        %2859 = vmatpush1.msra.mxu0 0.0
        %2860 = vmatprep.subr.mxu0 0.0
        %2861 = vmatpush1.msra.mxu0 0.0
        %2862 = vmatprep.subr.mxu0 0.0
        %2863 = vmatpush1.msra.mxu0 0.0
        %2864 = vmatprep.subr.mxu0 0.0
        %2865 = vmatpush1.msra.mxu0 0.0
        %2866 = vmatprep.subr.mxu0 0.0
        %2867 = vmatpush1.msra.mxu0 0.0
        %2868 = vmatprep.subr.mxu0 0.0
        %2869 = vmatpush1.msra.mxu0 0.0
        %2870 = vmatprep.subr.mxu0 0.0
        %2871 = vmatpush1.msra.mxu0 0.0
        %2872 = vmatprep.subr.mxu0 0.0
        %2873 = vmatpush1.msra.mxu0 0.0
        %2874 = vmatprep.subr.mxu0 0.0
        %2875 = vmatpush1.msra.mxu0 0.0
        %2876 = vmatprep.mubr.f32.mxu0 0.0
        %2877 = vmatmul.mubr.f32.gmra.mrb[0].mxu0 %v2810
        %v2878 = vpop.f32.mrb[0].mxu0
        %v2879 = vadd.f32 0.0, %v2878
        %v2880 = vpop.f32.mrb[0].mxu0
        %2881 = vdwg.mxu0
        %v2882 = vadd.f32 %v2637, %v2879
        %v2883 = vadd.f32 %v1723, %v2882
        %v2884 = vsel %vm655, %v2883, 0.0
        %2885 = vadd.xlane.f32.xlu0 %v2884
        %v2886 = vpop.xlane.xlu0 %2885
        %v2887 = vmul.f32 %v2886, %v659
        %v2888 = vsub.f32 %v2883, %v2887
        %v2889 = vmul.f32 %v2888, %v2888
        %v2890 = vsel %vm655, %v2889, 0.0
        %2891 = vadd.xlane.f32.xlu0 %v2890
        %v2892 = vpop.xlane.xlu0 %2891
        %v2893 = vmul.f32 %v2892, %v659
        %v2894 = vadd.f32 %v2893, 1e-05
        %v2895 = vrsqrt.pop %v2894
        %v2896 = vmul.f32 %v2888, %v2895
        %v2897 = vld [vmem:[%s6] sm:$0x1]
        %v2899 = vlaneseq
        %v2900 = vshrl.u32 %v2899, 7
        %v2901 = vsub.s32 0, %v2900
        %v2902 = vrot.slane %v2897, %v2901
        %v2904 = vmul.f32 %v2896, %v2902
        %v2905 = vld [vmem:[%s7] sm:$0x1]
        %v2907 = vlaneseq
        %v2908 = vshrl.u32 %v2907, 7
        %v2909 = vsub.s32 0, %v2908
        %v2910 = vrot.slane %v2905, %v2909
        %v2912 = vadd.f32 %v2904, %v2910
        %v2913 = vld [vmem:[#allocation7] sm:$0xff]
        %v2914 = vld [vmem:[#allocation7 + $0x8] sm:$0xff]
        %v2915 = vld [vmem:[#allocation7 + $0x10] sm:$0xff]
        %v2916 = vld [vmem:[#allocation7 + $0x18] sm:$0xff]
        %s2917 = scalar_lea.vmem [#allocation7], 32
        %v2918 = vld [vmem:[%s2917] sm:$0xff]
        %v2919 = vld [vmem:[%s2917 + $0x8] sm:$0xff]
        %v2920 = vld [vmem:[%s2917 + $0x10] sm:$0xff]
        %v2921 = vld [vmem:[%s2917 + $0x18] sm:$0xff]
        %vm2924 = vcmask 1046528
        %v2925 = vrot.slane 0.0, 1
        %v2926 = vrot.slane %v2912, 1
        %v2927 = vsel %vm2924, %v2925, %v2926
        %v2928 = vsel %vm655, %v2927, 0
        %2930 = vmatprep.subr.mxu0 0.0
        %2931 = vmatpush1.msra.mxu0 %v2918
        %2932 = vmatprep.subr.mxu0 0.0
        %2933 = vmatpush1.msra.mxu0 %v2919
        %2934 = vmatprep.subr.mxu0 0.0
        %2935 = vmatpush1.msra.mxu0 %v2920
        %2936 = vmatprep.subr.mxu0 0.0
        %2937 = vmatpush1.msra.mxu0 %v2921
        %2938 = vmatprep.subr.mxu0 0.0
        %2939 = vmatpush1.msra.mxu0 0.0
        %2940 = vmatprep.subr.mxu0 0.0
        %2941 = vmatpush1.msra.mxu0 0.0
        %2942 = vmatprep.subr.mxu0 0.0
        %2943 = vmatpush1.msra.mxu0 0.0
        %2944 = vmatprep.subr.mxu0 0.0
        %2945 = vmatpush1.msra.mxu0 0.0
        %2946 = vmatprep.subr.mxu0 0.0
        %2947 = vmatpush1.msra.mxu0 0.0
        %2948 = vmatprep.subr.mxu0 0.0
        %2949 = vmatpush1.msra.mxu0 0.0
        %2950 = vmatprep.subr.mxu0 0.0
        %2951 = vmatpush1.msra.mxu0 0.0
        %2952 = vmatprep.subr.mxu0 0.0
        %2953 = vmatpush1.msra.mxu0 0.0
        %2954 = vmatprep.subr.mxu0 0.0
        %2955 = vmatpush1.msra.mxu0 0.0
        %2956 = vmatprep.subr.mxu0 0.0
        %2957 = vmatpush1.msra.mxu0 0.0
        %2958 = vmatprep.subr.mxu0 0.0
        %2959 = vmatpush1.msra.mxu0 0.0
        %2960 = vmatprep.subr.mxu0 0.0
        %2961 = vmatpush1.msra.mxu0 0.0
        %2962 = vmatprep.subr.mxu0 0.0
        %2963 = vmatpush1.msra.mxu0 0.0
        %2964 = vmatprep.subr.mxu0 0.0
        %2965 = vmatpush1.msra.mxu0 0.0
        %2966 = vmatprep.subr.mxu0 0.0
        %2967 = vmatpush1.msra.mxu0 0.0
        %2968 = vmatprep.subr.mxu0 0.0
        %2969 = vmatpush1.msra.mxu0 0.0
        %2970 = vmatprep.subr.mxu0 0.0
        %2971 = vmatpush1.msra.mxu0 0.0
        %2972 = vmatprep.subr.mxu0 0.0
        %2973 = vmatpush1.msra.mxu0 0.0
        %2974 = vmatprep.subr.mxu0 0.0
        %2975 = vmatpush1.msra.mxu0 0.0
        %2976 = vmatprep.subr.mxu0 0.0
        %2977 = vmatpush1.msra.mxu0 0.0
        %2978 = vmatprep.subr.mxu0 0.0
        %2979 = vmatpush1.msra.mxu0 0.0
        %2980 = vmatprep.subr.mxu0 0.0
        %2981 = vmatpush1.msra.mxu0 0.0
        %2982 = vmatprep.subr.mxu0 0.0
        %2983 = vmatpush1.msra.mxu0 0.0
        %2984 = vmatprep.subr.mxu0 0.0
        %2985 = vmatpush1.msra.mxu0 0.0
        %2986 = vmatprep.subr.mxu0 0.0
        %2987 = vmatpush1.msra.mxu0 0.0
        %2988 = vmatprep.subr.mxu0 0.0
        %2989 = vmatpush1.msra.mxu0 0.0
        %2990 = vmatprep.subr.mxu0 0.0
        %2991 = vmatpush1.msra.mxu0 0.0
        %2992 = vmatprep.subr.mxu0 0.0
        %2993 = vmatpush1.msra.mxu0 0.0
        %2994 = vmatprep.mubr.f32.mxu0 0.0
        %2995 = vmatmul.mubr.f32.gmra.mrb[0].mxu0 %v2928
        %v2996 = vpop.f32.mrb[0].mxu0
        %v2997 = vadd.f32 0.0, %v2996
        %v2998 = vpop.f32.mrb[0].mxu0
        %2999 = vdwg.mxu0
        %v3000 = vsel %vm655, 0.0, 0
        %3002 = vmatprep.subr.mxu0 0.0
        %3003 = vmatpush1.msra.mxu0 %v2913
        %3004 = vmatprep.subr.mxu0 0.0
        %3005 = vmatpush1.msra.mxu0 %v2914
        %3006 = vmatprep.subr.mxu0 0.0
        %3007 = vmatpush1.msra.mxu0 %v2915
        %3008 = vmatprep.subr.mxu0 0.0
        %3009 = vmatpush1.msra.mxu0 %v2916
        %3010 = vmatprep.subr.mxu0 0.0
        %3011 = vmatpush1.msra.mxu0 0.0
        %3012 = vmatprep.subr.mxu0 0.0
        %3013 = vmatpush1.msra.mxu0 0.0
        %3014 = vmatprep.subr.mxu0 0.0
        %3015 = vmatpush1.msra.mxu0 0.0
        %3016 = vmatprep.subr.mxu0 0.0
        %3017 = vmatpush1.msra.mxu0 0.0
        %3018 = vmatprep.subr.mxu0 0.0
        %3019 = vmatpush1.msra.mxu0 0.0
        %3020 = vmatprep.subr.mxu0 0.0
        %3021 = vmatpush1.msra.mxu0 0.0
        %3022 = vmatprep.subr.mxu0 0.0
        %3023 = vmatpush1.msra.mxu0 0.0
        %3024 = vmatprep.subr.mxu0 0.0
        %3025 = vmatpush1.msra.mxu0 0.0
        %3026 = vmatprep.subr.mxu0 0.0
        %3027 = vmatpush1.msra.mxu0 0.0
        %3028 = vmatprep.subr.mxu0 0.0
        %3029 = vmatpush1.msra.mxu0 0.0
        %3030 = vmatprep.subr.mxu0 0.0
        %3031 = vmatpush1.msra.mxu0 0.0
        %3032 = vmatprep.subr.mxu0 0.0
        %3033 = vmatpush1.msra.mxu0 0.0
        %3034 = vmatprep.subr.mxu0 0.0
        %3035 = vmatpush1.msra.mxu0 0.0
        %3036 = vmatprep.subr.mxu0 0.0
        %3037 = vmatpush1.msra.mxu0 0.0
        %3038 = vmatprep.subr.mxu0 0.0
        %3039 = vmatpush1.msra.mxu0 0.0
        %3040 = vmatprep.subr.mxu0 0.0
        %3041 = vmatpush1.msra.mxu0 0.0
        %3042 = vmatprep.subr.mxu0 0.0
        %3043 = vmatpush1.msra.mxu0 0.0
        %3044 = vmatprep.subr.mxu0 0.0
        %3045 = vmatpush1.msra.mxu0 0.0
        %3046 = vmatprep.subr.mxu0 0.0
        %3047 = vmatpush1.msra.mxu0 0.0
        %3048 = vmatprep.subr.mxu0 0.0
        %3049 = vmatpush1.msra.mxu0 0.0
        %3050 = vmatprep.subr.mxu0 0.0
        %3051 = vmatpush1.msra.mxu0 0.0
        %3052 = vmatprep.subr.mxu0 0.0
        %3053 = vmatpush1.msra.mxu0 0.0
        %3054 = vmatprep.subr.mxu0 0.0
        %3055 = vmatpush1.msra.mxu0 0.0
        %3056 = vmatprep.subr.mxu0 0.0
        %3057 = vmatpush1.msra.mxu0 0.0
        %3058 = vmatprep.subr.mxu0 0.0
        %3059 = vmatpush1.msra.mxu0 0.0
        %3060 = vmatprep.subr.mxu0 0.0
        %3061 = vmatpush1.msra.mxu0 0.0
        %3062 = vmatprep.subr.mxu0 0.0
        %3063 = vmatpush1.msra.mxu0 0.0
        %3064 = vmatprep.subr.mxu0 0.0
        %3065 = vmatpush1.msra.mxu0 0.0
        %3066 = vmatprep.mubr.f32.mxu0 0.0
        %3067 = vmatmul.mubr.f32.gmra.mrb[0].mxu0 %v3000
        %v3068 = vpop.f32.mrb[0].mxu0
        %v3069 = vadd.f32 %v2997, %v3068
        %v3070 = vpop.f32.mrb[0].mxu0
        %3071 = vdwg.mxu0
        %s3072 = scalar_lea.vmem [#allocation7], 64
        %v3073 = vld [vmem:[%s3072] sm:$0xff]
        %v3074 = vld [vmem:[%s3072 + $0x8] sm:$0xff]
        %v3075 = vld [vmem:[%s3072 + $0x10] sm:$0xff]
        %v3076 = vld [vmem:[%s3072 + $0x18] sm:$0xff]
        %vm3077 = vcmask 1045504
        %v3078 = vrot.slane 0.0, 2
        %v3079 = vrot.slane %v2912, 2
        %v3080 = vsel %vm3077, %v3078, %v3079
        %v3081 = vsel %vm655, %v3080, 0
        %3083 = vmatprep.subr.mxu0 0.0
        %3084 = vmatpush1.msra.mxu0 %v3073
        %3085 = vmatprep.subr.mxu0 0.0
        %3086 = vmatpush1.msra.mxu0 %v3074
        %3087 = vmatprep.subr.mxu0 0.0
        %3088 = vmatpush1.msra.mxu0 %v3075
        %3089 = vmatprep.subr.mxu0 0.0
        %3090 = vmatpush1.msra.mxu0 %v3076
        %3091 = vmatprep.subr.mxu0 0.0
        %3092 = vmatpush1.msra.mxu0 0.0
        %3093 = vmatprep.subr.mxu0 0.0
        %3094 = vmatpush1.msra.mxu0 0.0
        %3095 = vmatprep.subr.mxu0 0.0
        %3096 = vmatpush1.msra.mxu0 0.0
        %3097 = vmatprep.subr.mxu0 0.0
        %3098 = vmatpush1.msra.mxu0 0.0
        %3099 = vmatprep.subr.mxu0 0.0
        %3100 = vmatpush1.msra.mxu0 0.0
        %3101 = vmatprep.subr.mxu0 0.0
        %3102 = vmatpush1.msra.mxu0 0.0
        %3103 = vmatprep.subr.mxu0 0.0
        %3104 = vmatpush1.msra.mxu0 0.0
        %3105 = vmatprep.subr.mxu0 0.0
        %3106 = vmatpush1.msra.mxu0 0.0
        %3107 = vmatprep.subr.mxu0 0.0
        %3108 = vmatpush1.msra.mxu0 0.0
        %3109 = vmatprep.subr.mxu0 0.0
        %3110 = vmatpush1.msra.mxu0 0.0
        %3111 = vmatprep.subr.mxu0 0.0
        %3112 = vmatpush1.msra.mxu0 0.0
        %3113 = vmatprep.subr.mxu0 0.0
        %3114 = vmatpush1.msra.mxu0 0.0
        %3115 = vmatprep.subr.mxu0 0.0
        %3116 = vmatpush1.msra.mxu0 0.0
        %3117 = vmatprep.subr.mxu0 0.0
        %3118 = vmatpush1.msra.mxu0 0.0
        %3119 = vmatprep.subr.mxu0 0.0
        %3120 = vmatpush1.msra.mxu0 0.0
        %3121 = vmatprep.subr.mxu0 0.0
        %3122 = vmatpush1.msra.mxu0 0.0
        %3123 = vmatprep.subr.mxu0 0.0
        %3124 = vmatpush1.msra.mxu0 0.0
        %3125 = vmatprep.subr.mxu0 0.0
        %3126 = vmatpush1.msra.mxu0 0.0
        %3127 = vmatprep.subr.mxu0 0.0
        %3128 = vmatpush1.msra.mxu0 0.0
        %3129 = vmatprep.subr.mxu0 0.0
        %3130 = vmatpush1.msra.mxu0 0.0
        %3131 = vmatprep.subr.mxu0 0.0
        %3132 = vmatpush1.msra.mxu0 0.0
        %3133 = vmatprep.subr.mxu0 0.0
        %3134 = vmatpush1.msra.mxu0 0.0
        %3135 = vmatprep.subr.mxu0 0.0
        %3136 = vmatpush1.msra.mxu0 0.0
        %3137 = vmatprep.subr.mxu0 0.0
        %3138 = vmatpush1.msra.mxu0 0.0
        %3139 = vmatprep.subr.mxu0 0.0
        %3140 = vmatpush1.msra.mxu0 0.0
        %3141 = vmatprep.subr.mxu0 0.0
        %3142 = vmatpush1.msra.mxu0 0.0
        %3143 = vmatprep.subr.mxu0 0.0
        %3144 = vmatpush1.msra.mxu0 0.0
        %3145 = vmatprep.subr.mxu0 0.0
        %3146 = vmatpush1.msra.mxu0 0.0
        %3147 = vmatprep.mubr.f32.mxu0 0.0
        %3148 = vmatmul.mubr.f32.gmra.mrb[0].mxu0 %v3081
        %v3149 = vpop.f32.mrb[0].mxu0
        %v3150 = vadd.f32 0.0, %v3149
        %v3151 = vpop.f32.mrb[0].mxu0
        %3152 = vdwg.mxu0
        %v3153 = vadd.f32 %v3069, %v3150
        %s3154 = scalar_lea.vmem [#allocation7], 96
        %v3155 = vld [vmem:[%s3154] sm:$0xff]
        %v3156 = vld [vmem:[%s3154 + $0x8] sm:$0xff]
        %v3157 = vld [vmem:[%s3154 + $0x10] sm:$0xff]
        %v3158 = vld [vmem:[%s3154 + $0x18] sm:$0xff]
        %vm3159 = vcmask 1044480
        %v3160 = vrot.slane 0.0, 3
        %v3161 = vrot.slane %v2912, 3
        %v3162 = vsel %vm3159, %v3160, %v3161
        %v3163 = vsel %vm655, %v3162, 0
        %3165 = vmatprep.subr.mxu0 0.0
        %3166 = vmatpush1.msra.mxu0 %v3155
        %3167 = vmatprep.subr.mxu0 0.0
        %3168 = vmatpush1.msra.mxu0 %v3156
        %3169 = vmatprep.subr.mxu0 0.0
        %3170 = vmatpush1.msra.mxu0 %v3157
        %3171 = vmatprep.subr.mxu0 0.0
        %3172 = vmatpush1.msra.mxu0 %v3158
        %3173 = vmatprep.subr.mxu0 0.0
        %3174 = vmatpush1.msra.mxu0 0.0
        %3175 = vmatprep.subr.mxu0 0.0
        %3176 = vmatpush1.msra.mxu0 0.0
        %3177 = vmatprep.subr.mxu0 0.0
        %3178 = vmatpush1.msra.mxu0 0.0
        %3179 = vmatprep.subr.mxu0 0.0
        %3180 = vmatpush1.msra.mxu0 0.0
        %3181 = vmatprep.subr.mxu0 0.0
        %3182 = vmatpush1.msra.mxu0 0.0
        %3183 = vmatprep.subr.mxu0 0.0
        %3184 = vmatpush1.msra.mxu0 0.0
        %3185 = vmatprep.subr.mxu0 0.0
        %3186 = vmatpush1.msra.mxu0 0.0
        %3187 = vmatprep.subr.mxu0 0.0
        %3188 = vmatpush1.msra.mxu0 0.0
        %3189 = vmatprep.subr.mxu0 0.0
        %3190 = vmatpush1.msra.mxu0 0.0
        %3191 = vmatprep.subr.mxu0 0.0
        %3192 = vmatpush1.msra.mxu0 0.0
        %3193 = vmatprep.subr.mxu0 0.0
        %3194 = vmatpush1.msra.mxu0 0.0
        %3195 = vmatprep.subr.mxu0 0.0
        %3196 = vmatpush1.msra.mxu0 0.0
        %3197 = vmatprep.subr.mxu0 0.0
        %3198 = vmatpush1.msra.mxu0 0.0
        %3199 = vmatprep.subr.mxu0 0.0
        %3200 = vmatpush1.msra.mxu0 0.0
        %3201 = vmatprep.subr.mxu0 0.0
        %3202 = vmatpush1.msra.mxu0 0.0
        %3203 = vmatprep.subr.mxu0 0.0
        %3204 = vmatpush1.msra.mxu0 0.0
        %3205 = vmatprep.subr.mxu0 0.0
        %3206 = vmatpush1.msra.mxu0 0.0
        %3207 = vmatprep.subr.mxu0 0.0
        %3208 = vmatpush1.msra.mxu0 0.0
        %3209 = vmatprep.subr.mxu0 0.0
        %3210 = vmatpush1.msra.mxu0 0.0
        %3211 = vmatprep.subr.mxu0 0.0
        %3212 = vmatpush1.msra.mxu0 0.0
        %3213 = vmatprep.subr.mxu0 0.0
        %3214 = vmatpush1.msra.mxu0 0.0
        %3215 = vmatprep.subr.mxu0 0.0
        %3216 = vmatpush1.msra.mxu0 0.0
        %3217 = vmatprep.subr.mxu0 0.0
        %3218 = vmatpush1.msra.mxu0 0.0
        %3219 = vmatprep.subr.mxu0 0.0
        %3220 = vmatpush1.msra.mxu0 0.0
        %3221 = vmatprep.subr.mxu0 0.0
        %3222 = vmatpush1.msra.mxu0 0.0
        %3223 = vmatprep.subr.mxu0 0.0
        %3224 = vmatpush1.msra.mxu0 0.0
        %3225 = vmatprep.subr.mxu0 0.0
        %3226 = vmatpush1.msra.mxu0 0.0
        %3227 = vmatprep.subr.mxu0 0.0
        %3228 = vmatpush1.msra.mxu0 0.0
        %3229 = vmatprep.mubr.f32.mxu0 0.0
        %3230 = vmatmul.mubr.f32.gmra.mrb[0].mxu0 %v3163
        %v3231 = vpop.f32.mrb[0].mxu0
        %v3232 = vadd.f32 0.0, %v3231
        %v3233 = vpop.f32.mrb[0].mxu0
        %3234 = vdwg.mxu0
        %v3235 = vadd.f32 %v3153, %v3232
        %s3236 = scalar_lea.vmem [#allocation7], 128
        %v3237 = vld [vmem:[%s3236] sm:$0xff]
        %v3238 = vld [vmem:[%s3236 + $0x8] sm:$0xff]
        %v3239 = vld [vmem:[%s3236 + $0x10] sm:$0xff]
        %v3240 = vld [vmem:[%s3236 + $0x18] sm:$0xff]
        %vm3241 = vcmask 1043456
        %v3242 = vrot.slane 0.0, 4
        %v3243 = vrot.slane %v2912, 4
        %v3244 = vsel %vm3241, %v3242, %v3243
        %v3245 = vsel %vm655, %v3244, 0
        %3247 = vmatprep.subr.mxu0 0.0
        %3248 = vmatpush1.msra.mxu0 %v3237
        %3249 = vmatprep.subr.mxu0 0.0
        %3250 = vmatpush1.msra.mxu0 %v3238
        %3251 = vmatprep.subr.mxu0 0.0
        %3252 = vmatpush1.msra.mxu0 %v3239
        %3253 = vmatprep.subr.mxu0 0.0
        %3254 = vmatpush1.msra.mxu0 %v3240
        %3255 = vmatprep.subr.mxu0 0.0
        %3256 = vmatpush1.msra.mxu0 0.0
        %3257 = vmatprep.subr.mxu0 0.0
        %3258 = vmatpush1.msra.mxu0 0.0
        %3259 = vmatprep.subr.mxu0 0.0
        %3260 = vmatpush1.msra.mxu0 0.0
        %3261 = vmatprep.subr.mxu0 0.0
        %3262 = vmatpush1.msra.mxu0 0.0
        %3263 = vmatprep.subr.mxu0 0.0
        %3264 = vmatpush1.msra.mxu0 0.0
        %3265 = vmatprep.subr.mxu0 0.0
        %3266 = vmatpush1.msra.mxu0 0.0
        %3267 = vmatprep.subr.mxu0 0.0
        %3268 = vmatpush1.msra.mxu0 0.0
        %3269 = vmatprep.subr.mxu0 0.0
        %3270 = vmatpush1.msra.mxu0 0.0
        %3271 = vmatprep.subr.mxu0 0.0
        %3272 = vmatpush1.msra.mxu0 0.0
        %3273 = vmatprep.subr.mxu0 0.0
        %3274 = vmatpush1.msra.mxu0 0.0
        %3275 = vmatprep.subr.mxu0 0.0
        %3276 = vmatpush1.msra.mxu0 0.0
        %3277 = vmatprep.subr.mxu0 0.0
        %3278 = vmatpush1.msra.mxu0 0.0
        %3279 = vmatprep.subr.mxu0 0.0
        %3280 = vmatpush1.msra.mxu0 0.0
        %3281 = vmatprep.subr.mxu0 0.0
        %3282 = vmatpush1.msra.mxu0 0.0
        %3283 = vmatprep.subr.mxu0 0.0
        %3284 = vmatpush1.msra.mxu0 0.0
        %3285 = vmatprep.subr.mxu0 0.0
        %3286 = vmatpush1.msra.mxu0 0.0
        %3287 = vmatprep.subr.mxu0 0.0
        %3288 = vmatpush1.msra.mxu0 0.0
        %3289 = vmatprep.subr.mxu0 0.0
        %3290 = vmatpush1.msra.mxu0 0.0
        %3291 = vmatprep.subr.mxu0 0.0
        %3292 = vmatpush1.msra.mxu0 0.0
        %3293 = vmatprep.subr.mxu0 0.0
        %3294 = vmatpush1.msra.mxu0 0.0
        %3295 = vmatprep.subr.mxu0 0.0
        %3296 = vmatpush1.msra.mxu0 0.0
        %3297 = vmatprep.subr.mxu0 0.0
        %3298 = vmatpush1.msra.mxu0 0.0
        %3299 = vmatprep.subr.mxu0 0.0
        %3300 = vmatpush1.msra.mxu0 0.0
        %3301 = vmatprep.subr.mxu0 0.0
        %3302 = vmatpush1.msra.mxu0 0.0
        %3303 = vmatprep.subr.mxu0 0.0
        %3304 = vmatpush1.msra.mxu0 0.0
        %3305 = vmatprep.subr.mxu0 0.0
        %3306 = vmatpush1.msra.mxu0 0.0
        %3307 = vmatprep.subr.mxu0 0.0
        %3308 = vmatpush1.msra.mxu0 0.0
        %3309 = vmatprep.subr.mxu0 0.0
        %3310 = vmatpush1.msra.mxu0 0.0
        %3311 = vmatprep.mubr.f32.mxu0 0.0
        %3312 = vmatmul.mubr.f32.gmra.mrb[0].mxu0 %v3245
        %v3313 = vpop.f32.mrb[0].mxu0
        %v3314 = vadd.f32 0.0, %v3313
        %v3315 = vpop.f32.mrb[0].mxu0
        %3316 = vdwg.mxu0
        %v3317 = vadd.f32 %v3235, %v3314
        %s3318 = scalar_lea.vmem [#allocation7], 160
        %v3319 = vld [vmem:[%s3318] sm:$0xff]
        %v3320 = vld [vmem:[%s3318 + $0x8] sm:$0xff]
        %v3321 = vld [vmem:[%s3318 + $0x10] sm:$0xff]
        %v3322 = vld [vmem:[%s3318 + $0x18] sm:$0xff]
        %vm3323 = vcmask 1042432
        %v3324 = vrot.slane 0.0, 5
        %v3325 = vrot.slane %v2912, 5
        %v3326 = vsel %vm3323, %v3324, %v3325
        %v3327 = vsel %vm655, %v3326, 0
        %3329 = vmatprep.subr.mxu0 0.0
        %3330 = vmatpush1.msra.mxu0 %v3319
        %3331 = vmatprep.subr.mxu0 0.0
        %3332 = vmatpush1.msra.mxu0 %v3320
        %3333 = vmatprep.subr.mxu0 0.0
        %3334 = vmatpush1.msra.mxu0 %v3321
        %3335 = vmatprep.subr.mxu0 0.0
        %3336 = vmatpush1.msra.mxu0 %v3322
        %3337 = vmatprep.subr.mxu0 0.0
        %3338 = vmatpush1.msra.mxu0 0.0
        %3339 = vmatprep.subr.mxu0 0.0
        %3340 = vmatpush1.msra.mxu0 0.0
        %3341 = vmatprep.subr.mxu0 0.0
        %3342 = vmatpush1.msra.mxu0 0.0
        %3343 = vmatprep.subr.mxu0 0.0
        %3344 = vmatpush1.msra.mxu0 0.0
        %3345 = vmatprep.subr.mxu0 0.0
        %3346 = vmatpush1.msra.mxu0 0.0
        %3347 = vmatprep.subr.mxu0 0.0
        %3348 = vmatpush1.msra.mxu0 0.0
        %3349 = vmatprep.subr.mxu0 0.0
        %3350 = vmatpush1.msra.mxu0 0.0
        %3351 = vmatprep.subr.mxu0 0.0
        %3352 = vmatpush1.msra.mxu0 0.0
        %3353 = vmatprep.subr.mxu0 0.0
        %3354 = vmatpush1.msra.mxu0 0.0
        %3355 = vmatprep.subr.mxu0 0.0
        %3356 = vmatpush1.msra.mxu0 0.0
        %3357 = vmatprep.subr.mxu0 0.0
        %3358 = vmatpush1.msra.mxu0 0.0
        %3359 = vmatprep.subr.mxu0 0.0
        %3360 = vmatpush1.msra.mxu0 0.0
        %3361 = vmatprep.subr.mxu0 0.0
        %3362 = vmatpush1.msra.mxu0 0.0
        %3363 = vmatprep.subr.mxu0 0.0
        %3364 = vmatpush1.msra.mxu0 0.0
        %3365 = vmatprep.subr.mxu0 0.0
        %3366 = vmatpush1.msra.mxu0 0.0
        %3367 = vmatprep.subr.mxu0 0.0
        %3368 = vmatpush1.msra.mxu0 0.0
        %3369 = vmatprep.subr.mxu0 0.0
        %3370 = vmatpush1.msra.mxu0 0.0
        %3371 = vmatprep.subr.mxu0 0.0
        %3372 = vmatpush1.msra.mxu0 0.0
        %3373 = vmatprep.subr.mxu0 0.0
        %3374 = vmatpush1.msra.mxu0 0.0
        %3375 = vmatprep.subr.mxu0 0.0
        %3376 = vmatpush1.msra.mxu0 0.0
        %3377 = vmatprep.subr.mxu0 0.0
        %3378 = vmatpush1.msra.mxu0 0.0
        %3379 = vmatprep.subr.mxu0 0.0
        %3380 = vmatpush1.msra.mxu0 0.0
        %3381 = vmatprep.subr.mxu0 0.0
        %3382 = vmatpush1.msra.mxu0 0.0
        %3383 = vmatprep.subr.mxu0 0.0
        %3384 = vmatpush1.msra.mxu0 0.0
        %3385 = vmatprep.subr.mxu0 0.0
        %3386 = vmatpush1.msra.mxu0 0.0
        %3387 = vmatprep.subr.mxu0 0.0
        %3388 = vmatpush1.msra.mxu0 0.0
        %3389 = vmatprep.subr.mxu0 0.0
        %3390 = vmatpush1.msra.mxu0 0.0
        %3391 = vmatprep.subr.mxu0 0.0
        %3392 = vmatpush1.msra.mxu0 0.0
        %3393 = vmatprep.mubr.f32.mxu0 0.0
        %3394 = vmatmul.mubr.f32.gmra.mrb[0].mxu0 %v3327
        %v3395 = vpop.f32.mrb[0].mxu0
        %v3396 = vadd.f32 0.0, %v3395
        %v3397 = vpop.f32.mrb[0].mxu0
        %3398 = vdwg.mxu0
        %v3399 = vadd.f32 %v3317, %v3396
        %s3400 = scalar_lea.vmem [#allocation7], 192
        %v3401 = vld [vmem:[%s3400] sm:$0xff]
        %v3402 = vld [vmem:[%s3400 + $0x8] sm:$0xff]
        %v3403 = vld [vmem:[%s3400 + $0x10] sm:$0xff]
        %v3404 = vld [vmem:[%s3400 + $0x18] sm:$0xff]
        %vm3405 = vcmask 1041408
        %v3406 = vrot.slane 0.0, 6
        %v3407 = vrot.slane %v2912, 6
        %v3408 = vsel %vm3405, %v3406, %v3407
        %v3409 = vsel %vm655, %v3408, 0
        %3411 = vmatprep.subr.mxu0 0.0
        %3412 = vmatpush1.msra.mxu0 %v3401
        %3413 = vmatprep.subr.mxu0 0.0
        %3414 = vmatpush1.msra.mxu0 %v3402
        %3415 = vmatprep.subr.mxu0 0.0
        %3416 = vmatpush1.msra.mxu0 %v3403
        %3417 = vmatprep.subr.mxu0 0.0
        %3418 = vmatpush1.msra.mxu0 %v3404
        %3419 = vmatprep.subr.mxu0 0.0
        %3420 = vmatpush1.msra.mxu0 0.0
        %3421 = vmatprep.subr.mxu0 0.0
        %3422 = vmatpush1.msra.mxu0 0.0
        %3423 = vmatprep.subr.mxu0 0.0
        %3424 = vmatpush1.msra.mxu0 0.0
        %3425 = vmatprep.subr.mxu0 0.0
        %3426 = vmatpush1.msra.mxu0 0.0
        %3427 = vmatprep.subr.mxu0 0.0
        %3428 = vmatpush1.msra.mxu0 0.0
        %3429 = vmatprep.subr.mxu0 0.0
        %3430 = vmatpush1.msra.mxu0 0.0
        %3431 = vmatprep.subr.mxu0 0.0
        %3432 = vmatpush1.msra.mxu0 0.0
        %3433 = vmatprep.subr.mxu0 0.0
        %3434 = vmatpush1.msra.mxu0 0.0
        %3435 = vmatprep.subr.mxu0 0.0
        %3436 = vmatpush1.msra.mxu0 0.0
        %3437 = vmatprep.subr.mxu0 0.0
        %3438 = vmatpush1.msra.mxu0 0.0
        %3439 = vmatprep.subr.mxu0 0.0
        %3440 = vmatpush1.msra.mxu0 0.0
        %3441 = vmatprep.subr.mxu0 0.0
        %3442 = vmatpush1.msra.mxu0 0.0
        %3443 = vmatprep.subr.mxu0 0.0
        %3444 = vmatpush1.msra.mxu0 0.0
        %3445 = vmatprep.subr.mxu0 0.0
        %3446 = vmatpush1.msra.mxu0 0.0
        %3447 = vmatprep.subr.mxu0 0.0
        %3448 = vmatpush1.msra.mxu0 0.0
        %3449 = vmatprep.subr.mxu0 0.0
        %3450 = vmatpush1.msra.mxu0 0.0
        %3451 = vmatprep.subr.mxu0 0.0
        %3452 = vmatpush1.msra.mxu0 0.0
        %3453 = vmatprep.subr.mxu0 0.0
        %3454 = vmatpush1.msra.mxu0 0.0
        %3455 = vmatprep.subr.mxu0 0.0
        %3456 = vmatpush1.msra.mxu0 0.0
        %3457 = vmatprep.subr.mxu0 0.0
        %3458 = vmatpush1.msra.mxu0 0.0
        %3459 = vmatprep.subr.mxu0 0.0
        %3460 = vmatpush1.msra.mxu0 0.0
        %3461 = vmatprep.subr.mxu0 0.0
        %3462 = vmatpush1.msra.mxu0 0.0
        %3463 = vmatprep.subr.mxu0 0.0
        %3464 = vmatpush1.msra.mxu0 0.0
        %3465 = vmatprep.subr.mxu0 0.0
        %3466 = vmatpush1.msra.mxu0 0.0
        %3467 = vmatprep.subr.mxu0 0.0
        %3468 = vmatpush1.msra.mxu0 0.0
        %3469 = vmatprep.subr.mxu0 0.0
        %3470 = vmatpush1.msra.mxu0 0.0
        %3471 = vmatprep.subr.mxu0 0.0
        %3472 = vmatpush1.msra.mxu0 0.0
        %3473 = vmatprep.subr.mxu0 0.0
        %3474 = vmatpush1.msra.mxu0 0.0
        %3475 = vmatprep.mubr.f32.mxu0 0.0
        %3476 = vmatmul.mubr.f32.gmra.mrb[0].mxu0 %v3409
        %v3477 = vpop.f32.mrb[0].mxu0
        %v3478 = vadd.f32 0.0, %v3477
        %v3479 = vpop.f32.mrb[0].mxu0
        %3480 = vdwg.mxu0
        %v3481 = vadd.f32 %v3399, %v3478
        %s3482 = scalar_lea.vmem [#allocation7], 224
        %v3483 = vld [vmem:[%s3482] sm:$0xff]
        %v3484 = vld [vmem:[%s3482 + $0x8] sm:$0xff]
        %v3485 = vld [vmem:[%s3482 + $0x10] sm:$0xff]
        %v3486 = vld [vmem:[%s3482 + $0x18] sm:$0xff]
        %vm3487 = vcmask 1040384
        %v3488 = vrot.slane 0.0, 7
        %v3489 = vrot.slane %v2912, 7
        %v3490 = vsel %vm3487, %v3488, %v3489
        %v3491 = vsel %vm655, %v3490, 0
        %3493 = vmatprep.subr.mxu0 0.0
        %3494 = vmatpush1.msra.mxu0 %v3483
        %3495 = vmatprep.subr.mxu0 0.0
        %3496 = vmatpush1.msra.mxu0 %v3484
        %3497 = vmatprep.subr.mxu0 0.0
        %3498 = vmatpush1.msra.mxu0 %v3485
        %3499 = vmatprep.subr.mxu0 0.0
        %3500 = vmatpush1.msra.mxu0 %v3486
        %3501 = vmatprep.subr.mxu0 0.0
        %3502 = vmatpush1.msra.mxu0 0.0
        %3503 = vmatprep.subr.mxu0 0.0
        %3504 = vmatpush1.msra.mxu0 0.0
        %3505 = vmatprep.subr.mxu0 0.0
        %3506 = vmatpush1.msra.mxu0 0.0
        %3507 = vmatprep.subr.mxu0 0.0
        %3508 = vmatpush1.msra.mxu0 0.0
        %3509 = vmatprep.subr.mxu0 0.0
        %3510 = vmatpush1.msra.mxu0 0.0
        %3511 = vmatprep.subr.mxu0 0.0
        %3512 = vmatpush1.msra.mxu0 0.0
        %3513 = vmatprep.subr.mxu0 0.0
        %3514 = vmatpush1.msra.mxu0 0.0
        %3515 = vmatprep.subr.mxu0 0.0
        %3516 = vmatpush1.msra.mxu0 0.0
        %3517 = vmatprep.subr.mxu0 0.0
        %3518 = vmatpush1.msra.mxu0 0.0
        %3519 = vmatprep.subr.mxu0 0.0
        %3520 = vmatpush1.msra.mxu0 0.0
        %3521 = vmatprep.subr.mxu0 0.0
        %3522 = vmatpush1.msra.mxu0 0.0
        %3523 = vmatprep.subr.mxu0 0.0
        %3524 = vmatpush1.msra.mxu0 0.0
        %3525 = vmatprep.subr.mxu0 0.0
        %3526 = vmatpush1.msra.mxu0 0.0
        %3527 = vmatprep.subr.mxu0 0.0
        %3528 = vmatpush1.msra.mxu0 0.0
        %3529 = vmatprep.subr.mxu0 0.0
        %3530 = vmatpush1.msra.mxu0 0.0
        %3531 = vmatprep.subr.mxu0 0.0
        %3532 = vmatpush1.msra.mxu0 0.0
        %3533 = vmatprep.subr.mxu0 0.0
        %3534 = vmatpush1.msra.mxu0 0.0
        %3535 = vmatprep.subr.mxu0 0.0
        %3536 = vmatpush1.msra.mxu0 0.0
        %3537 = vmatprep.subr.mxu0 0.0
        %3538 = vmatpush1.msra.mxu0 0.0
        %3539 = vmatprep.subr.mxu0 0.0
        %3540 = vmatpush1.msra.mxu0 0.0
        %3541 = vmatprep.subr.mxu0 0.0
        %3542 = vmatpush1.msra.mxu0 0.0
        %3543 = vmatprep.subr.mxu0 0.0
        %3544 = vmatpush1.msra.mxu0 0.0
        %3545 = vmatprep.subr.mxu0 0.0
        %3546 = vmatpush1.msra.mxu0 0.0
        %3547 = vmatprep.subr.mxu0 0.0
        %3548 = vmatpush1.msra.mxu0 0.0
        %3549 = vmatprep.subr.mxu0 0.0
        %3550 = vmatpush1.msra.mxu0 0.0
        %3551 = vmatprep.subr.mxu0 0.0
        %3552 = vmatpush1.msra.mxu0 0.0
        %3553 = vmatprep.subr.mxu0 0.0
        %3554 = vmatpush1.msra.mxu0 0.0
        %3555 = vmatprep.subr.mxu0 0.0
        %3556 = vmatpush1.msra.mxu0 0.0
        %3557 = vmatprep.mubr.f32.mxu0 0.0
        %3558 = vmatmul.mubr.f32.gmra.mrb[0].mxu0 %v3491
        %v3559 = vpop.f32.mrb[0].mxu0
        %v3560 = vadd.f32 0.0, %v3559
        %v3561 = vpop.f32.mrb[0].mxu0
        %3562 = vdwg.mxu0
        %v3563 = vadd.f32 %v3481, %v3560
        %s3564 = scalar_lea.vmem [#allocation7], 256
        %v3565 = vld [vmem:[%s3564] sm:$0xff]
        %v3566 = vld [vmem:[%s3564 + $0x8] sm:$0xff]
        %v3567 = vld [vmem:[%s3564 + $0x10] sm:$0xff]
        %v3568 = vld [vmem:[%s3564 + $0x18] sm:$0xff]
        %v3569 = vsel %vm655, %v2912, 0
        %3571 = vmatprep.subr.mxu0 0.0
        %3572 = vmatpush1.msra.mxu0 %v3565
        %3573 = vmatprep.subr.mxu0 0.0
        %3574 = vmatpush1.msra.mxu0 %v3566
        %3575 = vmatprep.subr.mxu0 0.0
        %3576 = vmatpush1.msra.mxu0 %v3567
        %3577 = vmatprep.subr.mxu0 0.0
        %3578 = vmatpush1.msra.mxu0 %v3568
        %3579 = vmatprep.subr.mxu0 0.0
        %3580 = vmatpush1.msra.mxu0 0.0
        %3581 = vmatprep.subr.mxu0 0.0
        %3582 = vmatpush1.msra.mxu0 0.0
        %3583 = vmatprep.subr.mxu0 0.0
        %3584 = vmatpush1.msra.mxu0 0.0
        %3585 = vmatprep.subr.mxu0 0.0
        %3586 = vmatpush1.msra.mxu0 0.0
        %3587 = vmatprep.subr.mxu0 0.0
        %3588 = vmatpush1.msra.mxu0 0.0
        %3589 = vmatprep.subr.mxu0 0.0
        %3590 = vmatpush1.msra.mxu0 0.0
        %3591 = vmatprep.subr.mxu0 0.0
        %3592 = vmatpush1.msra.mxu0 0.0
        %3593 = vmatprep.subr.mxu0 0.0
        %3594 = vmatpush1.msra.mxu0 0.0
        %3595 = vmatprep.subr.mxu0 0.0
        %3596 = vmatpush1.msra.mxu0 0.0
        %3597 = vmatprep.subr.mxu0 0.0
        %3598 = vmatpush1.msra.mxu0 0.0
        %3599 = vmatprep.subr.mxu0 0.0
        %3600 = vmatpush1.msra.mxu0 0.0
        %3601 = vmatprep.subr.mxu0 0.0
        %3602 = vmatpush1.msra.mxu0 0.0
        %3603 = vmatprep.subr.mxu0 0.0
        %3604 = vmatpush1.msra.mxu0 0.0
        %3605 = vmatprep.subr.mxu0 0.0
        %3606 = vmatpush1.msra.mxu0 0.0
        %3607 = vmatprep.subr.mxu0 0.0
        %3608 = vmatpush1.msra.mxu0 0.0
        %3609 = vmatprep.subr.mxu0 0.0
        %3610 = vmatpush1.msra.mxu0 0.0
        %3611 = vmatprep.subr.mxu0 0.0
        %3612 = vmatpush1.msra.mxu0 0.0
        %3613 = vmatprep.subr.mxu0 0.0
        %3614 = vmatpush1.msra.mxu0 0.0
        %3615 = vmatprep.subr.mxu0 0.0
        %3616 = vmatpush1.msra.mxu0 0.0
        %3617 = vmatprep.subr.mxu0 0.0
        %3618 = vmatpush1.msra.mxu0 0.0
        %3619 = vmatprep.subr.mxu0 0.0
        %3620 = vmatpush1.msra.mxu0 0.0
        %3621 = vmatprep.subr.mxu0 0.0
        %3622 = vmatpush1.msra.mxu0 0.0
        %3623 = vmatprep.subr.mxu0 0.0
        %3624 = vmatpush1.msra.mxu0 0.0
        %3625 = vmatprep.subr.mxu0 0.0
        %3626 = vmatpush1.msra.mxu0 0.0
        %3627 = vmatprep.subr.mxu0 0.0
        %3628 = vmatpush1.msra.mxu0 0.0
        %3629 = vmatprep.subr.mxu0 0.0
        %3630 = vmatpush1.msra.mxu0 0.0
        %3631 = vmatprep.subr.mxu0 0.0
        %3632 = vmatpush1.msra.mxu0 0.0
        %3633 = vmatprep.subr.mxu0 0.0
        %3634 = vmatpush1.msra.mxu0 0.0
        %3635 = vmatprep.mubr.f32.mxu0 0.0
        %3636 = vmatmul.mubr.f32.gmra.mrb[0].mxu0 %v3569
        %v3637 = vpop.f32.mrb[0].mxu0
        %v3638 = vadd.f32 0.0, %v3637
        %v3639 = vpop.f32.mrb[0].mxu0
        %3640 = vdwg.mxu0
        %v3641 = vadd.f32 %v3563, %v3638
        %v3642 = vld [vmem:[%s14] sm:$0x1]
        %v3644 = vlaneseq
        %v3645 = vshrl.u32 %v3644, 7
        %v3646 = vsub.s32 0, %v3645
        %v3647 = vrot.slane %v3642, %v3646
        %v3649 = vadd.f32 %v3641, %v3647
        %v3650 = vmul.f32 %v3649, 0.33333334
        %v3651 = vmul.f32 %v3650, 0.5
        %v3652 = vmul.f32 %v3650, 0.70710677
        %v3653 = verf.f32.pop %v3652
        %v3654 = vadd.f32 %v3653, 1.0
        %v3655 = vmul.f32 %v3651, %v3654
        %v3656 = vld [vmem:[%s15] sm:$0xff]
        %v3657 = vld [vmem:[%s15 + $0x8] sm:$0xff]
        %v3658 = vld [vmem:[%s15 + $0x10] sm:$0xff]
        %v3659 = vld [vmem:[%s15 + $0x18] sm:$0xff]
        %v3660 = vld [vmem:[%s15 + $0x20] sm:$0xff]
        %v3661 = vld [vmem:[%s15 + $0x28] sm:$0xff]
        %v3662 = vld [vmem:[%s15 + $0x30] sm:$0xff]
        %v3663 = vld [vmem:[%s15 + $0x38] sm:$0xff]
        %v3664 = vld [vmem:[%s15 + $0x40] sm:$0xff]
        %v3665 = vld [vmem:[%s15 + $0x48] sm:$0xff]
        %v3666 = vld [vmem:[%s15 + $0x50] sm:$0xff]
        %v3667 = vld [vmem:[%s15 + $0x58] sm:$0xff]
        %v3668 = vld [vmem:[%s15 + $0x60] sm:$0xff]
        %v3669 = vld [vmem:[%s15 + $0x68] sm:$0xff]
        %v3670 = vld [vmem:[%s15 + $0x70] sm:$0xff]
        %v3671 = vld [vmem:[%s15 + $0x78] sm:$0xff]
        %v3672 = vld [vmem:[%s16] sm:$0x1]
        %v3674 = vlaneseq
        %v3675 = vshrl.u32 %v3674, 7
        %v3676 = vsub.s32 0, %v3675
        %v3677 = vrot.slane %v3672, %v3676
        %3679 = vmatprep.subr.mxu0 0.0
        %3680 = vmatpush1.msra.mxu0 %v3656
        %3681 = vmatprep.subr.mxu0 0.0
        %3682 = vmatpush1.msra.mxu0 %v3657
        %3683 = vmatprep.subr.mxu0 0.0
        %3684 = vmatpush1.msra.mxu0 %v3658
        %3685 = vmatprep.subr.mxu0 0.0
        %3686 = vmatpush1.msra.mxu0 %v3659
        %3687 = vmatprep.subr.mxu0 0.0
        %3688 = vmatpush1.msra.mxu0 %v3660
        %3689 = vmatprep.subr.mxu0 0.0
        %3690 = vmatpush1.msra.mxu0 %v3661
        %3691 = vmatprep.subr.mxu0 0.0
        %3692 = vmatpush1.msra.mxu0 %v3662
        %3693 = vmatprep.subr.mxu0 0.0
        %3694 = vmatpush1.msra.mxu0 %v3663
        %3695 = vmatprep.subr.mxu0 0.0
        %3696 = vmatpush1.msra.mxu0 %v3664
        %3697 = vmatprep.subr.mxu0 0.0
        %3698 = vmatpush1.msra.mxu0 %v3665
        %3699 = vmatprep.subr.mxu0 0.0
        %3700 = vmatpush1.msra.mxu0 %v3666
        %3701 = vmatprep.subr.mxu0 0.0
        %3702 = vmatpush1.msra.mxu0 %v3667
        %3703 = vmatprep.subr.mxu0 0.0
        %3704 = vmatpush1.msra.mxu0 %v3668
        %3705 = vmatprep.subr.mxu0 0.0
        %3706 = vmatpush1.msra.mxu0 %v3669
        %3707 = vmatprep.subr.mxu0 0.0
        %3708 = vmatpush1.msra.mxu0 %v3670
        %3709 = vmatprep.subr.mxu0 0.0
        %3710 = vmatpush1.msra.mxu0 %v3671
        %3711 = vmatprep.subr.mxu0 0.0
        %3712 = vmatpush1.msra.mxu0 0.0
        %3713 = vmatprep.subr.mxu0 0.0
        %3714 = vmatpush1.msra.mxu0 0.0
        %3715 = vmatprep.subr.mxu0 0.0
        %3716 = vmatpush1.msra.mxu0 0.0
        %3717 = vmatprep.subr.mxu0 0.0
        %3718 = vmatpush1.msra.mxu0 0.0
        %3719 = vmatprep.subr.mxu0 0.0
        %3720 = vmatpush1.msra.mxu0 0.0
        %3721 = vmatprep.subr.mxu0 0.0
        %3722 = vmatpush1.msra.mxu0 0.0
        %3723 = vmatprep.subr.mxu0 0.0
        %3724 = vmatpush1.msra.mxu0 0.0
        %3725 = vmatprep.subr.mxu0 0.0
        %3726 = vmatpush1.msra.mxu0 0.0
        %3727 = vmatprep.subr.mxu0 0.0
        %3728 = vmatpush1.msra.mxu0 0.0
        %3729 = vmatprep.subr.mxu0 0.0
        %3730 = vmatpush1.msra.mxu0 0.0
        %3731 = vmatprep.subr.mxu0 0.0
        %3732 = vmatpush1.msra.mxu0 0.0
        %3733 = vmatprep.subr.mxu0 0.0
        %3734 = vmatpush1.msra.mxu0 0.0
        %3735 = vmatprep.subr.mxu0 0.0
        %3736 = vmatpush1.msra.mxu0 0.0
        %3737 = vmatprep.subr.mxu0 0.0
        %3738 = vmatpush1.msra.mxu0 0.0
        %3739 = vmatprep.subr.mxu0 0.0
        %3740 = vmatpush1.msra.mxu0 0.0
        %3741 = vmatprep.subr.mxu0 0.0
        %3742 = vmatpush1.msra.mxu0 0.0
        %3743 = vmatprep.mubr.f32.mxu0 0.0
        %3744 = vmatmul.mubr.f32.gmra.mrb[0].mxu0 %v3655
        %v3745 = vpop.f32.mrb[0].mxu0
        %v3746 = vadd.f32 %v3677, %v3745
        %v3747 = vpop.f32.mrb[0].mxu0
        %3748 = vdwg.mxu0
        %v3749 = vadd.f32 %v2883, %v3746
        %3750 = vst.msk [vmem:[%s645] sm:$0xff] %vm655, %v3749
        %s3751 = sand.u32 %s417, 1
        %s3752 = scalar_lea.sflag [#allocation4], %s3751
        %s3753 = sand.u32 %s417, 1
        %s3754 = smul.addr %s3753, 8
        %s3755 = scalar_lea.vmem [#allocation8], %s3754
        %s3756 = sand.u32 %s443, 1
        %s3757 = scalar_lea.sflag [#allocation10], %s3756
        %s3758 = sand.u32 %s443, 1
        %s3759 = smul.addr %s3758, 8
        %s3760 = scalar_lea.vmem [#allocation9], %s3759
        // Predicated region
        $region101: #{tpu_custom_call.1} parent=87 // pred_check
          %p3761 = pneg %p427
        $region102: #{tpu_custom_call.1} parent=87 // pred_check_branch
          %3763 = sbr.rel (%p3761) target = $region104
        $region103: #{tpu_custom_call.1} parent=87 // pred_region
          %s3765 = ssub.s32 128, 128
          %3766 = vsyncadd %s3752, %s3765
          %s3767 = smul.addr %s42, 128
          %s3768 = scalar_lea.hbm %s17, %s3767
          %s3770 = sshll.u32 %s3755, 4
          %s3771 = int_to_ptr.vmem [resolvable:$true] %s3770
          %3773 = dma.vmem_to_hbm [thread:$0]  %s3771, 128, %s3768, %s3752
        $region104: #{tpu_custom_call.1} parent=87 // pred_fallthru
          _
        // Predicated region
        $region105: #{tpu_custom_call.1} parent=87 // pred_check
          %p3774 = pneg %p453
        $region106: #{tpu_custom_call.1} parent=87 // pred_check_branch
          %3776 = sbr.rel (%p3774) target = $region108
        $region107: #{tpu_custom_call.1} parent=87 // pred_region
          %s3778 = ssub.s32 128, 128
          %3779 = vsyncadd %s3757, %s3778
          %s3780 = smul.addr %s42, 128
          %s3781 = scalar_lea.hbm %s18, %s3780
          %s3783 = sshll.u32 %s3760, 4
          %s3784 = int_to_ptr.vmem [resolvable:$true] %s3783
          %3786 = dma.vmem_to_hbm [thread:$0]  %s3784, 128, %s3781, %s3757
        $region108: #{tpu_custom_call.1} parent=87 // pred_fallthru
          _
      $region88: #{tpu_custom_call.1} parent=5 // pred_fallthru
        _
      %p3787 = scmp.le.s32.totalorder 2, %s37
      // Predicated region
      $region109: #{tpu_custom_call.1} parent=5 // pred_check
        %p3788 = pneg %p3787
      $region110: #{tpu_custom_call.1} parent=5 // pred_check_branch
        %3790 = sbr.rel (%p3788) target = $region112
      $region111: #{tpu_custom_call.1} parent=5 // pred_region
        %s3791 = ssub.s32 %s37, 2
        // Predicated region
        $region113: #{tpu_custom_call.1} parent=111 // pred_check
          %p3792 = pneg %p433
        $region114: #{tpu_custom_call.1} parent=111 // pred_check_branch
          %3794 = sbr.rel (%p3792) target = $region116
        $region115: #{tpu_custom_call.1} parent=111 // pred_region
          %s3795 = sand.u32 %s418, 1
          %s3796 = scalar_lea.sflag [#allocation4], %s3795
          %s3797 = sand.u32 %s418, 1
          %s3798 = smul.addr %s3797, 8
          %s3799 = scalar_lea.vmem [#allocation8], %s3798
          %3800 = dma.done %s3796, 128
        $region116: #{tpu_custom_call.1} parent=111 // pred_fallthru
          _
        // Predicated region
        $region117: #{tpu_custom_call.1} parent=111 // pred_check
          %p3801 = pneg %p459
        $region118: #{tpu_custom_call.1} parent=111 // pred_check_branch
          %3803 = sbr.rel (%p3801) target = $region120
        $region119: #{tpu_custom_call.1} parent=111 // pred_region
          %s3804 = sand.u32 %s444, 1
          %s3805 = scalar_lea.sflag [#allocation10], %s3804
          %s3806 = sand.u32 %s444, 1
          %s3807 = smul.addr %s3806, 8
          %s3808 = scalar_lea.vmem [#allocation9], %s3807
          %3809 = dma.done %s3805, 128
        $region120: #{tpu_custom_call.1} parent=111 // pred_fallthru
          _
      $region112: #{tpu_custom_call.1} parent=5 // pred_fallthru
        _
    $region6: #{tpu_custom_call.1} parent=1 // loop_footer
      %s41 = sadd.s32 1, %s37
    $region7: #{tpu_custom_call.1} parent=1 // loop_footer_branch
      %36 = sbr.rel target = $region3
    $region8: #{tpu_custom_call.1} parent=1 // loop_exit
      _
    %3810 = vsyncpa [#allocation3], 1
    %s3811 = scalar_lea.sflag [#allocation3], 1
    %3812 = vsyncpa %s3811, 1
    %3813 = vsyncpa [#allocation6], 1
    %s3814 = scalar_lea.sflag [#allocation6], 1
    %3815 = vsyncpa %s3814, 1
    %3816 = vsyncpa [#allocation4], 1
    %s3817 = scalar_lea.sflag [#allocation4], 1
    %3818 = vsyncpa %s3817, 1
    %3819 = vsyncpa [#allocation10], 1
    %s3820 = scalar_lea.sflag [#allocation10], 1
    %3821 = vsyncpa %s3820, 1

</llo_original>
